<compile_context>
chip_gen: v7x
topology: tpu7x:2x2x1
jax: 0.10.0
libtpu: 0.0.40
codegen_flags: <defaults>
</compile_context>

<pallas_src>
import jax
import jax.numpy as jnp
from jax.experimental import pallas as pl
from jax.experimental.pallas import tpu as pltpu

EMB_DIM = 64
BN_EPS = 1e-5


# --------------------------------------------------------------------------
# Pallas kernel: Conv1d x3 (+folded BN+ReLU) + global max pool, Bt samples
# per grid step, one im2col matmul per conv layer.
# --------------------------------------------------------------------------
def _make_branch_kernel(bt, l_pad, kernel_sizes, l3_valid):
    k1, k2, k3 = kernel_sizes

    def conv_im2col(h, w_ref, ksz):
        # h: (l_pad, cin) f32.  Conv1d(valid) as ONE im2col matmul:
        #   slab[t, j*cin + ci] = h[t + j, ci]   (shifted copies via sublane roll)
        #   out = slab @ W   with  W[j*cin + ci, co] = torch_W[co, ci, j].
        # Rows t >= valid length are circular-wrap garbage: finite, never read
        # by a later *valid* row, and masked out before the max pool.
        pieces = []
        for j in range(ksz):
            p = h if j == 0 else pltpu.roll(h, l_pad - j, axis=0)
            pieces.append(p.astype(jnp.bfloat16))
        slab = jnp.concatenate(pieces, axis=1)            # (l_pad, ksz*cin) bf16
        return jnp.dot(slab, w_ref[...],                  # bf16 x bf16 -> f32 acc
                       preferred_element_type=jnp.float32)

    def kernel(x_ref, w1_ref, s1_ref, w2_ref, s2_ref, w3_ref, out_ref):
        rows = []
        for b in range(bt):                               # static unroll over samples
            h = x_ref[b]                                  # (l_pad, 64) channels-last
            h = jnp.maximum(conv_im2col(h, w1_ref, k1) + s1_ref[...], 0.0)
            h = jnp.maximum(conv_im2col(h, w2_ref, k2) + s2_ref[...], 0.0)
            h = conv_im2col(h, w3_ref, k3)                # (l_pad, 160)
            valid = jax.lax.broadcasted_iota(jnp.int32, h.shape, 0) < l3_valid
            h = jnp.where(valid, h, -1e30)
            rows.append(jnp.max(h, axis=0, keepdims=True))   # (1, 160)
        out_ref[...] = jnp.concatenate(rows, axis=0)      # (bt, 160) lane-dense

    return kernel


def _prep_branch(wp):
    """Fold eval-mode BN into the conv weights and reshape to im2col layout."""
    def fold(w, b, bn):
        k = w.shape[2]
        w_kic = jnp.transpose(w, (2, 1, 0))               # (k, Cin, Cout)
        shift = None
        if bn is not None:
            gamma, beta, mean, var = bn
            s = gamma / jnp.sqrt(var + BN_EPS)
            w_kic = w_kic * s[None, None, :]              # BN scale into weights
            shift = (s * (b - mean) + beta)[None, :]      # conv bias into BN shift
        w_mat = w_kic.reshape(k * w_kic.shape[1], w_kic.shape[2])
        return w_mat.astype(jnp.bfloat16), shift

    w1, s1 = fold(wp["w1"], wp["b1"], wp["bn1"])
    w2, s2 = fold(wp["w2"], wp["b2"], wp["bn2"])
    w3, _ = fold(wp["w3"], wp["b3"], None)
    return w1, s1, w2, s2, w3


def cnn_branch(emb, wp, bt=8):
    """One Conv1d stack (+BN+ReLU) + global max pool, as a Pallas TPU kernel.

    emb: (B, L, 64) channels-last embeddings.  Returns (B, 160) pooled features.
    """
    B, L, c0 = emb.shape
    k1, k2, k3 = wp["w1"].shape[2], wp["w2"].shape[2], wp["w3"].shape[2]
    c_out = wp["w3"].shape[0]
    l3_valid = L - (k1 - 1) - (k2 - 1) - (k3 - 1)
    assert l3_valid >= 1, "sequence too short for conv stack"

    w1, s1, w2, s2, w3 = _prep_branch(wp)

    # Pad time to a multiple of 8 sublanes; padded rows never reach a valid
    # output position (masked before the max pool).
    l_pad = -(-L // 8) * 8
    if l_pad != L:
        emb = jnp.pad(emb, ((0, 0), (0, l_pad - L), (0, 0)))

    # Bt samples per grid step (amortizes per-step overhead, multi-sublane
    # lane-dense output store).  Pad batch so every block is full.
    bt = B if B <= bt else bt
    b_pad = -(-B // bt) * bt
    if b_pad != B:
        emb = jnp.pad(emb, ((0, b_pad - B), (0, 0), (0, 0)))

    kern = _make_branch_kernel(bt, l_pad, (k1, k2, k3), l3_valid)

    def wspec(a):
        return pl.BlockSpec(a.shape, lambda b: (0, 0))    # weights resident

    out = pl.pallas_call(
        kern,
        out_shape=jax.ShapeDtypeStruct((b_pad, c_out), jnp.float32),
        grid=(b_pad // bt,),
        in_specs=[
            pl.BlockSpec((bt, l_pad, c0), lambda b: (b, 0, 0)),
            wspec(w1), wspec(s1), wspec(w2), wspec(s2), wspec(w3),
        ],
        out_specs=pl.BlockSpec((bt, c_out), lambda b: (b, 0)),
        compiler_params=pltpu.CompilerParams(
            dimension_semantics=("parallel",),            # batch steps independent
            vmem_limit_bytes=48 * 1024 * 1024),           # sized to fit v7x VMEM
    )(emb, w1, s1, w2, s2, w3)

    # Conv3 bias commutes with the time max-pool -> add it outside the kernel.
    return out[:B] + wp["b3"][None, :]


# --------------------------------------------------------------------------
# GAT stand-in (class not provided) + output MLP: plain JAX glue.
# --------------------------------------------------------------------------
def _gat(compound, adj, gp):
    # TODO(synk): GAT() is not defined in model2.py; single-layer GAT placeholder.
    h = compound @ gp["W"]                                # (B, N, 64)
    src = h @ gp["a_src"]                                 # (B, N)
    dst = h @ gp["a_dst"]                                 # (B, N)
    e = jax.nn.leaky_relu(src[:, :, None] + dst[:, None, :], 0.2)
    e = jnp.where(adj > 0, e, -1e9)
    attn = jax.nn.softmax(e, axis=-1)
    return jax.nn.elu(attn @ h)                           # (B, N, 64)


def cnn_forward(compound, adj, smi_ids, prot_ids, params):
    # nn.Embedding lookups (padding_idx=0 row is zero) in XLA.
    pro_e = jnp.take(params["pro_emb"], prot_ids, axis=0)   # (B, LP, 64)
    smi_e = jnp.take(params["smi_emb"], smi_ids, axis=0)    # (B, LS, 64)

    cnn_pro = cnn_branch(pro_e, params["pro_cnn"])          # (B, 160)  Pallas
    cnn_smi = cnn_branch(smi_e, params["smi_cnn"])          # (B, 160)  Pallas

    gat_smi = jnp.max(_gat(compound, adj, params["gat"]), axis=1)   # (B, 64)

    out_fc = jnp.concatenate([cnn_pro, cnn_smi, gat_smi], axis=1)   # (B, 384)
    # Output MLP hoisted out of the kernel (one batched (B,384)x(384,512) matmul).
    # TODO(synk): Dropout is eval-mode identity.
    h = jnp.maximum(out_fc @ params["w_out1"] + params["b_out1"], 0.0)
    return h @ params["w_out2"] + params["b_out2"]


# --------------------------------------------------------------------------
# Parameter init (PyTorch-default-ish) and a pure-JAX reference (lax.conv).
# --------------------------------------------------------------------------
def init_params(key, pro_vocab, smi_vocab, atom_dim):
    ks = iter(jax.random.split(key, 32))
    nk = lambda: next(ks)

    def conv_p(cout, cin, ksz):
        ka, kb = jax.random.split(nk())
        bound = 1.0 / (cin * ksz) ** 0.5
        w = jax.random.uniform(ka, (cout, cin, ksz), jnp.float32, -bound, bound)
        b = jax.random.uniform(kb, (cout,), jnp.float32, -bound, bound)
        return w, b

    def bn_p(c):
        ka, kb, kc, kd = jax.random.split(nk(), 4)
        g = 1.0 + 0.1 * jax.random.normal(ka, (c,), jnp.float32)
        b = 0.1 * jax.random.normal(kb, (c,), jnp.float32)
        m = 0.1 * jax.random.normal(kc, (c,), jnp.float32)
        v = jax.random.uniform(kd, (c,), jnp.float32, 0.5, 1.5)
        return g, b, m, v

    def linear_p(fin, fout):
        ka, kb = jax.random.split(nk())
        bound = 1.0 / fin ** 0.5
        w = jax.random.uniform(ka, (fin, fout), jnp.float32, -bound, bound)
        b = jax.random.uniform(kb, (fout,), jnp.float32, -bound, bound)
        return w, b

    def branch(kernel_sizes):
        chans = (EMB_DIM, 40, 80, 160)
        d = {}
        for i, (cin, cout, ksz) in enumerate(
                zip(chans[:-1], chans[1:], kernel_sizes), 1):
            w, b = conv_p(cout, cin, ksz)
            d[f"w{i}"] = w
            d[f"b{i}"] = b
            if i < 3:
                d[f"bn{i}"] = bn_p(cout)
        return d

    pro_emb = jax.random.normal(nk(), (pro_vocab, EMB_DIM), jnp.float32).at[0].set(0.0)
    smi_emb = jax.random.normal(nk(), (smi_vocab, EMB_DIM), jnp.float32).at[0].set(0.0)

    gat_W, _ = linear_p(atom_dim, EMB_DIM)
    a_src = 0.1 * jax.random.normal(nk(), (EMB_DIM,), jnp.float32)
    a_dst = 0.1 * jax.random.normal(nk(), (EMB_DIM,), jnp.float32)

    w_out1, b_out1 = linear_p(160 + 160 + EMB_DIM, 512)
    w_out2, b_out2 = linear_p(512, 2)

    return dict(pro_emb=pro_emb, smi_emb=smi_emb,
                smi_cnn=branch((4, 6, 8)), pro_cnn=branch((4, 8, 12)),
                gat=dict(W=gat_W, a_src=a_src, a_dst=a_dst),
                w_out1=w_out1, b_out1=b_out1, w_out2=w_out2, b_out2=b_out2)


def reference_forward(compound, adj, smi_ids, prot_ids, p):
    """Pure-JAX reference mirroring cnn.forward (eval mode), convs via lax.conv."""
    def branch(emb, wp):
        x = jnp.transpose(emb, (0, 2, 1))                 # (B, C, L)

        def conv(x, w, b):
            y = jax.lax.conv_general_dilated(
                x, w, (1,), "VALID",
                dimension_numbers=("NCH", "OIH", "NCH"),
                precision=jax.lax.Precision.HIGHEST)
            return y + b[None, :, None]

        def bn(x, g, b_, m, v):
            return ((x - m[None, :, None]) / jnp.sqrt(v[None, :, None] + BN_EPS)
                    * g[None, :, None] + b_[None, :, None])

        y = jnp.maximum(bn(conv(x, wp["w1"], wp["b1"]), *wp["bn1"]), 0.0)
        y = jnp.maximum(bn(conv(y, wp["w2"], wp["b2"]), *wp["bn2"]), 0.0)
        y = conv(y, wp["w3"], wp["b3"])
        return jnp.max(y, axis=2)                         # MaxPool1d(full length)

    pro_e = jnp.take(p["pro_emb"], prot_ids, axis=0)
    smi_e = jnp.take(p["smi_emb"], smi_ids, axis=0)
    cnn_pro = branch(pro_e, p["pro_cnn"])
    cnn_smi = branch(smi_e, p["smi_cnn"])
    gat_smi = jnp.max(_gat(compound, adj, p["gat"]), axis=1)
    fc = jnp.concatenate([cnn_pro, cnn_smi, gat_smi], axis=1)
    h = jnp.maximum(fc @ p["w_out1"] + p["b_out1"], 0.0)
    return h @ p["w_out2"] + p["b_out2"]


if __name__ == "__main__":
    key = jax.random.PRNGKey(0)
    k_param, k_smi, k_pro, k_cmp, k_adj = jax.random.split(key, 5)

    B = 2
    LS = 32          # small MAX_DRUG_LEN (real model: 256 -> MaxPool1d(241))
    LP = 64          # small MAX_PROTEIN_LEN (real model: 1024 -> MaxPool1d(1003))
    N_ATOMS = 16
    ATOM_DIM = 34
    SMI_VOCAB = 64
    PRO_VOCAB = 26

    params = init_params(k_param, PRO_VOCAB, SMI_VOCAB, ATOM_DIM)
    smi_ids = jax.random.randint(k_smi, (B, LS), 0, SMI_VOCAB)
    prot_ids = jax.random.randint(k_pro, (B, LP), 0, PRO_VOCAB)
    compound = jax.random.normal(k_cmp, (B, N_ATOMS, ATOM_DIM), jnp.float32)
    adj_r = jax.random.bernoulli(k_adj, 0.3, (B, N_ATOMS, N_ATOMS))
    adj = (adj_r | jnp.transpose(adj_r, (0, 2, 1))
           | jnp.eye(N_ATOMS, dtype=bool)[None]).astype(jnp.float32)

    fwd = jax.jit(cnn_forward)
    out = fwd(compound, adj, smi_ids, prot_ids, params)
    jax.block_until_ready(out)

    ref = reference_forward(compound, adj, smi_ids, prot_ids, params)
    assert out.shape == (B, 2)
    assert jnp.allclose(out, ref, atol=2e-2, rtol=2e-2), (out, ref)
    print("KERNEL_OK")
</pallas_src>

<mosaic_0001>
module attributes {stable_mosaic.version = 11 : i64} {
  func.func @kernel(%arg0: i32, %arg1: memref<2x64x64xf32, #tpu.memory_space<vmem>>, %arg2: memref<256x40xbf16, #tpu.memory_space<vmem>>, %arg3: memref<1x40xf32, #tpu.memory_space<vmem>>, %arg4: memref<320x80xbf16, #tpu.memory_space<vmem>>, %arg5: memref<1x80xf32, #tpu.memory_space<vmem>>, %arg6: memref<960x160xbf16, #tpu.memory_space<vmem>>, %arg7: memref<2x160xf32, #tpu.memory_space<vmem>>) attributes {dimension_semantics = [#tpu.dimension_semantics<parallel>], iteration_bounds = array<i64: 1>, scalar_prefetch = 0 : i64, scratch_operands = 0 : i64, tpu.core_type = #tpu.core_type<tc>, window_params = [{transform_indices = @transform_0, window_bounds = array<i64: 2, 64, 64>}, {pipeline_mode = #tpu.pipeline_mode<synchronous>, transform_indices = @transform_1, window_bounds = array<i64: 256, 40>}, {pipeline_mode = #tpu.pipeline_mode<synchronous>, transform_indices = @transform_2, window_bounds = array<i64: 1, 40>}, {pipeline_mode = #tpu.pipeline_mode<synchronous>, transform_indices = @transform_3, window_bounds = array<i64: 320, 80>}, {pipeline_mode = #tpu.pipeline_mode<synchronous>, transform_indices = @transform_4, window_bounds = array<i64: 1, 80>}, {pipeline_mode = #tpu.pipeline_mode<synchronous>, transform_indices = @transform_5, window_bounds = array<i64: 960, 160>}, {transform_indices = @transform_6, window_bounds = array<i64: 2, 160>}]} {
    %c0 = arith.constant 0 : index
    %c0_0 = arith.constant 0 : index
    %c0_1 = arith.constant 0 : index
    %0 = vector.load %arg1[%c0, %c0_0, %c0_1] : memref<2x64x64xf32, #tpu.memory_space<vmem>>, vector<1x64x64xf32>
    %1 = vector.shape_cast %0 : vector<1x64x64xf32> to vector<64x64xf32>
    %2 = arith.truncf %1 : vector<64x64xf32> to vector<64x64xbf16>
    %c63_i32 = arith.constant 63 : i32
    %3 = tpu.dynamic_rotate %1 by %c63_i32 dim 0 : vector<64x64xf32>, i32 -> vector<64x64xf32>
    %4 = arith.truncf %3 : vector<64x64xf32> to vector<64x64xbf16>
    %c62_i32 = arith.constant 62 : i32
    %5 = tpu.dynamic_rotate %1 by %c62_i32 dim 0 : vector<64x64xf32>, i32 -> vector<64x64xf32>
    %6 = arith.truncf %5 : vector<64x64xf32> to vector<64x64xbf16>
    %c61_i32 = arith.constant 61 : i32
    %7 = tpu.dynamic_rotate %1 by %c61_i32 dim 0 : vector<64x64xf32>, i32 -> vector<64x64xf32>
    %8 = arith.truncf %7 : vector<64x64xf32> to vector<64x64xbf16>
    %9 = tpu.concatenate %2, %4, %6, %8 in 1 : vector<64x64xbf16>, vector<64x64xbf16>, vector<64x64xbf16>, vector<64x64xbf16> -> vector<64x256xbf16>
    %c0_2 = arith.constant 0 : index
    %c0_3 = arith.constant 0 : index
    %10 = vector.load %arg2[%c0_2, %c0_3] : memref<256x40xbf16, #tpu.memory_space<vmem>>, vector<256x40xbf16>
    %cst = arith.constant dense<0.000000e+00> : vector<64x40xf32>
    %11 = tpu.matmul %9, %10, %cst {dimension_numbers = #tpu.dot_dimension_numbers<[1], [0], [0], [1], [0, 0, 1, 1], [], []>} : vector<64x256xbf16>, vector<256x40xbf16>, vector<64x40xf32> -> vector<64x40xf32>
    %c0_4 = arith.constant 0 : index
    %c0_5 = arith.constant 0 : index
    %12 = vector.load %arg3[%c0_4, %c0_5] : memref<1x40xf32, #tpu.memory_space<vmem>>, vector<1x40xf32>
    %13 = vector.broadcast %12 : vector<1x40xf32> to vector<64x40xf32>
    %14 = arith.addf %11, %13 : vector<64x40xf32>
    %cst_6 = arith.constant 0.000000e+00 : f32
    %15 = vector.broadcast %cst_6 : f32 to vector<64x40xf32>
    %16 = arith.maximumf %14, %15 : vector<64x40xf32>
    %17 = arith.truncf %16 : vector<64x40xf32> to vector<64x40xbf16>
    %c63_i32_7 = arith.constant 63 : i32
    %18 = tpu.dynamic_rotate %16 by %c63_i32_7 dim 0 : vector<64x40xf32>, i32 -> vector<64x40xf32>
    %19 = arith.truncf %18 : vector<64x40xf32> to vector<64x40xbf16>
    %c62_i32_8 = arith.constant 62 : i32
    %20 = tpu.dynamic_rotate %16 by %c62_i32_8 dim 0 : vector<64x40xf32>, i32 -> vector<64x40xf32>
    %21 = arith.truncf %20 : vector<64x40xf32> to vector<64x40xbf16>
    %c61_i32_9 = arith.constant 61 : i32
    %22 = tpu.dynamic_rotate %16 by %c61_i32_9 dim 0 : vector<64x40xf32>, i32 -> vector<64x40xf32>
    %23 = arith.truncf %22 : vector<64x40xf32> to vector<64x40xbf16>
    %c60_i32 = arith.constant 60 : i32
    %24 = tpu.dynamic_rotate %16 by %c60_i32 dim 0 : vector<64x40xf32>, i32 -> vector<64x40xf32>
    %25 = arith.truncf %24 : vector<64x40xf32> to vector<64x40xbf16>
    %c59_i32 = arith.constant 59 : i32
    %26 = tpu.dynamic_rotate %16 by %c59_i32 dim 0 : vector<64x40xf32>, i32 -> vector<64x40xf32>
    %27 = arith.truncf %26 : vector<64x40xf32> to vector<64x40xbf16>
    %c58_i32 = arith.constant 58 : i32
    %28 = tpu.dynamic_rotate %16 by %c58_i32 dim 0 : vector<64x40xf32>, i32 -> vector<64x40xf32>
    %29 = arith.truncf %28 : vector<64x40xf32> to vector<64x40xbf16>
    %c57_i32 = arith.constant 57 : i32
    %30 = tpu.dynamic_rotate %16 by %c57_i32 dim 0 : vector<64x40xf32>, i32 -> vector<64x40xf32>
    %31 = arith.truncf %30 : vector<64x40xf32> to vector<64x40xbf16>
    %32 = tpu.concatenate %17, %19, %21, %23, %25, %27, %29, %31 in 1 : vector<64x40xbf16>, vector<64x40xbf16>, vector<64x40xbf16>, vector<64x40xbf16>, vector<64x40xbf16>, vector<64x40xbf16>, vector<64x40xbf16>, vector<64x40xbf16> -> vector<64x320xbf16>
    %c0_10 = arith.constant 0 : index
    %c0_11 = arith.constant 0 : index
    %33 = vector.load %arg4[%c0_10, %c0_11] : memref<320x80xbf16, #tpu.memory_space<vmem>>, vector<320x80xbf16>
    %cst_12 = arith.constant dense<0.000000e+00> : vector<64x80xf32>
    %34 = tpu.matmul %32, %33, %cst_12 {dimension_numbers = #tpu.dot_dimension_numbers<[1], [0], [0], [1], [0, 0, 1, 1], [], []>} : vector<64x320xbf16>, vector<320x80xbf16>, vector<64x80xf32> -> vector<64x80xf32>
    %c0_13 = arith.constant 0 : index
    %c0_14 = arith.constant 0 : index
    %35 = vector.load %arg5[%c0_13, %c0_14] : memref<1x80xf32, #tpu.memory_space<vmem>>, vector<1x80xf32>
    %36 = vector.broadcast %35 : vector<1x80xf32> to vector<64x80xf32>
    %37 = arith.addf %34, %36 : vector<64x80xf32>
    %cst_15 = arith.constant 0.000000e+00 : f32
    %38 = vector.broadcast %cst_15 : f32 to vector<64x80xf32>
    %39 = arith.maximumf %37, %38 : vector<64x80xf32>
    %40 = arith.truncf %39 : vector<64x80xf32> to vector<64x80xbf16>
    %c63_i32_16 = arith.constant 63 : i32
    %41 = tpu.dynamic_rotate %39 by %c63_i32_16 dim 0 : vector<64x80xf32>, i32 -> vector<64x80xf32>
    %42 = arith.truncf %41 : vector<64x80xf32> to vector<64x80xbf16>
    %c62_i32_17 = arith.constant 62 : i32
    %43 = tpu.dynamic_rotate %39 by %c62_i32_17 dim 0 : vector<64x80xf32>, i32 -> vector<64x80xf32>
    %44 = arith.truncf %43 : vector<64x80xf32> to vector<64x80xbf16>
    %c61_i32_18 = arith.constant 61 : i32
    %45 = tpu.dynamic_rotate %39 by %c61_i32_18 dim 0 : vector<64x80xf32>, i32 -> vector<64x80xf32>
    %46 = arith.truncf %45 : vector<64x80xf32> to vector<64x80xbf16>
    %c60_i32_19 = arith.constant 60 : i32
    %47 = tpu.dynamic_rotate %39 by %c60_i32_19 dim 0 : vector<64x80xf32>, i32 -> vector<64x80xf32>
    %48 = arith.truncf %47 : vector<64x80xf32> to vector<64x80xbf16>
    %c59_i32_20 = arith.constant 59 : i32
    %49 = tpu.dynamic_rotate %39 by %c59_i32_20 dim 0 : vector<64x80xf32>, i32 -> vector<64x80xf32>
    %50 = arith.truncf %49 : vector<64x80xf32> to vector<64x80xbf16>
    %c58_i32_21 = arith.constant 58 : i32
    %51 = tpu.dynamic_rotate %39 by %c58_i32_21 dim 0 : vector<64x80xf32>, i32 -> vector<64x80xf32>
    %52 = arith.truncf %51 : vector<64x80xf32> to vector<64x80xbf16>
    %c57_i32_22 = arith.constant 57 : i32
    %53 = tpu.dynamic_rotate %39 by %c57_i32_22 dim 0 : vector<64x80xf32>, i32 -> vector<64x80xf32>
    %54 = arith.truncf %53 : vector<64x80xf32> to vector<64x80xbf16>
    %c56_i32 = arith.constant 56 : i32
    %55 = tpu.dynamic_rotate %39 by %c56_i32 dim 0 : vector<64x80xf32>, i32 -> vector<64x80xf32>
    %56 = arith.truncf %55 : vector<64x80xf32> to vector<64x80xbf16>
    %c55_i32 = arith.constant 55 : i32
    %57 = tpu.dynamic_rotate %39 by %c55_i32 dim 0 : vector<64x80xf32>, i32 -> vector<64x80xf32>
    %58 = arith.truncf %57 : vector<64x80xf32> to vector<64x80xbf16>
    %c54_i32 = arith.constant 54 : i32
    %59 = tpu.dynamic_rotate %39 by %c54_i32 dim 0 : vector<64x80xf32>, i32 -> vector<64x80xf32>
    %60 = arith.truncf %59 : vector<64x80xf32> to vector<64x80xbf16>
    %c53_i32 = arith.constant 53 : i32
    %61 = tpu.dynamic_rotate %39 by %c53_i32 dim 0 : vector<64x80xf32>, i32 -> vector<64x80xf32>
    %62 = arith.truncf %61 : vector<64x80xf32> to vector<64x80xbf16>
    %63 = tpu.concatenate %40, %42, %44, %46, %48, %50, %52, %54, %56, %58, %60, %62 in 1 : vector<64x80xbf16>, vector<64x80xbf16>, vector<64x80xbf16>, vector<64x80xbf16>, vector<64x80xbf16>, vector<64x80xbf16>, vector<64x80xbf16>, vector<64x80xbf16>, vector<64x80xbf16>, vector<64x80xbf16>, vector<64x80xbf16>, vector<64x80xbf16> -> vector<64x960xbf16>
    %c0_23 = arith.constant 0 : index
    %c0_24 = arith.constant 0 : index
    %64 = vector.load %arg6[%c0_23, %c0_24] : memref<960x160xbf16, #tpu.memory_space<vmem>>, vector<960x160xbf16>
    %cst_25 = arith.constant dense<0.000000e+00> : vector<64x160xf32>
    %65 = tpu.matmul %63, %64, %cst_25 {dimension_numbers = #tpu.dot_dimension_numbers<[1], [0], [0], [1], [0, 0, 1, 1], [], []>} : vector<64x960xbf16>, vector<960x160xbf16>, vector<64x160xf32> -> vector<64x160xf32>
    %66 = tpu.iota {dimensions = array<i32: 0>} : vector<64x160xi32>
    %c43_i32 = arith.constant 43 : i32
    %67 = vector.broadcast %c43_i32 : i32 to vector<64x160xi32>
    %68 = arith.cmpi slt, %66, %67 : vector<64x160xi32>
    %cst_26 = arith.constant -1.000000e+30 : f32
    %69 = vector.broadcast %cst_26 : f32 to vector<64x160xf32>
    %70 = arith.select %68, %65, %69 : vector<64x160xi1>, vector<64x160xf32>
    %cst_27 = arith.constant dense<0xFF800000> : vector<160xf32>
    %71 = vector.multi_reduction <maximumf>, %70, %cst_27 [0] : vector<64x160xf32> to vector<160xf32>
    %72 = vector.shape_cast %71 : vector<160xf32> to vector<1x160xf32>
    %c1 = arith.constant 1 : index
    %c0_28 = arith.constant 0 : index
    %c0_29 = arith.constant 0 : index
    %73 = vector.load %arg1[%c1, %c0_28, %c0_29] : memref<2x64x64xf32, #tpu.memory_space<vmem>>, vector<1x64x64xf32>
    %74 = vector.shape_cast %73 : vector<1x64x64xf32> to vector<64x64xf32>
    %75 = arith.truncf %74 : vector<64x64xf32> to vector<64x64xbf16>
    %c63_i32_30 = arith.constant 63 : i32
    %76 = tpu.dynamic_rotate %74 by %c63_i32_30 dim 0 : vector<64x64xf32>, i32 -> vector<64x64xf32>
    %77 = arith.truncf %76 : vector<64x64xf32> to vector<64x64xbf16>
    %c62_i32_31 = arith.constant 62 : i32
    %78 = tpu.dynamic_rotate %74 by %c62_i32_31 dim 0 : vector<64x64xf32>, i32 -> vector<64x64xf32>
    %79 = arith.truncf %78 : vector<64x64xf32> to vector<64x64xbf16>
    %c61_i32_32 = arith.constant 61 : i32
    %80 = tpu.dynamic_rotate %74 by %c61_i32_32 dim 0 : vector<64x64xf32>, i32 -> vector<64x64xf32>
    %81 = arith.truncf %80 : vector<64x64xf32> to vector<64x64xbf16>
    %82 = tpu.concatenate %75, %77, %79, %81 in 1 : vector<64x64xbf16>, vector<64x64xbf16>, vector<64x64xbf16>, vector<64x64xbf16> -> vector<64x256xbf16>
    %c0_33 = arith.constant 0 : index
    %c0_34 = arith.constant 0 : index
    %83 = vector.load %arg2[%c0_33, %c0_34] : memref<256x40xbf16, #tpu.memory_space<vmem>>, vector<256x40xbf16>
    %cst_35 = arith.constant dense<0.000000e+00> : vector<64x40xf32>
    %84 = tpu.matmul %82, %83, %cst_35 {dimension_numbers = #tpu.dot_dimension_numbers<[1], [0], [0], [1], [0, 0, 1, 1], [], []>} : vector<64x256xbf16>, vector<256x40xbf16>, vector<64x40xf32> -> vector<64x40xf32>
    %c0_36 = arith.constant 0 : index
    %c0_37 = arith.constant 0 : index
    %85 = vector.load %arg3[%c0_36, %c0_37] : memref<1x40xf32, #tpu.memory_space<vmem>>, vector<1x40xf32>
    %86 = vector.broadcast %85 : vector<1x40xf32> to vector<64x40xf32>
    %87 = arith.addf %84, %86 : vector<64x40xf32>
    %cst_38 = arith.constant 0.000000e+00 : f32
    %88 = vector.broadcast %cst_38 : f32 to vector<64x40xf32>
    %89 = arith.maximumf %87, %88 : vector<64x40xf32>
    %90 = arith.truncf %89 : vector<64x40xf32> to vector<64x40xbf16>
    %c63_i32_39 = arith.constant 63 : i32
    %91 = tpu.dynamic_rotate %89 by %c63_i32_39 dim 0 : vector<64x40xf32>, i32 -> vector<64x40xf32>
    %92 = arith.truncf %91 : vector<64x40xf32> to vector<64x40xbf16>
    %c62_i32_40 = arith.constant 62 : i32
    %93 = tpu.dynamic_rotate %89 by %c62_i32_40 dim 0 : vector<64x40xf32>, i32 -> vector<64x40xf32>
    %94 = arith.truncf %93 : vector<64x40xf32> to vector<64x40xbf16>
    %c61_i32_41 = arith.constant 61 : i32
    %95 = tpu.dynamic_rotate %89 by %c61_i32_41 dim 0 : vector<64x40xf32>, i32 -> vector<64x40xf32>
    %96 = arith.truncf %95 : vector<64x40xf32> to vector<64x40xbf16>
    %c60_i32_42 = arith.constant 60 : i32
    %97 = tpu.dynamic_rotate %89 by %c60_i32_42 dim 0 : vector<64x40xf32>, i32 -> vector<64x40xf32>
    %98 = arith.truncf %97 : vector<64x40xf32> to vector<64x40xbf16>
    %c59_i32_43 = arith.constant 59 : i32
    %99 = tpu.dynamic_rotate %89 by %c59_i32_43 dim 0 : vector<64x40xf32>, i32 -> vector<64x40xf32>
    %100 = arith.truncf %99 : vector<64x40xf32> to vector<64x40xbf16>
    %c58_i32_44 = arith.constant 58 : i32
    %101 = tpu.dynamic_rotate %89 by %c58_i32_44 dim 0 : vector<64x40xf32>, i32 -> vector<64x40xf32>
    %102 = arith.truncf %101 : vector<64x40xf32> to vector<64x40xbf16>
    %c57_i32_45 = arith.constant 57 : i32
    %103 = tpu.dynamic_rotate %89 by %c57_i32_45 dim 0 : vector<64x40xf32>, i32 -> vector<64x40xf32>
    %104 = arith.truncf %103 : vector<64x40xf32> to vector<64x40xbf16>
    %105 = tpu.concatenate %90, %92, %94, %96, %98, %100, %102, %104 in 1 : vector<64x40xbf16>, vector<64x40xbf16>, vector<64x40xbf16>, vector<64x40xbf16>, vector<64x40xbf16>, vector<64x40xbf16>, vector<64x40xbf16>, vector<64x40xbf16> -> vector<64x320xbf16>
    %c0_46 = arith.constant 0 : index
    %c0_47 = arith.constant 0 : index
    %106 = vector.load %arg4[%c0_46, %c0_47] : memref<320x80xbf16, #tpu.memory_space<vmem>>, vector<320x80xbf16>
    %cst_48 = arith.constant dense<0.000000e+00> : vector<64x80xf32>
    %107 = tpu.matmul %105, %106, %cst_48 {dimension_numbers = #tpu.dot_dimension_numbers<[1], [0], [0], [1], [0, 0, 1, 1], [], []>} : vector<64x320xbf16>, vector<320x80xbf16>, vector<64x80xf32> -> vector<64x80xf32>
    %c0_49 = arith.constant 0 : index
    %c0_50 = arith.constant 0 : index
    %108 = vector.load %arg5[%c0_49, %c0_50] : memref<1x80xf32, #tpu.memory_space<vmem>>, vector<1x80xf32>
    %109 = vector.broadcast %108 : vector<1x80xf32> to vector<64x80xf32>
    %110 = arith.addf %107, %109 : vector<64x80xf32>
    %cst_51 = arith.constant 0.000000e+00 : f32
    %111 = vector.broadcast %cst_51 : f32 to vector<64x80xf32>
    %112 = arith.maximumf %110, %111 : vector<64x80xf32>
    %113 = arith.truncf %112 : vector<64x80xf32> to vector<64x80xbf16>
    %c63_i32_52 = arith.constant 63 : i32
    %114 = tpu.dynamic_rotate %112 by %c63_i32_52 dim 0 : vector<64x80xf32>, i32 -> vector<64x80xf32>
    %115 = arith.truncf %114 : vector<64x80xf32> to vector<64x80xbf16>
    %c62_i32_53 = arith.constant 62 : i32
    %116 = tpu.dynamic_rotate %112 by %c62_i32_53 dim 0 : vector<64x80xf32>, i32 -> vector<64x80xf32>
    %117 = arith.truncf %116 : vector<64x80xf32> to vector<64x80xbf16>
    %c61_i32_54 = arith.constant 61 : i32
    %118 = tpu.dynamic_rotate %112 by %c61_i32_54 dim 0 : vector<64x80xf32>, i32 -> vector<64x80xf32>
    %119 = arith.truncf %118 : vector<64x80xf32> to vector<64x80xbf16>
    %c60_i32_55 = arith.constant 60 : i32
    %120 = tpu.dynamic_rotate %112 by %c60_i32_55 dim 0 : vector<64x80xf32>, i32 -> vector<64x80xf32>
    %121 = arith.truncf %120 : vector<64x80xf32> to vector<64x80xbf16>
    %c59_i32_56 = arith.constant 59 : i32
    %122 = tpu.dynamic_rotate %112 by %c59_i32_56 dim 0 : vector<64x80xf32>, i32 -> vector<64x80xf32>
    %123 = arith.truncf %122 : vector<64x80xf32> to vector<64x80xbf16>
    %c58_i32_57 = arith.constant 58 : i32
    %124 = tpu.dynamic_rotate %112 by %c58_i32_57 dim 0 : vector<64x80xf32>, i32 -> vector<64x80xf32>
    %125 = arith.truncf %124 : vector<64x80xf32> to vector<64x80xbf16>
    %c57_i32_58 = arith.constant 57 : i32
    %126 = tpu.dynamic_rotate %112 by %c57_i32_58 dim 0 : vector<64x80xf32>, i32 -> vector<64x80xf32>
    %127 = arith.truncf %126 : vector<64x80xf32> to vector<64x80xbf16>
    %c56_i32_59 = arith.constant 56 : i32
    %128 = tpu.dynamic_rotate %112 by %c56_i32_59 dim 0 : vector<64x80xf32>, i32 -> vector<64x80xf32>
    %129 = arith.truncf %128 : vector<64x80xf32> to vector<64x80xbf16>
    %c55_i32_60 = arith.constant 55 : i32
    %130 = tpu.dynamic_rotate %112 by %c55_i32_60 dim 0 : vector<64x80xf32>, i32 -> vector<64x80xf32>
    %131 = arith.truncf %130 : vector<64x80xf32> to vector<64x80xbf16>
    %c54_i32_61 = arith.constant 54 : i32
    %132 = tpu.dynamic_rotate %112 by %c54_i32_61 dim 0 : vector<64x80xf32>, i32 -> vector<64x80xf32>
    %133 = arith.truncf %132 : vector<64x80xf32> to vector<64x80xbf16>
    %c53_i32_62 = arith.constant 53 : i32
    %134 = tpu.dynamic_rotate %112 by %c53_i32_62 dim 0 : vector<64x80xf32>, i32 -> vector<64x80xf32>
    %135 = arith.truncf %134 : vector<64x80xf32> to vector<64x80xbf16>
    %136 = tpu.concatenate %113, %115, %117, %119, %121, %123, %125, %127, %129, %131, %133, %135 in 1 : vector<64x80xbf16>, vector<64x80xbf16>, vector<64x80xbf16>, vector<64x80xbf16>, vector<64x80xbf16>, vector<64x80xbf16>, vector<64x80xbf16>, vector<64x80xbf16>, vector<64x80xbf16>, vector<64x80xbf16>, vector<64x80xbf16>, vector<64x80xbf16> -> vector<64x960xbf16>
    %c0_63 = arith.constant 0 : index
    %c0_64 = arith.constant 0 : index
    %137 = vector.load %arg6[%c0_63, %c0_64] : memref<960x160xbf16, #tpu.memory_space<vmem>>, vector<960x160xbf16>
    %cst_65 = arith.constant dense<0.000000e+00> : vector<64x160xf32>
    %138 = tpu.matmul %136, %137, %cst_65 {dimension_numbers = #tpu.dot_dimension_numbers<[1], [0], [0], [1], [0, 0, 1, 1], [], []>} : vector<64x960xbf16>, vector<960x160xbf16>, vector<64x160xf32> -> vector<64x160xf32>
    %139 = tpu.iota {dimensions = array<i32: 0>} : vector<64x160xi32>
    %c43_i32_66 = arith.constant 43 : i32
    %140 = vector.broadcast %c43_i32_66 : i32 to vector<64x160xi32>
    %141 = arith.cmpi slt, %139, %140 : vector<64x160xi32>
    %cst_67 = arith.constant -1.000000e+30 : f32
    %142 = vector.broadcast %cst_67 : f32 to vector<64x160xf32>
    %143 = arith.select %141, %138, %142 : vector<64x160xi1>, vector<64x160xf32>
    %cst_68 = arith.constant dense<0xFF800000> : vector<160xf32>
    %144 = vector.multi_reduction <maximumf>, %143, %cst_68 [0] : vector<64x160xf32> to vector<160xf32>
    %145 = vector.shape_cast %144 : vector<160xf32> to vector<1x160xf32>
    %146 = tpu.concatenate %72, %145 in 0 : vector<1x160xf32>, vector<1x160xf32> -> vector<2x160xf32>
    %c0_69 = arith.constant 0 : index
    %c0_70 = arith.constant 0 : index
    %147 = vector.load %arg7[%c0_69, %c0_70] : memref<2x160xf32, #tpu.memory_space<vmem>>, vector<2x160xf32>
    tpu.vector_store %arg7[%c0_69, %c0_70], %146 {strides = array<i32>} : memref<2x160xf32, #tpu.memory_space<vmem>>, vector<2x160xf32>,
    return
  }
  func.func @transform_0(%arg0: i32) -> (i32, i32, i32) {
    %c0_i32 = arith.constant 0 : i32
    %c0_i32_0 = arith.constant 0 : i32
    %c0_i32_1 = arith.constant 0 : i32
    return %arg0, %c0_i32, %c0_i32_0 : i32, i32, i32
  }
  func.func @transform_1(%arg0: i32) -> (i32, i32) {
    %c0_i32 = arith.constant 0 : i32
    %c0_i32_0 = arith.constant 0 : i32
    %c0_i32_1 = arith.constant 0 : i32
    return %c0_i32, %c0_i32_0 : i32, i32
  }
  func.func @transform_2(%arg0: i32) -> (i32, i32) {
    %c0_i32 = arith.constant 0 : i32
    %c0_i32_0 = arith.constant 0 : i32
    %c0_i32_1 = arith.constant 0 : i32
    return %c0_i32, %c0_i32_0 : i32, i32
  }
  func.func @transform_3(%arg0: i32) -> (i32, i32) {
    %c0_i32 = arith.constant 0 : i32
    %c0_i32_0 = arith.constant 0 : i32
    %c0_i32_1 = arith.constant 0 : i32
    return %c0_i32, %c0_i32_0 : i32, i32
  }
  func.func @transform_4(%arg0: i32) -> (i32, i32) {
    %c0_i32 = arith.constant 0 : i32
    %c0_i32_0 = arith.constant 0 : i32
    %c0_i32_1 = arith.constant 0 : i32
    return %c0_i32, %c0_i32_0 : i32, i32
  }
  func.func @transform_5(%arg0: i32) -> (i32, i32) {
    %c0_i32 = arith.constant 0 : i32
    %c0_i32_0 = arith.constant 0 : i32
    %c0_i32_1 = arith.constant 0 : i32
    return %c0_i32, %c0_i32_0 : i32, i32
  }
  func.func @transform_6(%arg0: i32) -> (i32, i32) {
    %c0_i32 = arith.constant 0 : i32
    %c0_i32_0 = arith.constant 0 : i32
    return %arg0, %c0_i32 : i32, i32
  }
}

module attributes {stable_mosaic.version = 11 : i64} {
  func.func @kernel(%arg0: i32, %arg1: memref<2x32x64xf32, #tpu.memory_space<vmem>>, %arg2: memref<256x40xbf16, #tpu.memory_space<vmem>>, %arg3: memref<1x40xf32, #tpu.memory_space<vmem>>, %arg4: memref<240x80xbf16, #tpu.memory_space<vmem>>, %arg5: memref<1x80xf32, #tpu.memory_space<vmem>>, %arg6: memref<640x160xbf16, #tpu.memory_space<vmem>>, %arg7: memref<2x160xf32, #tpu.memory_space<vmem>>) attributes {dimension_semantics = [#tpu.dimension_semantics<parallel>], iteration_bounds = array<i64: 1>, scalar_prefetch = 0 : i64, scratch_operands = 0 : i64, tpu.core_type = #tpu.core_type<tc>, window_params = [{transform_indices = @transform_0, window_bounds = array<i64: 2, 32, 64>}, {pipeline_mode = #tpu.pipeline_mode<synchronous>, transform_indices = @transform_1, window_bounds = array<i64: 256, 40>}, {pipeline_mode = #tpu.pipeline_mode<synchronous>, transform_indices = @transform_2, window_bounds = array<i64: 1, 40>}, {pipeline_mode = #tpu.pipeline_mode<synchronous>, transform_indices = @transform_3, window_bounds = array<i64: 240, 80>}, {pipeline_mode = #tpu.pipeline_mode<synchronous>, transform_indices = @transform_4, window_bounds = array<i64: 1, 80>}, {pipeline_mode = #tpu.pipeline_mode<synchronous>, transform_indices = @transform_5, window_bounds = array<i64: 640, 160>}, {transform_indices = @transform_6, window_bounds = array<i64: 2, 160>}]} {
    %c0 = arith.constant 0 : index
    %c0_0 = arith.constant 0 : index
    %c0_1 = arith.constant 0 : index
    %0 = vector.load %arg1[%c0, %c0_0, %c0_1] : memref<2x32x64xf32, #tpu.memory_space<vmem>>, vector<1x32x64xf32>
    %1 = vector.shape_cast %0 : vector<1x32x64xf32> to vector<32x64xf32>
    %2 = arith.truncf %1 : vector<32x64xf32> to vector<32x64xbf16>
    %c31_i32 = arith.constant 31 : i32
    %3 = tpu.dynamic_rotate %1 by %c31_i32 dim 0 : vector<32x64xf32>, i32 -> vector<32x64xf32>
    %4 = arith.truncf %3 : vector<32x64xf32> to vector<32x64xbf16>
    %c30_i32 = arith.constant 30 : i32
    %5 = tpu.dynamic_rotate %1 by %c30_i32 dim 0 : vector<32x64xf32>, i32 -> vector<32x64xf32>
    %6 = arith.truncf %5 : vector<32x64xf32> to vector<32x64xbf16>
    %c29_i32 = arith.constant 29 : i32
    %7 = tpu.dynamic_rotate %1 by %c29_i32 dim 0 : vector<32x64xf32>, i32 -> vector<32x64xf32>
    %8 = arith.truncf %7 : vector<32x64xf32> to vector<32x64xbf16>
    %9 = tpu.concatenate %2, %4, %6, %8 in 1 : vector<32x64xbf16>, vector<32x64xbf16>, vector<32x64xbf16>, vector<32x64xbf16> -> vector<32x256xbf16>
    %c0_2 = arith.constant 0 : index
    %c0_3 = arith.constant 0 : index
    %10 = vector.load %arg2[%c0_2, %c0_3] : memref<256x40xbf16, #tpu.memory_space<vmem>>, vector<256x40xbf16>
    %cst = arith.constant dense<0.000000e+00> : vector<32x40xf32>
    %11 = tpu.matmul %9, %10, %cst {dimension_numbers = #tpu.dot_dimension_numbers<[1], [0], [0], [1], [0, 0, 1, 1], [], []>} : vector<32x256xbf16>, vector<256x40xbf16>, vector<32x40xf32> -> vector<32x40xf32>
    %c0_4 = arith.constant 0 : index
    %c0_5 = arith.constant 0 : index
    %12 = vector.load %arg3[%c0_4, %c0_5] : memref<1x40xf32, #tpu.memory_space<vmem>>, vector<1x40xf32>
    %13 = vector.broadcast %12 : vector<1x40xf32> to vector<32x40xf32>
    %14 = arith.addf %11, %13 : vector<32x40xf32>
    %cst_6 = arith.constant 0.000000e+00 : f32
    %15 = vector.broadcast %cst_6 : f32 to vector<32x40xf32>
    %16 = arith.maximumf %14, %15 : vector<32x40xf32>
    %17 = arith.truncf %16 : vector<32x40xf32> to vector<32x40xbf16>
    %c31_i32_7 = arith.constant 31 : i32
    %18 = tpu.dynamic_rotate %16 by %c31_i32_7 dim 0 : vector<32x40xf32>, i32 -> vector<32x40xf32>
    %19 = arith.truncf %18 : vector<32x40xf32> to vector<32x40xbf16>
    %c30_i32_8 = arith.constant 30 : i32
    %20 = tpu.dynamic_rotate %16 by %c30_i32_8 dim 0 : vector<32x40xf32>, i32 -> vector<32x40xf32>
    %21 = arith.truncf %20 : vector<32x40xf32> to vector<32x40xbf16>
    %c29_i32_9 = arith.constant 29 : i32
    %22 = tpu.dynamic_rotate %16 by %c29_i32_9 dim 0 : vector<32x40xf32>, i32 -> vector<32x40xf32>
    %23 = arith.truncf %22 : vector<32x40xf32> to vector<32x40xbf16>
    %c28_i32 = arith.constant 28 : i32
    %24 = tpu.dynamic_rotate %16 by %c28_i32 dim 0 : vector<32x40xf32>, i32 -> vector<32x40xf32>
    %25 = arith.truncf %24 : vector<32x40xf32> to vector<32x40xbf16>
    %c27_i32 = arith.constant 27 : i32
    %26 = tpu.dynamic_rotate %16 by %c27_i32 dim 0 : vector<32x40xf32>, i32 -> vector<32x40xf32>
    %27 = arith.truncf %26 : vector<32x40xf32> to vector<32x40xbf16>
    %28 = tpu.concatenate %17, %19, %21, %23, %25, %27 in 1 : vector<32x40xbf16>, vector<32x40xbf16>, vector<32x40xbf16>, vector<32x40xbf16>, vector<32x40xbf16>, vector<32x40xbf16> -> vector<32x240xbf16>
    %c0_10 = arith.constant 0 : index
    %c0_11 = arith.constant 0 : index
    %29 = vector.load %arg4[%c0_10, %c0_11] : memref<240x80xbf16, #tpu.memory_space<vmem>>, vector<240x80xbf16>
    %cst_12 = arith.constant dense<0.000000e+00> : vector<32x80xf32>
    %30 = tpu.matmul %28, %29, %cst_12 {dimension_numbers = #tpu.dot_dimension_numbers<[1], [0], [0], [1], [0, 0, 1, 1], [], []>} : vector<32x240xbf16>, vector<240x80xbf16>, vector<32x80xf32> -> vector<32x80xf32>
    %c0_13 = arith.constant 0 : index
    %c0_14 = arith.constant 0 : index
    %31 = vector.load %arg5[%c0_13, %c0_14] : memref<1x80xf32, #tpu.memory_space<vmem>>, vector<1x80xf32>
    %32 = vector.broadcast %31 : vector<1x80xf32> to vector<32x80xf32>
    %33 = arith.addf %30, %32 : vector<32x80xf32>
    %cst_15 = arith.constant 0.000000e+00 : f32
    %34 = vector.broadcast %cst_15 : f32 to vector<32x80xf32>
    %35 = arith.maximumf %33, %34 : vector<32x80xf32>
    %36 = arith.truncf %35 : vector<32x80xf32> to vector<32x80xbf16>
    %c31_i32_16 = arith.constant 31 : i32
    %37 = tpu.dynamic_rotate %35 by %c31_i32_16 dim 0 : vector<32x80xf32>, i32 -> vector<32x80xf32>
    %38 = arith.truncf %37 : vector<32x80xf32> to vector<32x80xbf16>
    %c30_i32_17 = arith.constant 30 : i32
    %39 = tpu.dynamic_rotate %35 by %c30_i32_17 dim 0 : vector<32x80xf32>, i32 -> vector<32x80xf32>
    %40 = arith.truncf %39 : vector<32x80xf32> to vector<32x80xbf16>
    %c29_i32_18 = arith.constant 29 : i32
    %41 = tpu.dynamic_rotate %35 by %c29_i32_18 dim 0 : vector<32x80xf32>, i32 -> vector<32x80xf32>
    %42 = arith.truncf %41 : vector<32x80xf32> to vector<32x80xbf16>
    %c28_i32_19 = arith.constant 28 : i32
    %43 = tpu.dynamic_rotate %35 by %c28_i32_19 dim 0 : vector<32x80xf32>, i32 -> vector<32x80xf32>
    %44 = arith.truncf %43 : vector<32x80xf32> to vector<32x80xbf16>
    %c27_i32_20 = arith.constant 27 : i32
    %45 = tpu.dynamic_rotate %35 by %c27_i32_20 dim 0 : vector<32x80xf32>, i32 -> vector<32x80xf32>
    %46 = arith.truncf %45 : vector<32x80xf32> to vector<32x80xbf16>
    %c26_i32 = arith.constant 26 : i32
    %47 = tpu.dynamic_rotate %35 by %c26_i32 dim 0 : vector<32x80xf32>, i32 -> vector<32x80xf32>
    %48 = arith.truncf %47 : vector<32x80xf32> to vector<32x80xbf16>
    %c25_i32 = arith.constant 25 : i32
    %49 = tpu.dynamic_rotate %35 by %c25_i32 dim 0 : vector<32x80xf32>, i32 -> vector<32x80xf32>
    %50 = arith.truncf %49 : vector<32x80xf32> to vector<32x80xbf16>
    %51 = tpu.concatenate %36, %38, %40, %42, %44, %46, %48, %50 in 1 : vector<32x80xbf16>, vector<32x80xbf16>, vector<32x80xbf16>, vector<32x80xbf16>, vector<32x80xbf16>, vector<32x80xbf16>, vector<32x80xbf16>, vector<32x80xbf16> -> vector<32x640xbf16>
    %c0_21 = arith.constant 0 : index
    %c0_22 = arith.constant 0 : index
    %52 = vector.load %arg6[%c0_21, %c0_22] : memref<640x160xbf16, #tpu.memory_space<vmem>>, vector<640x160xbf16>
    %cst_23 = arith.constant dense<0.000000e+00> : vector<32x160xf32>
    %53 = tpu.matmul %51, %52, %cst_23 {dimension_numbers = #tpu.dot_dimension_numbers<[1], [0], [0], [1], [0, 0, 1, 1], [], []>} : vector<32x640xbf16>, vector<640x160xbf16>, vector<32x160xf32> -> vector<32x160xf32>
    %54 = tpu.iota {dimensions = array<i32: 0>} : vector<32x160xi32>
    %c17_i32 = arith.constant 17 : i32
    %55 = vector.broadcast %c17_i32 : i32 to vector<32x160xi32>
    %56 = arith.cmpi slt, %54, %55 : vector<32x160xi32>
    %cst_24 = arith.constant -1.000000e+30 : f32
    %57 = vector.broadcast %cst_24 : f32 to vector<32x160xf32>
    %58 = arith.select %56, %53, %57 : vector<32x160xi1>, vector<32x160xf32>
    %cst_25 = arith.constant dense<0xFF800000> : vector<160xf32>
    %59 = vector.multi_reduction <maximumf>, %58, %cst_25 [0] : vector<32x160xf32> to vector<160xf32>
    %60 = vector.shape_cast %59 : vector<160xf32> to vector<1x160xf32>
    %c1 = arith.constant 1 : index
    %c0_26 = arith.constant 0 : index
    %c0_27 = arith.constant 0 : index
    %61 = vector.load %arg1[%c1, %c0_26, %c0_27] : memref<2x32x64xf32, #tpu.memory_space<vmem>>, vector<1x32x64xf32>
    %62 = vector.shape_cast %61 : vector<1x32x64xf32> to vector<32x64xf32>
    %63 = arith.truncf %62 : vector<32x64xf32> to vector<32x64xbf16>
    %c31_i32_28 = arith.constant 31 : i32
    %64 = tpu.dynamic_rotate %62 by %c31_i32_28 dim 0 : vector<32x64xf32>, i32 -> vector<32x64xf32>
    %65 = arith.truncf %64 : vector<32x64xf32> to vector<32x64xbf16>
    %c30_i32_29 = arith.constant 30 : i32
    %66 = tpu.dynamic_rotate %62 by %c30_i32_29 dim 0 : vector<32x64xf32>, i32 -> vector<32x64xf32>
    %67 = arith.truncf %66 : vector<32x64xf32> to vector<32x64xbf16>
    %c29_i32_30 = arith.constant 29 : i32
    %68 = tpu.dynamic_rotate %62 by %c29_i32_30 dim 0 : vector<32x64xf32>, i32 -> vector<32x64xf32>
    %69 = arith.truncf %68 : vector<32x64xf32> to vector<32x64xbf16>
    %70 = tpu.concatenate %63, %65, %67, %69 in 1 : vector<32x64xbf16>, vector<32x64xbf16>, vector<32x64xbf16>, vector<32x64xbf16> -> vector<32x256xbf16>
    %c0_31 = arith.constant 0 : index
    %c0_32 = arith.constant 0 : index
    %71 = vector.load %arg2[%c0_31, %c0_32] : memref<256x40xbf16, #tpu.memory_space<vmem>>, vector<256x40xbf16>
    %cst_33 = arith.constant dense<0.000000e+00> : vector<32x40xf32>
    %72 = tpu.matmul %70, %71, %cst_33 {dimension_numbers = #tpu.dot_dimension_numbers<[1], [0], [0], [1], [0, 0, 1, 1], [], []>} : vector<32x256xbf16>, vector<256x40xbf16>, vector<32x40xf32> -> vector<32x40xf32>
    %c0_34 = arith.constant 0 : index
    %c0_35 = arith.constant 0 : index
    %73 = vector.load %arg3[%c0_34, %c0_35] : memref<1x40xf32, #tpu.memory_space<vmem>>, vector<1x40xf32>
    %74 = vector.broadcast %73 : vector<1x40xf32> to vector<32x40xf32>
    %75 = arith.addf %72, %74 : vector<32x40xf32>
    %cst_36 = arith.constant 0.000000e+00 : f32
    %76 = vector.broadcast %cst_36 : f32 to vector<32x40xf32>
    %77 = arith.maximumf %75, %76 : vector<32x40xf32>
    %78 = arith.truncf %77 : vector<32x40xf32> to vector<32x40xbf16>
    %c31_i32_37 = arith.constant 31 : i32
    %79 = tpu.dynamic_rotate %77 by %c31_i32_37 dim 0 : vector<32x40xf32>, i32 -> vector<32x40xf32>
    %80 = arith.truncf %79 : vector<32x40xf32> to vector<32x40xbf16>
    %c30_i32_38 = arith.constant 30 : i32
    %81 = tpu.dynamic_rotate %77 by %c30_i32_38 dim 0 : vector<32x40xf32>, i32 -> vector<32x40xf32>
    %82 = arith.truncf %81 : vector<32x40xf32> to vector<32x40xbf16>
    %c29_i32_39 = arith.constant 29 : i32
    %83 = tpu.dynamic_rotate %77 by %c29_i32_39 dim 0 : vector<32x40xf32>, i32 -> vector<32x40xf32>
    %84 = arith.truncf %83 : vector<32x40xf32> to vector<32x40xbf16>
    %c28_i32_40 = arith.constant 28 : i32
    %85 = tpu.dynamic_rotate %77 by %c28_i32_40 dim 0 : vector<32x40xf32>, i32 -> vector<32x40xf32>
    %86 = arith.truncf %85 : vector<32x40xf32> to vector<32x40xbf16>
    %c27_i32_41 = arith.constant 27 : i32
    %87 = tpu.dynamic_rotate %77 by %c27_i32_41 dim 0 : vector<32x40xf32>, i32 -> vector<32x40xf32>
    %88 = arith.truncf %87 : vector<32x40xf32> to vector<32x40xbf16>
    %89 = tpu.concatenate %78, %80, %82, %84, %86, %88 in 1 : vector<32x40xbf16>, vector<32x40xbf16>, vector<32x40xbf16>, vector<32x40xbf16>, vector<32x40xbf16>, vector<32x40xbf16> -> vector<32x240xbf16>
    %c0_42 = arith.constant 0 : index
    %c0_43 = arith.constant 0 : index
    %90 = vector.load %arg4[%c0_42, %c0_43] : memref<240x80xbf16, #tpu.memory_space<vmem>>, vector<240x80xbf16>
    %cst_44 = arith.constant dense<0.000000e+00> : vector<32x80xf32>
    %91 = tpu.matmul %89, %90, %cst_44 {dimension_numbers = #tpu.dot_dimension_numbers<[1], [0], [0], [1], [0, 0, 1, 1], [], []>} : vector<32x240xbf16>, vector<240x80xbf16>, vector<32x80xf32> -> vector<32x80xf32>
    %c0_45 = arith.constant 0 : index
    %c0_46 = arith.constant 0 : index
    %92 = vector.load %arg5[%c0_45, %c0_46] : memref<1x80xf32, #tpu.memory_space<vmem>>, vector<1x80xf32>
    %93 = vector.broadcast %92 : vector<1x80xf32> to vector<32x80xf32>
    %94 = arith.addf %91, %93 : vector<32x80xf32>
    %cst_47 = arith.constant 0.000000e+00 : f32
    %95 = vector.broadcast %cst_47 : f32 to vector<32x80xf32>
    %96 = arith.maximumf %94, %95 : vector<32x80xf32>
    %97 = arith.truncf %96 : vector<32x80xf32> to vector<32x80xbf16>
    %c31_i32_48 = arith.constant 31 : i32
    %98 = tpu.dynamic_rotate %96 by %c31_i32_48 dim 0 : vector<32x80xf32>, i32 -> vector<32x80xf32>
    %99 = arith.truncf %98 : vector<32x80xf32> to vector<32x80xbf16>
    %c30_i32_49 = arith.constant 30 : i32
    %100 = tpu.dynamic_rotate %96 by %c30_i32_49 dim 0 : vector<32x80xf32>, i32 -> vector<32x80xf32>
    %101 = arith.truncf %100 : vector<32x80xf32> to vector<32x80xbf16>
    %c29_i32_50 = arith.constant 29 : i32
    %102 = tpu.dynamic_rotate %96 by %c29_i32_50 dim 0 : vector<32x80xf32>, i32 -> vector<32x80xf32>
    %103 = arith.truncf %102 : vector<32x80xf32> to vector<32x80xbf16>
    %c28_i32_51 = arith.constant 28 : i32
    %104 = tpu.dynamic_rotate %96 by %c28_i32_51 dim 0 : vector<32x80xf32>, i32 -> vector<32x80xf32>
    %105 = arith.truncf %104 : vector<32x80xf32> to vector<32x80xbf16>
    %c27_i32_52 = arith.constant 27 : i32
    %106 = tpu.dynamic_rotate %96 by %c27_i32_52 dim 0 : vector<32x80xf32>, i32 -> vector<32x80xf32>
    %107 = arith.truncf %106 : vector<32x80xf32> to vector<32x80xbf16>
    %c26_i32_53 = arith.constant 26 : i32
    %108 = tpu.dynamic_rotate %96 by %c26_i32_53 dim 0 : vector<32x80xf32>, i32 -> vector<32x80xf32>
    %109 = arith.truncf %108 : vector<32x80xf32> to vector<32x80xbf16>
    %c25_i32_54 = arith.constant 25 : i32
    %110 = tpu.dynamic_rotate %96 by %c25_i32_54 dim 0 : vector<32x80xf32>, i32 -> vector<32x80xf32>
    %111 = arith.truncf %110 : vector<32x80xf32> to vector<32x80xbf16>
    %112 = tpu.concatenate %97, %99, %101, %103, %105, %107, %109, %111 in 1 : vector<32x80xbf16>, vector<32x80xbf16>, vector<32x80xbf16>, vector<32x80xbf16>, vector<32x80xbf16>, vector<32x80xbf16>, vector<32x80xbf16>, vector<32x80xbf16> -> vector<32x640xbf16>
    %c0_55 = arith.constant 0 : index
    %c0_56 = arith.constant 0 : index
    %113 = vector.load %arg6[%c0_55, %c0_56] : memref<640x160xbf16, #tpu.memory_space<vmem>>, vector<640x160xbf16>
    %cst_57 = arith.constant dense<0.000000e+00> : vector<32x160xf32>
    %114 = tpu.matmul %112, %113, %cst_57 {dimension_numbers = #tpu.dot_dimension_numbers<[1], [0], [0], [1], [0, 0, 1, 1], [], []>} : vector<32x640xbf16>, vector<640x160xbf16>, vector<32x160xf32> -> vector<32x160xf32>
    %115 = tpu.iota {dimensions = array<i32: 0>} : vector<32x160xi32>
    %c17_i32_58 = arith.constant 17 : i32
    %116 = vector.broadcast %c17_i32_58 : i32 to vector<32x160xi32>
    %117 = arith.cmpi slt, %115, %116 : vector<32x160xi32>
    %cst_59 = arith.constant -1.000000e+30 : f32
    %118 = vector.broadcast %cst_59 : f32 to vector<32x160xf32>
    %119 = arith.select %117, %114, %118 : vector<32x160xi1>, vector<32x160xf32>
    %cst_60 = arith.constant dense<0xFF800000> : vector<160xf32>
    %120 = vector.multi_reduction <maximumf>, %119, %cst_60 [0] : vector<32x160xf32> to vector<160xf32>
    %121 = vector.shape_cast %120 : vector<160xf32> to vector<1x160xf32>
    %122 = tpu.concatenate %60, %121 in 0 : vector<1x160xf32>, vector<1x160xf32> -> vector<2x160xf32>
    %c0_61 = arith.constant 0 : index
    %c0_62 = arith.constant 0 : index
    %123 = vector.load %arg7[%c0_61, %c0_62] : memref<2x160xf32, #tpu.memory_space<vmem>>, vector<2x160xf32>
    tpu.vector_store %arg7[%c0_61, %c0_62], %122 {strides = array<i32>} : memref<2x160xf32, #tpu.memory_space<vmem>>, vector<2x160xf32>,
    return
  }
  func.func @transform_0(%arg0: i32) -> (i32, i32, i32) {
    %c0_i32 = arith.constant 0 : i32
    %c0_i32_0 = arith.constant 0 : i32
    %c0_i32_1 = arith.constant 0 : i32
    return %arg0, %c0_i32, %c0_i32_0 : i32, i32, i32
  }
  func.func @transform_1(%arg0: i32) -> (i32, i32) {
    %c0_i32 = arith.constant 0 : i32
    %c0_i32_0 = arith.constant 0 : i32
    %c0_i32_1 = arith.constant 0 : i32
    return %c0_i32, %c0_i32_0 : i32, i32
  }
  func.func @transform_2(%arg0: i32) -> (i32, i32) {
    %c0_i32 = arith.constant 0 : i32
    %c0_i32_0 = arith.constant 0 : i32
    %c0_i32_1 = arith.constant 0 : i32
    return %c0_i32, %c0_i32_0 : i32, i32
  }
  func.func @transform_3(%arg0: i32) -> (i32, i32) {
    %c0_i32 = arith.constant 0 : i32
    %c0_i32_0 = arith.constant 0 : i32
    %c0_i32_1 = arith.constant 0 : i32
    return %c0_i32, %c0_i32_0 : i32, i32
  }
  func.func @transform_4(%arg0: i32) -> (i32, i32) {
    %c0_i32 = arith.constant 0 : i32
    %c0_i32_0 = arith.constant 0 : i32
    %c0_i32_1 = arith.constant 0 : i32
    return %c0_i32, %c0_i32_0 : i32, i32
  }
  func.func @transform_5(%arg0: i32) -> (i32, i32) {
    %c0_i32 = arith.constant 0 : i32
    %c0_i32_0 = arith.constant 0 : i32
    %c0_i32_1 = arith.constant 0 : i32
    return %c0_i32, %c0_i32_0 : i32, i32
  }
  func.func @transform_6(%arg0: i32) -> (i32, i32) {
    %c0_i32 = arith.constant 0 : i32
    %c0_i32_0 = arith.constant 0 : i32
    return %arg0, %c0_i32 : i32, i32
  }
}

</mosaic_0001>

<llo_original>
// kernel: cnn_forward.3
$region0: #{cnn_forward.3}
  #allocation0 [shape = 'u32[]', space=smem, size = 0x4, offset = 0x4, fixed_abs, tag = 'smem constant byte address 0x4 - core index']
  #allocation1 [shape = 'u32[144,128]{1,0:T(1,128)}', space=vmem, size = 0x12000, scoped, tag = 'internal scratch']
  %s0 = inlined_call_operand.vmem [shape: f32[2,32,64], index: 0, kind: input, shape index: {}]
  %s1 = inlined_call_operand.vmem [shape: bf16[256,40], index: 1, kind: input, shape index: {}]
  %s2 = inlined_call_operand.vmem [shape: f32[1,40], index: 2, kind: input, shape index: {}]
  %s3 = inlined_call_operand.vmem [shape: bf16[240,80], index: 3, kind: input, shape index: {}]
  %s4 = inlined_call_operand.vmem [shape: f32[1,80], index: 4, kind: input, shape index: {}]
  %s5 = inlined_call_operand.vmem [shape: bf16[640,160], index: 5, kind: input, shape index: {}]
  %s6 = inlined_call_operand.vmem [shape: f32[2,160], index: 6, kind: output, shape index: {}]
  %s7 = sld [smem:[#allocation0]]
  $region34: #{cnn_forward.3} parent=0
    _
  %s9 = ssub.s32 1, %s7
  %s10 = scalar_select 0, %s9, %s7
  // Predicated region
  $region2: #{cnn_forward.3} parent=0 // pred_check
    _
  $region3: #{cnn_forward.3} parent=0 // pred_check_branch
    %12 = sbr.rel (0) target = $region5
  $region4: #{cnn_forward.3} parent=0 // pred_region
    _
  $region5: #{cnn_forward.3} parent=0 // pred_fallthru
    _
  // Predicated region
  $region6: #{cnn_forward.3} parent=0 // pred_check
    _
  $region7: #{cnn_forward.3} parent=0 // pred_check_branch
    %14 = sbr.rel (0) target = $region9
  $region8: #{cnn_forward.3} parent=0 // pred_region
    _
  $region9: #{cnn_forward.3} parent=0 // pred_fallthru
    _
  // Predicated region
  $region10: #{cnn_forward.3} parent=0 // pred_check
    _
  $region11: #{cnn_forward.3} parent=0 // pred_check_branch
    %16 = sbr.rel (0) target = $region13
  $region12: #{cnn_forward.3} parent=0 // pred_region
    _
  $region13: #{cnn_forward.3} parent=0 // pred_fallthru
    _
  // Predicated region
  $region14: #{cnn_forward.3} parent=0 // pred_check
    _
  $region15: #{cnn_forward.3} parent=0 // pred_check_branch
    %18 = sbr.rel (0) target = $region17
  $region16: #{cnn_forward.3} parent=0 // pred_region
    _
  $region17: #{cnn_forward.3} parent=0 // pred_fallthru
    _
  // Predicated region
  $region18: #{cnn_forward.3} parent=0 // pred_check
    _
  $region19: #{cnn_forward.3} parent=0 // pred_check_branch
    %20 = sbr.rel (0) target = $region21
  $region20: #{cnn_forward.3} parent=0 // pred_region
    _
  $region21: #{cnn_forward.3} parent=0 // pred_fallthru
    _
  // Predicated region
  $region22: #{cnn_forward.3} parent=0 // pred_check
    _
  $region23: #{cnn_forward.3} parent=0 // pred_check_branch
    %22 = sbr.rel (0) target = $region25
  $region24: #{cnn_forward.3} parent=0 // pred_region
    _
  $region25: #{cnn_forward.3} parent=0 // pred_fallthru
    _
  %v24 = vld [vmem:[%s0] sm:$0xff]
  %v25 = vld [vmem:[%s0 + $0x8] sm:$0xff]
  %v26 = vld [vmem:[%s0 + $0x10] sm:$0xff]
  %v27 = vld [vmem:[%s0 + $0x18] sm:$0xff]
  %v28 = vpack.c.bf16 %v25, %v24
  %v29 = vpack.c.bf16 %v27, %v26
  %v30 = vrot.slane %v24, 1
  %v31 = vrot.slane %v25, 1
  %v32 = vrot.slane %v26, 1
  %v33 = vrot.slane %v27, 1
  %v34 = vlaneseq
  %v35 = vshrl.u32 %v34, 7
  %vm36 = vcmp.lt.s32.totalorder %v35, 7
  %v37 = vsel %vm36, %v32, %v33
  %v38 = vsel %vm36, %v31, %v32
  %v39 = vsel %vm36, %v30, %v31
  %v40 = vsel %vm36, %v33, %v30
  %v41 = vpack.c.bf16 %v38, %v39
  %v42 = vpack.c.bf16 %v40, %v37
  %v43 = vrot.slane %v24, 2
  %v44 = vrot.slane %v25, 2
  %v45 = vrot.slane %v26, 2
  %v46 = vrot.slane %v27, 2
  %vm47 = vcmp.lt.s32.totalorder %v35, 6
  %v48 = vsel %vm47, %v45, %v46
  %v49 = vsel %vm47, %v44, %v45
  %v50 = vsel %vm47, %v43, %v44
  %v51 = vsel %vm47, %v46, %v43
  %v52 = vpack.c.bf16 %v49, %v50
  %v53 = vpack.c.bf16 %v51, %v48
  %v54 = vrot.slane %v24, 3
  %v55 = vrot.slane %v25, 3
  %v56 = vrot.slane %v26, 3
  %v57 = vrot.slane %v27, 3
  %vm58 = vcmp.lt.s32.totalorder %v35, 5
  %v59 = vsel %vm58, %v56, %v57
  %v60 = vsel %vm58, %v55, %v56
  %v61 = vsel %vm58, %v54, %v55
  %v62 = vsel %vm58, %v57, %v54
  %v63 = vpack.c.bf16 %v60, %v61
  %v64 = vpack.c.bf16 %v62, %v59
  %67 = vrot.lane.b32.xlu0 %v41, 64
  %v68 = vpop.permute.xlu0 %67
  %69 = vrot.lane.b32.xlu0 %v42, 64
  %v70 = vpop.permute.xlu0 %69
  %73 = vrot.lane.b32.xlu0 %v63, 64
  %v74 = vpop.permute.xlu0 %73
  %75 = vrot.lane.b32.xlu0 %v64, 64
  %v76 = vpop.permute.xlu0 %75
  %vm77 = vcmask 523264
  %v80 = vsel %vm77, %v28, %v68
  %v84 = vsel %vm77, %v29, %v70
  %v88 = vsel %vm77, %v52, %v74
  %v92 = vsel %vm77, %v53, %v76
  %v94 = vld [vmem:[%s1] sm:$0xf]
  %v95 = vld [vmem:[%s1 + $0x4] sm:$0xf]
  %v96 = vld [vmem:[%s1 + $0x8] sm:$0xf]
  %v97 = vld [vmem:[%s1 + $0xc] sm:$0xf]
  %v98 = vld [vmem:[%s1 + $0x10] sm:$0xf]
  %v99 = vld [vmem:[%s1 + $0x14] sm:$0xf]
  %v100 = vld [vmem:[%s1 + $0x18] sm:$0xf]
  %v101 = vld [vmem:[%s1 + $0x1c] sm:$0xf]
  %v102 = vld [vmem:[%s1 + $0x20] sm:$0xf]
  %v103 = vld [vmem:[%s1 + $0x24] sm:$0xf]
  %v104 = vld [vmem:[%s1 + $0x28] sm:$0xf]
  %v105 = vld [vmem:[%s1 + $0x2c] sm:$0xf]
  %v106 = vld [vmem:[%s1 + $0x30] sm:$0xf]
  %v107 = vld [vmem:[%s1 + $0x34] sm:$0xf]
  %v108 = vld [vmem:[%s1 + $0x38] sm:$0xf]
  %v109 = vld [vmem:[%s1 + $0x3c] sm:$0xf]
  %v110 = vld [vmem:[%s1 + $0x40] sm:$0xf]
  %v111 = vld [vmem:[%s1 + $0x44] sm:$0xf]
  %v112 = vld [vmem:[%s1 + $0x48] sm:$0xf]
  %v113 = vld [vmem:[%s1 + $0x4c] sm:$0xf]
  %v114 = vld [vmem:[%s1 + $0x50] sm:$0xf]
  %v115 = vld [vmem:[%s1 + $0x54] sm:$0xf]
  %v116 = vld [vmem:[%s1 + $0x58] sm:$0xf]
  %v117 = vld [vmem:[%s1 + $0x5c] sm:$0xf]
  %v118 = vld [vmem:[%s1 + $0x60] sm:$0xf]
  %v119 = vld [vmem:[%s1 + $0x64] sm:$0xf]
  %v120 = vld [vmem:[%s1 + $0x68] sm:$0xf]
  %v121 = vld [vmem:[%s1 + $0x6c] sm:$0xf]
  %v122 = vld [vmem:[%s1 + $0x70] sm:$0xf]
  %v123 = vld [vmem:[%s1 + $0x74] sm:$0xf]
  %v124 = vld [vmem:[%s1 + $0x78] sm:$0xf]
  %v125 = vld [vmem:[%s1 + $0x7c] sm:$0xf]
  %v126 = vld [vmem:[%s2] sm:$0x1]
  %v128 = vlaneseq
  %v129 = vshrl.u32 %v128, 7
  %v130 = vsub.s32 0, %v129
  %v131 = vrot.slane %v126, %v130
  %v165 = vunpack.c.l.b16 %v94
  %v166 = vunpack.c.l.b16 %v95
  %v167 = vunpack.c.l.b16 %v96
  %v168 = vunpack.c.l.b16 %v97
  %v169 = vunpack.c.l.b16 %v98
  %v170 = vunpack.c.l.b16 %v99
  %v171 = vunpack.c.l.b16 %v100
  %v172 = vunpack.c.l.b16 %v101
  %v173 = vunpack.c.l.b16 %v102
  %v174 = vunpack.c.l.b16 %v103
  %v175 = vunpack.c.l.b16 %v104
  %v176 = vunpack.c.l.b16 %v105
  %v177 = vunpack.c.l.b16 %v106
  %v178 = vunpack.c.l.b16 %v107
  %v179 = vunpack.c.l.b16 %v108
  %v180 = vunpack.c.l.b16 %v109
  %v181 = vunpack.c.l.b16 %v110
  %v182 = vunpack.c.l.b16 %v111
  %v183 = vunpack.c.l.b16 %v112
  %v184 = vunpack.c.l.b16 %v113
  %v185 = vunpack.c.l.b16 %v114
  %v186 = vunpack.c.l.b16 %v115
  %v187 = vunpack.c.l.b16 %v116
  %v188 = vunpack.c.l.b16 %v117
  %v189 = vunpack.c.l.b16 %v118
  %v190 = vunpack.c.l.b16 %v119
  %v191 = vunpack.c.l.b16 %v120
  %v192 = vunpack.c.l.b16 %v121
  %v193 = vunpack.c.l.b16 %v122
  %v194 = vunpack.c.l.b16 %v123
  %v195 = vunpack.c.l.b16 %v124
  %v196 = vunpack.c.l.b16 %v125
  %v197 = vpack.c.b16 %v166, %v165
  %v198 = vpack.c.b16 %v168, %v167
  %v199 = vpack.c.b16 %v170, %v169
  %v200 = vpack.c.b16 %v172, %v171
  %v201 = vpack.c.b16 %v174, %v173
  %v202 = vpack.c.b16 %v176, %v175
  %v203 = vpack.c.b16 %v178, %v177
  %v204 = vpack.c.b16 %v180, %v179
  %v205 = vpack.c.b16 %v182, %v181
  %v206 = vpack.c.b16 %v184, %v183
  %v207 = vpack.c.b16 %v186, %v185
  %v208 = vpack.c.b16 %v188, %v187
  %v209 = vpack.c.b16 %v190, %v189
  %v210 = vpack.c.b16 %v192, %v191
  %v211 = vpack.c.b16 %v194, %v193
  %v212 = vpack.c.b16 %v196, %v195
  %229 = vmatprep.subr.bf16.mxu0 0
  %230 = vmatpush1.bf16.msra.mxu0 %v197
  %231 = vmatprep.subr.bf16.mxu0 0
  %232 = vmatpush1.bf16.msra.mxu0 %v198
  %233 = vmatprep.subr.bf16.mxu0 0
  %234 = vmatpush1.bf16.msra.mxu0 %v199
  %235 = vmatprep.subr.bf16.mxu0 0
  %236 = vmatpush1.bf16.msra.mxu0 %v200
  %237 = vmatprep.subr.bf16.mxu0 0
  %238 = vmatpush1.bf16.msra.mxu0 %v201
  %239 = vmatprep.subr.bf16.mxu0 0
  %240 = vmatpush1.bf16.msra.mxu0 %v202
  %241 = vmatprep.subr.bf16.mxu0 0
  %242 = vmatpush1.bf16.msra.mxu0 %v203
  %243 = vmatprep.subr.bf16.mxu0 0
  %244 = vmatpush1.bf16.msra.mxu0 %v204
  %245 = vmatprep.subr.bf16.mxu0 0
  %246 = vmatpush1.bf16.msra.mxu0 %v205
  %247 = vmatprep.subr.bf16.mxu0 0
  %248 = vmatpush1.bf16.msra.mxu0 %v206
  %249 = vmatprep.subr.bf16.mxu0 0
  %250 = vmatpush1.bf16.msra.mxu0 %v207
  %251 = vmatprep.subr.bf16.mxu0 0
  %252 = vmatpush1.bf16.msra.mxu0 %v208
  %253 = vmatprep.subr.bf16.mxu0 0
  %254 = vmatpush1.bf16.msra.mxu0 %v209
  %255 = vmatprep.subr.bf16.mxu0 0
  %256 = vmatpush1.bf16.msra.mxu0 %v210
  %257 = vmatprep.subr.bf16.mxu0 0
  %258 = vmatpush1.bf16.msra.mxu0 %v211
  %259 = vmatprep.subr.bf16.mxu0 0
  %260 = vmatpush1.bf16.msra.mxu0 %v212
  %261 = vmatprep.mubr.bf16.mxu0 %v88
  %262 = vmatmul.mubr.bf16.gmra.mrb[0].mxu0 %v80
  %v263 = vpop.f32.mrb[0].mxu0
  %v264 = vadd.f32 %v131, %v263
  %v265 = vpop.f32.mrb[0].mxu0
  %v266 = vpop.f32.mrb[0].mxu0
  %v267 = vadd.f32 %v131, %v266
  %v268 = vpop.f32.mrb[0].mxu0
  %269 = vmatprep.mubr.bf16.mxu0 %v92
  %270 = vmatmul.mubr.bf16.gmra.mrb[0].mxu0 %v84
  %v271 = vpop.f32.mrb[0].mxu0
  %v272 = vadd.f32 %v131, %v271
  %v273 = vpop.f32.mrb[0].mxu0
  %v274 = vpop.f32.mrb[0].mxu0
  %v275 = vadd.f32 %v131, %v274
  %v276 = vpop.f32.mrb[0].mxu0
  %277 = vdwg.mxu0
  %v278 = vmax.f32 %v264, 0.0
  %v279 = vmax.f32 %v267, 0.0
  %v280 = vmax.f32 %v272, 0.0
  %v281 = vmax.f32 %v275, 0.0
  %v282 = vpack.c.bf16 %v279, %v278
  %v283 = vpack.c.bf16 %v281, %v280
  %v284 = vrot.slane %v278, 1
  %v285 = vrot.slane %v279, 1
  %v286 = vrot.slane %v280, 1
  %v287 = vrot.slane %v281, 1
  %v288 = vsel %vm36, %v286, %v287
  %v289 = vsel %vm36, %v285, %v286
  %v290 = vsel %vm36, %v284, %v285
  %v291 = vsel %vm36, %v287, %v284
  %v292 = vpack.c.bf16 %v289, %v290
  %v293 = vpack.c.bf16 %v291, %v288
  %v294 = vrot.slane %v278, 2
  %v295 = vrot.slane %v279, 2
  %v296 = vrot.slane %v280, 2
  %v297 = vrot.slane %v281, 2
  %v298 = vsel %vm47, %v296, %v297
  %v299 = vsel %vm47, %v295, %v296
  %v300 = vsel %vm47, %v294, %v295
  %v301 = vsel %vm47, %v297, %v294
  %v302 = vpack.c.bf16 %v299, %v300
  %v303 = vpack.c.bf16 %v301, %v298
  %v304 = vrot.slane %v278, 3
  %v305 = vrot.slane %v279, 3
  %v306 = vrot.slane %v280, 3
  %v307 = vrot.slane %v281, 3
  %v308 = vsel %vm58, %v306, %v307
  %v309 = vsel %vm58, %v305, %v306
  %v310 = vsel %vm58, %v304, %v305
  %v311 = vsel %vm58, %v307, %v304
  %v312 = vpack.c.bf16 %v309, %v310
  %v313 = vpack.c.bf16 %v311, %v308
  %v314 = vrot.slane %v278, 4
  %v315 = vrot.slane %v279, 4
  %v316 = vrot.slane %v280, 4
  %v317 = vrot.slane %v281, 4
  %vm318 = vcmp.lt.s32.totalorder %v35, 4
  %v319 = vsel %vm318, %v316, %v317
  %v320 = vsel %vm318, %v315, %v316
  %v321 = vsel %vm318, %v314, %v315
  %v322 = vsel %vm318, %v317, %v314
  %v323 = vpack.c.bf16 %v320, %v321
  %v324 = vpack.c.bf16 %v322, %v319
  %v325 = vrot.slane %v278, 5
  %v326 = vrot.slane %v279, 5
  %v327 = vrot.slane %v280, 5
  %v328 = vrot.slane %v281, 5
  %vm329 = vcmp.lt.s32.totalorder %v35, 3
  %v330 = vsel %vm329, %v327, %v328
  %v331 = vsel %vm329, %v326, %v327
  %v332 = vsel %vm329, %v325, %v326
  %v333 = vsel %vm329, %v328, %v325
  %v334 = vpack.c.bf16 %v331, %v332
  %v335 = vpack.c.bf16 %v333, %v330
  %338 = vrot.lane.b32.xlu0 %v292, 40
  %v339 = vpop.permute.xlu0 %338
  %340 = vrot.lane.b32.xlu0 %v293, 40
  %v341 = vpop.permute.xlu0 %340
  %344 = vrot.lane.b32.xlu0 %v302, 80
  %v345 = vpop.permute.xlu0 %344
  %346 = vrot.lane.b32.xlu0 %v303, 80
  %v347 = vpop.permute.xlu0 %346
  %350 = vrot.lane.b32.xlu0 %v312, 120
  %v351 = vpop.permute.xlu0 %350
  %352 = vrot.lane.b32.xlu0 %v313, 120
  %v353 = vpop.permute.xlu0 %352
  %356 = vrot.lane.b32.xlu0 %v323, 32
  %v357 = vpop.permute.xlu0 %356
  %358 = vrot.lane.b32.xlu0 %v324, 32
  %v359 = vpop.permute.xlu0 %358
  %362 = vrot.lane.b32.xlu0 %v334, 72
  %v363 = vpop.permute.xlu0 %362
  %364 = vrot.lane.b32.xlu0 %v335, 72
  %v365 = vpop.permute.xlu0 %364
  %vm366 = vcmask 326656
  %v369 = vsel %vm366, %v282, %v339
  %v372 = vsel %vm366, %v283, %v341
  %vm373 = vcmask 654336
  %v375 = vsel %vm373, %v369, %v345
  %v377 = vsel %vm373, %v372, %v347
  %vm378 = vcmask 982016
  %v380 = vsel %vm378, %v375, %v351
  %v383 = vsel %vm378, %v377, %v353
  %vm385 = vcmask 261120
  %v387 = vsel %vm385, %v351, %v357
  %v389 = vsel %vm385, %v353, %v359
  %vm390 = vcmask 588800
  %v392 = vsel %vm390, %v387, %v363
  %v394 = vsel %vm390, %v389, %v365
  %v395 = vld [vmem:[%s3] sm:$0xf]
  %v396 = vld [vmem:[%s3 + $0x4] sm:$0xf]
  %v397 = vld [vmem:[%s3 + $0x8] sm:$0xf]
  %v398 = vld [vmem:[%s3 + $0xc] sm:$0xf]
  %v399 = vld [vmem:[%s3 + $0x10] sm:$0xf]
  %v400 = vld [vmem:[%s3 + $0x14] sm:$0xf]
  %v401 = vld [vmem:[%s3 + $0x18] sm:$0xf]
  %v402 = vld [vmem:[%s3 + $0x1c] sm:$0xf]
  %v403 = vld [vmem:[%s3 + $0x20] sm:$0xf]
  %v404 = vld [vmem:[%s3 + $0x24] sm:$0xf]
  %v405 = vld [vmem:[%s3 + $0x28] sm:$0xf]
  %v406 = vld [vmem:[%s3 + $0x2c] sm:$0xf]
  %v407 = vld [vmem:[%s3 + $0x30] sm:$0xf]
  %v408 = vld [vmem:[%s3 + $0x34] sm:$0xf]
  %v409 = vld [vmem:[%s3 + $0x38] sm:$0xf]
  %v410 = vld [vmem:[%s3 + $0x3c] sm:$0xf]
  %v411 = vld [vmem:[%s3 + $0x40] sm:$0xf]
  %v412 = vld [vmem:[%s3 + $0x44] sm:$0xf]
  %v413 = vld [vmem:[%s3 + $0x48] sm:$0xf]
  %v414 = vld [vmem:[%s3 + $0x4c] sm:$0xf]
  %v415 = vld [vmem:[%s3 + $0x50] sm:$0xf]
  %v416 = vld [vmem:[%s3 + $0x54] sm:$0xf]
  %v417 = vld [vmem:[%s3 + $0x58] sm:$0xf]
  %v418 = vld [vmem:[%s3 + $0x5c] sm:$0xf]
  %v419 = vld [vmem:[%s3 + $0x60] sm:$0xf]
  %v420 = vld [vmem:[%s3 + $0x64] sm:$0xf]
  %v421 = vld [vmem:[%s3 + $0x68] sm:$0xf]
  %v422 = vld [vmem:[%s3 + $0x6c] sm:$0xf]
  %v423 = vld [vmem:[%s3 + $0x70] sm:$0xf]
  %v424 = vld [vmem:[%s3 + $0x74] sm:$0xf]
  %v425 = vld [vmem:[%s4] sm:$0x1]
  %v427 = vlaneseq
  %v428 = vshrl.u32 %v427, 7
  %v429 = vsub.s32 0, %v428
  %v430 = vrot.slane %v425, %v429
  %v462 = vunpack.c.l.b16 %v395
  %v463 = vunpack.c.l.b16 %v396
  %v464 = vunpack.c.l.b16 %v397
  %v465 = vunpack.c.l.b16 %v398
  %v466 = vunpack.c.l.b16 %v399
  %v467 = vunpack.c.l.b16 %v400
  %v468 = vunpack.c.l.b16 %v401
  %v469 = vunpack.c.l.b16 %v402
  %v470 = vunpack.c.l.b16 %v403
  %v471 = vunpack.c.l.b16 %v404
  %v472 = vunpack.c.l.b16 %v405
  %v473 = vunpack.c.l.b16 %v406
  %v474 = vunpack.c.l.b16 %v407
  %v475 = vunpack.c.l.b16 %v408
  %v476 = vunpack.c.l.b16 %v409
  %v477 = vunpack.c.l.b16 %v410
  %v478 = vunpack.c.l.b16 %v411
  %v479 = vunpack.c.l.b16 %v412
  %v480 = vunpack.c.l.b16 %v413
  %v481 = vunpack.c.l.b16 %v414
  %v482 = vunpack.c.l.b16 %v415
  %v483 = vunpack.c.l.b16 %v416
  %v484 = vunpack.c.l.b16 %v417
  %v485 = vunpack.c.l.b16 %v418
  %v486 = vunpack.c.l.b16 %v419
  %v487 = vunpack.c.l.b16 %v420
  %v488 = vunpack.c.l.b16 %v421
  %v489 = vunpack.c.l.b16 %v422
  %v490 = vunpack.c.l.b16 %v423
  %v491 = vunpack.c.l.b16 %v424
  %v492 = vpack.c.b16 %v463, %v462
  %v493 = vpack.c.b16 %v465, %v464
  %v494 = vpack.c.b16 %v467, %v466
  %v495 = vpack.c.b16 %v469, %v468
  %v496 = vpack.c.b16 %v471, %v470
  %v497 = vpack.c.b16 %v473, %v472
  %v498 = vpack.c.b16 %v475, %v474
  %v499 = vpack.c.b16 %v477, %v476
  %v500 = vpack.c.b16 %v479, %v478
  %v501 = vpack.c.b16 %v481, %v480
  %v502 = vpack.c.b16 %v483, %v482
  %v503 = vpack.c.b16 %v485, %v484
  %v504 = vpack.c.b16 %v487, %v486
  %v505 = vpack.c.b16 %v489, %v488
  %v506 = vpack.c.b16 %v491, %v490
  %vm522 = vcmask 916480
  %v523 = vsel %vm522, %v392, 0
  %v525 = vsel %vm522, %v394, 0
  %527 = vmatprep.subr.bf16.mxu0 0
  %528 = vmatpush1.bf16.msra.mxu0 %v492
  %529 = vmatprep.subr.bf16.mxu0 0
  %530 = vmatpush1.bf16.msra.mxu0 %v493
  %531 = vmatprep.subr.bf16.mxu0 0
  %532 = vmatpush1.bf16.msra.mxu0 %v494
  %533 = vmatprep.subr.bf16.mxu0 0
  %534 = vmatpush1.bf16.msra.mxu0 %v495
  %535 = vmatprep.subr.bf16.mxu0 0
  %536 = vmatpush1.bf16.msra.mxu0 %v496
  %537 = vmatprep.subr.bf16.mxu0 0
  %538 = vmatpush1.bf16.msra.mxu0 %v497
  %539 = vmatprep.subr.bf16.mxu0 0
  %540 = vmatpush1.bf16.msra.mxu0 %v498
  %541 = vmatprep.subr.bf16.mxu0 0
  %542 = vmatpush1.bf16.msra.mxu0 %v499
  %543 = vmatprep.subr.bf16.mxu0 0
  %544 = vmatpush1.bf16.msra.mxu0 %v500
  %545 = vmatprep.subr.bf16.mxu0 0
  %546 = vmatpush1.bf16.msra.mxu0 %v501
  %547 = vmatprep.subr.bf16.mxu0 0
  %548 = vmatpush1.bf16.msra.mxu0 %v502
  %549 = vmatprep.subr.bf16.mxu0 0
  %550 = vmatpush1.bf16.msra.mxu0 %v503
  %551 = vmatprep.subr.bf16.mxu0 0
  %552 = vmatpush1.bf16.msra.mxu0 %v504
  %553 = vmatprep.subr.bf16.mxu0 0
  %554 = vmatpush1.bf16.msra.mxu0 %v505
  %555 = vmatprep.subr.bf16.mxu0 0
  %556 = vmatpush1.bf16.msra.mxu0 %v506
  %557 = vmatprep.subr.bf16.mxu0 0
  %558 = vmatpush1.bf16.msra.mxu0 0
  %559 = vmatprep.mubr.bf16.mxu0 %v523
  %560 = vmatmul.mubr.bf16.gmra.mrb[0].mxu0 %v380
  %v561 = vpop.f32.mrb[0].mxu0
  %v562 = vadd.f32 %v430, %v561
  %v563 = vpop.f32.mrb[0].mxu0
  %v564 = vpop.f32.mrb[0].mxu0
  %v565 = vadd.f32 %v430, %v564
  %v566 = vpop.f32.mrb[0].mxu0
  %567 = vmatprep.mubr.bf16.mxu0 %v525
  %568 = vmatmul.mubr.bf16.gmra.mrb[0].mxu0 %v383
  %v569 = vpop.f32.mrb[0].mxu0
  %v570 = vadd.f32 %v430, %v569
  %v571 = vpop.f32.mrb[0].mxu0
  %v572 = vpop.f32.mrb[0].mxu0
  %v573 = vadd.f32 %v430, %v572
  %v574 = vpop.f32.mrb[0].mxu0
  %575 = vdwg.mxu0
  %v576 = vmax.f32 %v562, 0.0
  %v577 = vmax.f32 %v565, 0.0
  %v578 = vmax.f32 %v570, 0.0
  %v579 = vmax.f32 %v573, 0.0
  %v580 = vpack.c.bf16 %v577, %v576
  %v581 = vpack.c.bf16 %v579, %v578
  %v582 = vrot.slane %v576, 1
  %v583 = vrot.slane %v577, 1
  %v584 = vrot.slane %v578, 1
  %v585 = vrot.slane %v579, 1
  %v586 = vsel %vm36, %v584, %v585
  %v587 = vsel %vm36, %v583, %v584
  %v588 = vsel %vm36, %v582, %v583
  %v589 = vsel %vm36, %v585, %v582
  %v590 = vpack.c.bf16 %v587, %v588
  %v591 = vpack.c.bf16 %v589, %v586
  %v592 = vrot.slane %v576, 2
  %v593 = vrot.slane %v577, 2
  %v594 = vrot.slane %v578, 2
  %v595 = vrot.slane %v579, 2
  %v596 = vsel %vm47, %v594, %v595
  %v597 = vsel %vm47, %v593, %v594
  %v598 = vsel %vm47, %v592, %v593
  %v599 = vsel %vm47, %v595, %v592
  %v600 = vpack.c.bf16 %v597, %v598
  %v601 = vpack.c.bf16 %v599, %v596
  %v602 = vrot.slane %v576, 3
  %v603 = vrot.slane %v577, 3
  %v604 = vrot.slane %v578, 3
  %v605 = vrot.slane %v579, 3
  %v606 = vsel %vm58, %v604, %v605
  %v607 = vsel %vm58, %v603, %v604
  %v608 = vsel %vm58, %v602, %v603
  %v609 = vsel %vm58, %v605, %v602
  %v610 = vpack.c.bf16 %v607, %v608
  %v611 = vpack.c.bf16 %v609, %v606
  %v612 = vrot.slane %v576, 4
  %v613 = vrot.slane %v577, 4
  %v614 = vrot.slane %v578, 4
  %v615 = vrot.slane %v579, 4
  %v616 = vsel %vm318, %v614, %v615
  %v617 = vsel %vm318, %v613, %v614
  %v618 = vsel %vm318, %v612, %v613
  %v619 = vsel %vm318, %v615, %v612
  %v620 = vpack.c.bf16 %v617, %v618
  %v621 = vpack.c.bf16 %v619, %v616
  %v622 = vrot.slane %v576, 5
  %v623 = vrot.slane %v577, 5
  %v624 = vrot.slane %v578, 5
  %v625 = vrot.slane %v579, 5
  %v626 = vsel %vm329, %v624, %v625
  %v627 = vsel %vm329, %v623, %v624
  %v628 = vsel %vm329, %v622, %v623
  %v629 = vsel %vm329, %v625, %v622
  %v630 = vpack.c.bf16 %v627, %v628
  %v631 = vpack.c.bf16 %v629, %v626
  %v632 = vrot.slane %v576, 6
  %v633 = vrot.slane %v577, 6
  %v634 = vrot.slane %v578, 6
  %v635 = vrot.slane %v579, 6
  %vm636 = vcmp.lt.s32.totalorder %v35, 2
  %v637 = vsel %vm636, %v634, %v635
  %v638 = vsel %vm636, %v633, %v634
  %v639 = vsel %vm636, %v632, %v633
  %v640 = vsel %vm636, %v635, %v632
  %v641 = vpack.c.bf16 %v638, %v639
  %v642 = vpack.c.bf16 %v640, %v637
  %v643 = vrot.slane %v576, 7
  %v644 = vrot.slane %v577, 7
  %v645 = vrot.slane %v578, 7
  %v646 = vrot.slane %v579, 7
  %vm647 = vcmp.lt.s32.totalorder %v35, 1
  %v648 = vsel %vm647, %v645, %v646
  %v649 = vsel %vm647, %v644, %v645
  %v650 = vsel %vm647, %v643, %v644
  %v651 = vsel %vm647, %v646, %v643
  %v652 = vpack.c.bf16 %v649, %v650
  %v653 = vpack.c.bf16 %v651, %v648
  %656 = vrot.lane.b32.xlu0 %v590, 80
  %v657 = vpop.permute.xlu0 %656
  %658 = vrot.lane.b32.xlu0 %v591, 80
  %v659 = vpop.permute.xlu0 %658
  %662 = vrot.lane.b32.xlu0 %v600, 32
  %v663 = vpop.permute.xlu0 %662
  %664 = vrot.lane.b32.xlu0 %v601, 32
  %v665 = vpop.permute.xlu0 %664
  %668 = vrot.lane.b32.xlu0 %v610, 112
  %v669 = vpop.permute.xlu0 %668
  %670 = vrot.lane.b32.xlu0 %v611, 112
  %v671 = vpop.permute.xlu0 %670
  %674 = vrot.lane.b32.xlu0 %v620, 64
  %v675 = vpop.permute.xlu0 %674
  %676 = vrot.lane.b32.xlu0 %v621, 64
  %v677 = vpop.permute.xlu0 %676
  %680 = vrot.lane.b32.xlu0 %v630, 16
  %v681 = vpop.permute.xlu0 %680
  %682 = vrot.lane.b32.xlu0 %v631, 16
  %v683 = vpop.permute.xlu0 %682
  %686 = vrot.lane.b32.xlu0 %v641, 96
  %v687 = vpop.permute.xlu0 %686
  %688 = vrot.lane.b32.xlu0 %v642, 96
  %v689 = vpop.permute.xlu0 %688
  %692 = vrot.lane.b32.xlu0 %v652, 48
  %v693 = vpop.permute.xlu0 %692
  %694 = vrot.lane.b32.xlu0 %v653, 48
  %v695 = vpop.permute.xlu0 %694
  %v698 = vsel %vm373, %v580, %v657
  %v702 = vsel %vm373, %v581, %v659
  %v705 = vsel %vm385, %v657, %v663
  %v707 = vsel %vm385, %v659, %v665
  %v709 = vsel %vm522, %v705, %v669
  %v712 = vsel %vm522, %v707, %v671
  %v715 = vsel %vm77, %v669, %v675
  %v718 = vsel %vm77, %v671, %v677
  %vm720 = vcmask 130048
  %v722 = vsel %vm720, %v675, %v681
  %v724 = vsel %vm720, %v677, %v683
  %vm725 = vcmask 785408
  %v727 = vsel %vm725, %v722, %v687
  %v730 = vsel %vm725, %v724, %v689
  %vm732 = vcmask 392192
  %v734 = vsel %vm732, %v687, %v693
  %v737 = vsel %vm732, %v689, %v695
  %v739 = vld [vmem:[%s5] sm:$0xff]
  %v740 = vld [vmem:[%s5 + $0x8] sm:$0xff]
  %v741 = vld [vmem:[%s5 + $0x10] sm:$0xff]
  %v742 = vld [vmem:[%s5 + $0x18] sm:$0xff]
  %v743 = vld [vmem:[%s5 + $0x20] sm:$0xff]
  %v744 = vld [vmem:[%s5 + $0x28] sm:$0xff]
  %v745 = vld [vmem:[%s5 + $0x30] sm:$0xff]
  %v746 = vld [vmem:[%s5 + $0x38] sm:$0xff]
  %v747 = vld [vmem:[%s5 + $0x40] sm:$0xff]
  %v748 = vld [vmem:[%s5 + $0x48] sm:$0xff]
  %v749 = vld [vmem:[%s5 + $0x50] sm:$0xff]
  %v750 = vld [vmem:[%s5 + $0x58] sm:$0xff]
  %v751 = vld [vmem:[%s5 + $0x60] sm:$0xff]
  %v752 = vld [vmem:[%s5 + $0x68] sm:$0xff]
  %v753 = vld [vmem:[%s5 + $0x70] sm:$0xff]
  %v754 = vld [vmem:[%s5 + $0x78] sm:$0xff]
  %v755 = vld [vmem:[%s5 + $0x80] sm:$0xff]
  %v756 = vld [vmem:[%s5 + $0x88] sm:$0xff]
  %v757 = vld [vmem:[%s5 + $0x90] sm:$0xff]
  %v758 = vld [vmem:[%s5 + $0x98] sm:$0xff]
  %v759 = vld [vmem:[%s5 + $0xa0] sm:$0xff]
  %v760 = vld [vmem:[%s5 + $0xa8] sm:$0xff]
  %v761 = vld [vmem:[%s5 + $0xb0] sm:$0xff]
  %v762 = vld [vmem:[%s5 + $0xb8] sm:$0xff]
  %v763 = vld [vmem:[%s5 + $0xc0] sm:$0xff]
  %v764 = vld [vmem:[%s5 + $0xc8] sm:$0xff]
  %v765 = vld [vmem:[%s5 + $0xd0] sm:$0xff]
  %v766 = vld [vmem:[%s5 + $0xd8] sm:$0xff]
  %v767 = vld [vmem:[%s5 + $0xe0] sm:$0xff]
  %v768 = vld [vmem:[%s5 + $0xe8] sm:$0xff]
  %v769 = vld [vmem:[%s5 + $0xf0] sm:$0xff]
  %v770 = vld [vmem:[%s5 + $0xf8] sm:$0xff]
  %v771 = vld [vmem:[%s5 + $0x100] sm:$0xff]
  %v772 = vld [vmem:[%s5 + $0x108] sm:$0xff]
  %v773 = vld [vmem:[%s5 + $0x110] sm:$0xff]
  %v774 = vld [vmem:[%s5 + $0x118] sm:$0xff]
  %v775 = vld [vmem:[%s5 + $0x120] sm:$0xff]
  %v776 = vld [vmem:[%s5 + $0x128] sm:$0xff]
  %v777 = vld [vmem:[%s5 + $0x130] sm:$0xff]
  %v778 = vld [vmem:[%s5 + $0x138] sm:$0xff]
  %v779 = vld [vmem:[%s5 + $0x140] sm:$0xff]
  %v780 = vld [vmem:[%s5 + $0x148] sm:$0xff]
  %v781 = vld [vmem:[%s5 + $0x150] sm:$0xff]
  %v782 = vld [vmem:[%s5 + $0x158] sm:$0xff]
  %v783 = vld [vmem:[%s5 + $0x160] sm:$0xff]
  %v784 = vld [vmem:[%s5 + $0x168] sm:$0xff]
  %v785 = vld [vmem:[%s5 + $0x170] sm:$0xff]
  %v786 = vld [vmem:[%s5 + $0x178] sm:$0xff]
  %v787 = vld [vmem:[%s5 + $0x180] sm:$0xff]
  %v788 = vld [vmem:[%s5 + $0x188] sm:$0xff]
  %v789 = vld [vmem:[%s5 + $0x190] sm:$0xff]
  %v790 = vld [vmem:[%s5 + $0x198] sm:$0xff]
  %v791 = vld [vmem:[%s5 + $0x1a0] sm:$0xff]
  %v792 = vld [vmem:[%s5 + $0x1a8] sm:$0xff]
  %v793 = vld [vmem:[%s5 + $0x1b0] sm:$0xff]
  %v794 = vld [vmem:[%s5 + $0x1b8] sm:$0xff]
  %v795 = vld [vmem:[%s5 + $0x1c0] sm:$0xff]
  %v796 = vld [vmem:[%s5 + $0x1c8] sm:$0xff]
  %v797 = vld [vmem:[%s5 + $0x1d0] sm:$0xff]
  %v798 = vld [vmem:[%s5 + $0x1d8] sm:$0xff]
  %v799 = vld [vmem:[%s5 + $0x1e0] sm:$0xff]
  %v800 = vld [vmem:[%s5 + $0x1e8] sm:$0xff]
  %v801 = vld [vmem:[%s5 + $0x1f0] sm:$0xff]
  %v802 = vld [vmem:[%s5 + $0x1f8] sm:$0xff]
  %v803 = vld [vmem:[%s5 + $0x200] sm:$0xff]
  %v804 = vld [vmem:[%s5 + $0x208] sm:$0xff]
  %v805 = vld [vmem:[%s5 + $0x210] sm:$0xff]
  %v806 = vld [vmem:[%s5 + $0x218] sm:$0xff]
  %v807 = vld [vmem:[%s5 + $0x220] sm:$0xff]
  %v808 = vld [vmem:[%s5 + $0x228] sm:$0xff]
  %v809 = vld [vmem:[%s5 + $0x230] sm:$0xff]
  %v810 = vld [vmem:[%s5 + $0x238] sm:$0xff]
  %v811 = vld [vmem:[%s5 + $0x240] sm:$0xff]
  %v812 = vld [vmem:[%s5 + $0x248] sm:$0xff]
  %v813 = vld [vmem:[%s5 + $0x250] sm:$0xff]
  %v814 = vld [vmem:[%s5 + $0x258] sm:$0xff]
  %v815 = vld [vmem:[%s5 + $0x260] sm:$0xff]
  %v816 = vld [vmem:[%s5 + $0x268] sm:$0xff]
  %v817 = vld [vmem:[%s5 + $0x270] sm:$0xff]
  %v818 = vld [vmem:[%s5 + $0x278] sm:$0xff]
  %v899 = vunpack.c.l.b16 %v739
  %v900 = vunpack.c.h.b16 %v739
  %v901 = vunpack.c.l.b16 %v740
  %v902 = vunpack.c.h.b16 %v740
  %v903 = vunpack.c.l.b16 %v741
  %v904 = vunpack.c.h.b16 %v741
  %v905 = vunpack.c.l.b16 %v742
  %v906 = vunpack.c.h.b16 %v742
  %v907 = vunpack.c.l.b16 %v743
  %v908 = vunpack.c.h.b16 %v743
  %v909 = vunpack.c.l.b16 %v744
  %v910 = vunpack.c.h.b16 %v744
  %v911 = vunpack.c.l.b16 %v745
  %v912 = vunpack.c.h.b16 %v745
  %v913 = vunpack.c.l.b16 %v746
  %v914 = vunpack.c.h.b16 %v746
  %v915 = vunpack.c.l.b16 %v747
  %v916 = vunpack.c.h.b16 %v747
  %v917 = vunpack.c.l.b16 %v748
  %v918 = vunpack.c.h.b16 %v748
  %v919 = vunpack.c.l.b16 %v749
  %v920 = vunpack.c.h.b16 %v749
  %v921 = vunpack.c.l.b16 %v750
  %v922 = vunpack.c.h.b16 %v750
  %v923 = vunpack.c.l.b16 %v751
  %v924 = vunpack.c.h.b16 %v751
  %v925 = vunpack.c.l.b16 %v752
  %v926 = vunpack.c.h.b16 %v752
  %v927 = vunpack.c.l.b16 %v753
  %v928 = vunpack.c.h.b16 %v753
  %v929 = vunpack.c.l.b16 %v754
  %v930 = vunpack.c.h.b16 %v754
  %v931 = vunpack.c.l.b16 %v755
  %v932 = vunpack.c.h.b16 %v755
  %v933 = vunpack.c.l.b16 %v756
  %v934 = vunpack.c.h.b16 %v756
  %v935 = vunpack.c.l.b16 %v757
  %v936 = vunpack.c.h.b16 %v757
  %v937 = vunpack.c.l.b16 %v758
  %v938 = vunpack.c.h.b16 %v758
  %v939 = vunpack.c.l.b16 %v759
  %v940 = vunpack.c.h.b16 %v759
  %v941 = vunpack.c.l.b16 %v760
  %v942 = vunpack.c.h.b16 %v760
  %v943 = vunpack.c.l.b16 %v761
  %v944 = vunpack.c.h.b16 %v761
  %v945 = vunpack.c.l.b16 %v762
  %v946 = vunpack.c.h.b16 %v762
  %v947 = vunpack.c.l.b16 %v763
  %v948 = vunpack.c.h.b16 %v763
  %v949 = vunpack.c.l.b16 %v764
  %v950 = vunpack.c.h.b16 %v764
  %v951 = vunpack.c.l.b16 %v765
  %v952 = vunpack.c.h.b16 %v765
  %v953 = vunpack.c.l.b16 %v766
  %v954 = vunpack.c.h.b16 %v766
  %v955 = vunpack.c.l.b16 %v767
  %v956 = vunpack.c.h.b16 %v767
  %v957 = vunpack.c.l.b16 %v768
  %v958 = vunpack.c.h.b16 %v768
  %v959 = vunpack.c.l.b16 %v769
  %v960 = vunpack.c.h.b16 %v769
  %v961 = vunpack.c.l.b16 %v770
  %v962 = vunpack.c.h.b16 %v770
  %v963 = vunpack.c.l.b16 %v771
  %v964 = vunpack.c.h.b16 %v771
  %v965 = vunpack.c.l.b16 %v772
  %v966 = vunpack.c.h.b16 %v772
  %v967 = vunpack.c.l.b16 %v773
  %v968 = vunpack.c.h.b16 %v773
  %v969 = vunpack.c.l.b16 %v774
  %v970 = vunpack.c.h.b16 %v774
  %v971 = vunpack.c.l.b16 %v775
  %v972 = vunpack.c.h.b16 %v775
  %v973 = vunpack.c.l.b16 %v776
  %v974 = vunpack.c.h.b16 %v776
  %v975 = vunpack.c.l.b16 %v777
  %v976 = vunpack.c.h.b16 %v777
  %v977 = vunpack.c.l.b16 %v778
  %v978 = vunpack.c.h.b16 %v778
  %v979 = vunpack.c.l.b16 %v779
  %v980 = vunpack.c.h.b16 %v779
  %v981 = vunpack.c.l.b16 %v780
  %v982 = vunpack.c.h.b16 %v780
  %v983 = vunpack.c.l.b16 %v781
  %v984 = vunpack.c.h.b16 %v781
  %v985 = vunpack.c.l.b16 %v782
  %v986 = vunpack.c.h.b16 %v782
  %v987 = vunpack.c.l.b16 %v783
  %v988 = vunpack.c.h.b16 %v783
  %v989 = vunpack.c.l.b16 %v784
  %v990 = vunpack.c.h.b16 %v784
  %v991 = vunpack.c.l.b16 %v785
  %v992 = vunpack.c.h.b16 %v785
  %v993 = vunpack.c.l.b16 %v786
  %v994 = vunpack.c.h.b16 %v786
  %v995 = vunpack.c.l.b16 %v787
  %v996 = vunpack.c.h.b16 %v787
  %v997 = vunpack.c.l.b16 %v788
  %v998 = vunpack.c.h.b16 %v788
  %v999 = vunpack.c.l.b16 %v789
  %v1000 = vunpack.c.h.b16 %v789
  %v1001 = vunpack.c.l.b16 %v790
  %v1002 = vunpack.c.h.b16 %v790
  %v1003 = vunpack.c.l.b16 %v791
  %v1004 = vunpack.c.h.b16 %v791
  %v1005 = vunpack.c.l.b16 %v792
  %v1006 = vunpack.c.h.b16 %v792
  %v1007 = vunpack.c.l.b16 %v793
  %v1008 = vunpack.c.h.b16 %v793
  %v1009 = vunpack.c.l.b16 %v794
  %v1010 = vunpack.c.h.b16 %v794
  %v1011 = vunpack.c.l.b16 %v795
  %v1012 = vunpack.c.h.b16 %v795
  %v1013 = vunpack.c.l.b16 %v796
  %v1014 = vunpack.c.h.b16 %v796
  %v1015 = vunpack.c.l.b16 %v797
  %v1016 = vunpack.c.h.b16 %v797
  %v1017 = vunpack.c.l.b16 %v798
  %v1018 = vunpack.c.h.b16 %v798
  %v1019 = vunpack.c.l.b16 %v799
  %v1020 = vunpack.c.h.b16 %v799
  %v1021 = vunpack.c.l.b16 %v800
  %v1022 = vunpack.c.h.b16 %v800
  %v1023 = vunpack.c.l.b16 %v801
  %v1024 = vunpack.c.h.b16 %v801
  %v1025 = vunpack.c.l.b16 %v802
  %v1026 = vunpack.c.h.b16 %v802
  %v1027 = vunpack.c.l.b16 %v803
  %v1028 = vunpack.c.h.b16 %v803
  %v1029 = vunpack.c.l.b16 %v804
  %v1030 = vunpack.c.h.b16 %v804
  %v1031 = vunpack.c.l.b16 %v805
  %v1032 = vunpack.c.h.b16 %v805
  %v1033 = vunpack.c.l.b16 %v806
  %v1034 = vunpack.c.h.b16 %v806
  %v1035 = vunpack.c.l.b16 %v807
  %v1036 = vunpack.c.h.b16 %v807
  %v1037 = vunpack.c.l.b16 %v808
  %v1038 = vunpack.c.h.b16 %v808
  %v1039 = vunpack.c.l.b16 %v809
  %v1040 = vunpack.c.h.b16 %v809
  %v1041 = vunpack.c.l.b16 %v810
  %v1042 = vunpack.c.h.b16 %v810
  %v1043 = vunpack.c.l.b16 %v811
  %v1044 = vunpack.c.h.b16 %v811
  %v1045 = vunpack.c.l.b16 %v812
  %v1046 = vunpack.c.h.b16 %v812
  %v1047 = vunpack.c.l.b16 %v813
  %v1048 = vunpack.c.h.b16 %v813
  %v1049 = vunpack.c.l.b16 %v814
  %v1050 = vunpack.c.h.b16 %v814
  %v1051 = vunpack.c.l.b16 %v815
  %v1052 = vunpack.c.h.b16 %v815
  %v1053 = vunpack.c.l.b16 %v816
  %v1054 = vunpack.c.h.b16 %v816
  %v1055 = vunpack.c.l.b16 %v817
  %v1056 = vunpack.c.h.b16 %v817
  %v1057 = vunpack.c.l.b16 %v818
  %v1058 = vunpack.c.h.b16 %v818
  %v1059 = vpack.c.b16 %v901, %v899
  %v1060 = vpack.c.b16 %v902, %v900
  %v1061 = vpack.c.b16 %v905, %v903
  %v1062 = vpack.c.b16 %v906, %v904
  %v1063 = vpack.c.b16 %v909, %v907
  %v1064 = vpack.c.b16 %v910, %v908
  %v1065 = vpack.c.b16 %v913, %v911
  %v1066 = vpack.c.b16 %v914, %v912
  %v1067 = vpack.c.b16 %v917, %v915
  %v1068 = vpack.c.b16 %v918, %v916
  %v1069 = vpack.c.b16 %v921, %v919
  %v1070 = vpack.c.b16 %v922, %v920
  %v1071 = vpack.c.b16 %v925, %v923
  %v1072 = vpack.c.b16 %v926, %v924
  %v1073 = vpack.c.b16 %v929, %v927
  %v1074 = vpack.c.b16 %v930, %v928
  %v1075 = vpack.c.b16 %v933, %v931
  %v1076 = vpack.c.b16 %v934, %v932
  %v1077 = vpack.c.b16 %v937, %v935
  %v1078 = vpack.c.b16 %v938, %v936
  %v1079 = vpack.c.b16 %v941, %v939
  %v1080 = vpack.c.b16 %v942, %v940
  %v1081 = vpack.c.b16 %v945, %v943
  %v1082 = vpack.c.b16 %v946, %v944
  %v1083 = vpack.c.b16 %v949, %v947
  %v1084 = vpack.c.b16 %v950, %v948
  %v1085 = vpack.c.b16 %v953, %v951
  %v1086 = vpack.c.b16 %v954, %v952
  %v1087 = vpack.c.b16 %v957, %v955
  %v1088 = vpack.c.b16 %v958, %v956
  %v1089 = vpack.c.b16 %v961, %v959
  %v1090 = vpack.c.b16 %v962, %v960
  %v1091 = vpack.c.b16 %v965, %v963
  %v1092 = vpack.c.b16 %v966, %v964
  %v1093 = vpack.c.b16 %v969, %v967
  %v1094 = vpack.c.b16 %v970, %v968
  %v1095 = vpack.c.b16 %v973, %v971
  %v1096 = vpack.c.b16 %v974, %v972
  %v1097 = vpack.c.b16 %v977, %v975
  %v1098 = vpack.c.b16 %v978, %v976
  %v1099 = vpack.c.b16 %v981, %v979
  %v1100 = vpack.c.b16 %v982, %v980
  %v1101 = vpack.c.b16 %v985, %v983
  %v1102 = vpack.c.b16 %v986, %v984
  %v1103 = vpack.c.b16 %v989, %v987
  %v1104 = vpack.c.b16 %v990, %v988
  %v1105 = vpack.c.b16 %v993, %v991
  %v1106 = vpack.c.b16 %v994, %v992
  %v1107 = vpack.c.b16 %v997, %v995
  %v1108 = vpack.c.b16 %v998, %v996
  %v1109 = vpack.c.b16 %v1001, %v999
  %v1110 = vpack.c.b16 %v1002, %v1000
  %v1111 = vpack.c.b16 %v1005, %v1003
  %v1112 = vpack.c.b16 %v1006, %v1004
  %v1113 = vpack.c.b16 %v1009, %v1007
  %v1114 = vpack.c.b16 %v1010, %v1008
  %v1115 = vpack.c.b16 %v1013, %v1011
  %v1116 = vpack.c.b16 %v1014, %v1012
  %v1117 = vpack.c.b16 %v1017, %v1015
  %v1118 = vpack.c.b16 %v1018, %v1016
  %v1119 = vpack.c.b16 %v1021, %v1019
  %v1120 = vpack.c.b16 %v1022, %v1020
  %v1121 = vpack.c.b16 %v1025, %v1023
  %v1122 = vpack.c.b16 %v1026, %v1024
  %v1123 = vpack.c.b16 %v1029, %v1027
  %v1124 = vpack.c.b16 %v1030, %v1028
  %v1125 = vpack.c.b16 %v1033, %v1031
  %v1126 = vpack.c.b16 %v1034, %v1032
  %v1127 = vpack.c.b16 %v1037, %v1035
  %v1128 = vpack.c.b16 %v1038, %v1036
  %v1129 = vpack.c.b16 %v1041, %v1039
  %v1130 = vpack.c.b16 %v1042, %v1040
  %v1131 = vpack.c.b16 %v1045, %v1043
  %v1132 = vpack.c.b16 %v1046, %v1044
  %v1133 = vpack.c.b16 %v1049, %v1047
  %v1134 = vpack.c.b16 %v1050, %v1048
  %v1135 = vpack.c.b16 %v1053, %v1051
  %v1136 = vpack.c.b16 %v1054, %v1052
  %v1137 = vpack.c.b16 %v1057, %v1055
  %v1138 = vpack.c.b16 %v1058, %v1056
  %1219 = vmatprep.subr.bf16.mxu0 %v1060
  %1220 = vmatpush1.bf16.msra.mxu0 %v1059
  %1221 = vmatprep.subr.bf16.mxu0 %v1062
  %1222 = vmatpush1.bf16.msra.mxu0 %v1061
  %1223 = vmatprep.subr.bf16.mxu0 %v1064
  %1224 = vmatpush1.bf16.msra.mxu0 %v1063
  %1225 = vmatprep.subr.bf16.mxu0 %v1066
  %1226 = vmatpush1.bf16.msra.mxu0 %v1065
  %1227 = vmatprep.subr.bf16.mxu0 %v1068
  %1228 = vmatpush1.bf16.msra.mxu0 %v1067
  %1229 = vmatprep.subr.bf16.mxu0 %v1070
  %1230 = vmatpush1.bf16.msra.mxu0 %v1069
  %1231 = vmatprep.subr.bf16.mxu0 %v1072
  %1232 = vmatpush1.bf16.msra.mxu0 %v1071
  %1233 = vmatprep.subr.bf16.mxu0 %v1074
  %1234 = vmatpush1.bf16.msra.mxu0 %v1073
  %1235 = vmatprep.subr.bf16.mxu0 %v1076
  %1236 = vmatpush1.bf16.msra.mxu0 %v1075
  %1237 = vmatprep.subr.bf16.mxu0 %v1078
  %1238 = vmatpush1.bf16.msra.mxu0 %v1077
  %1239 = vmatprep.subr.bf16.mxu0 %v1080
  %1240 = vmatpush1.bf16.msra.mxu0 %v1079
  %1241 = vmatprep.subr.bf16.mxu0 %v1082
  %1242 = vmatpush1.bf16.msra.mxu0 %v1081
  %1243 = vmatprep.subr.bf16.mxu0 %v1084
  %1244 = vmatpush1.bf16.msra.mxu0 %v1083
  %1245 = vmatprep.subr.bf16.mxu0 %v1086
  %1246 = vmatpush1.bf16.msra.mxu0 %v1085
  %1247 = vmatprep.subr.bf16.mxu0 %v1088
  %1248 = vmatpush1.bf16.msra.mxu0 %v1087
  %1249 = vmatprep.subr.bf16.mxu0 %v1090
  %1250 = vmatpush1.bf16.msra.mxu0 %v1089
  %1251 = vmatprep.mubr.bf16.mxu0 %v709
  %1252 = vmatmul.mubr.bf16.gmra.mrb[0].mxu0 %v698
  %v1253 = vpop.f32.mrb[0].mxu0
  %v1254 = vadd.f32 0.0, %v1253
  %v1255 = vpop.f32.mrb[0].mxu0
  %v1256 = vadd.f32 0.0, %v1255
  %v1257 = vpop.f32.mrb[0].mxu0
  %v1258 = vadd.f32 0.0, %v1257
  %v1259 = vpop.f32.mrb[0].mxu0
  %v1260 = vadd.f32 0.0, %v1259
  %1261 = vmatprep.mubr.bf16.mxu0 %v712
  %1262 = vmatmul.mubr.bf16.gmra.mrb[0].mxu0 %v702
  %v1263 = vpop.f32.mrb[0].mxu0
  %v1264 = vadd.f32 0.0, %v1263
  %v1265 = vpop.f32.mrb[0].mxu0
  %v1266 = vadd.f32 0.0, %v1265
  %v1267 = vpop.f32.mrb[0].mxu0
  %v1268 = vadd.f32 0.0, %v1267
  %v1269 = vpop.f32.mrb[0].mxu0
  %v1270 = vadd.f32 0.0, %v1269
  %1271 = vdwg.mxu0
  %1272 = vmatprep.subr.bf16.mxu0 %v1092
  %1273 = vmatpush1.bf16.msra.mxu0 %v1091
  %1274 = vmatprep.subr.bf16.mxu0 %v1094
  %1275 = vmatpush1.bf16.msra.mxu0 %v1093
  %1276 = vmatprep.subr.bf16.mxu0 %v1096
  %1277 = vmatpush1.bf16.msra.mxu0 %v1095
  %1278 = vmatprep.subr.bf16.mxu0 %v1098
  %1279 = vmatpush1.bf16.msra.mxu0 %v1097
  %1280 = vmatprep.subr.bf16.mxu0 %v1100
  %1281 = vmatpush1.bf16.msra.mxu0 %v1099
  %1282 = vmatprep.subr.bf16.mxu0 %v1102
  %1283 = vmatpush1.bf16.msra.mxu0 %v1101
  %1284 = vmatprep.subr.bf16.mxu0 %v1104
  %1285 = vmatpush1.bf16.msra.mxu0 %v1103
  %1286 = vmatprep.subr.bf16.mxu0 %v1106
  %1287 = vmatpush1.bf16.msra.mxu0 %v1105
  %1288 = vmatprep.subr.bf16.mxu0 %v1108
  %1289 = vmatpush1.bf16.msra.mxu0 %v1107
  %1290 = vmatprep.subr.bf16.mxu0 %v1110
  %1291 = vmatpush1.bf16.msra.mxu0 %v1109
  %1292 = vmatprep.subr.bf16.mxu0 %v1112
  %1293 = vmatpush1.bf16.msra.mxu0 %v1111
  %1294 = vmatprep.subr.bf16.mxu0 %v1114
  %1295 = vmatpush1.bf16.msra.mxu0 %v1113
  %1296 = vmatprep.subr.bf16.mxu0 %v1116
  %1297 = vmatpush1.bf16.msra.mxu0 %v1115
  %1298 = vmatprep.subr.bf16.mxu0 %v1118
  %1299 = vmatpush1.bf16.msra.mxu0 %v1117
  %1300 = vmatprep.subr.bf16.mxu0 %v1120
  %1301 = vmatpush1.bf16.msra.mxu0 %v1119
  %1302 = vmatprep.subr.bf16.mxu0 %v1122
  %1303 = vmatpush1.bf16.msra.mxu0 %v1121
  %1304 = vmatprep.mubr.bf16.mxu0 %v727
  %1305 = vmatmul.mubr.bf16.gmra.mrb[0].mxu0 %v715
  %v1306 = vpop.f32.mrb[0].mxu0
  %v1307 = vadd.f32 %v1254, %v1306
  %v1308 = vpop.f32.mrb[0].mxu0
  %v1309 = vadd.f32 %v1256, %v1308
  %v1310 = vpop.f32.mrb[0].mxu0
  %v1311 = vadd.f32 %v1258, %v1310
  %v1312 = vpop.f32.mrb[0].mxu0
  %v1313 = vadd.f32 %v1260, %v1312
  %1314 = vmatprep.mubr.bf16.mxu0 %v730
  %1315 = vmatmul.mubr.bf16.gmra.mrb[0].mxu0 %v718
  %v1316 = vpop.f32.mrb[0].mxu0
  %v1317 = vadd.f32 %v1264, %v1316
  %v1318 = vpop.f32.mrb[0].mxu0
  %v1319 = vadd.f32 %v1266, %v1318
  %v1320 = vpop.f32.mrb[0].mxu0
  %v1321 = vadd.f32 %v1268, %v1320
  %v1322 = vpop.f32.mrb[0].mxu0
  %v1323 = vadd.f32 %v1270, %v1322
  %1324 = vdwg.mxu0
  %1325 = vmatprep.subr.bf16.mxu0 %v1124
  %1326 = vmatpush1.bf16.msra.mxu0 %v1123
  %1327 = vmatprep.subr.bf16.mxu0 %v1126
  %1328 = vmatpush1.bf16.msra.mxu0 %v1125
  %1329 = vmatprep.subr.bf16.mxu0 %v1128
  %1330 = vmatpush1.bf16.msra.mxu0 %v1127
  %1331 = vmatprep.subr.bf16.mxu0 %v1130
  %1332 = vmatpush1.bf16.msra.mxu0 %v1129
  %1333 = vmatprep.subr.bf16.mxu0 %v1132
  %1334 = vmatpush1.bf16.msra.mxu0 %v1131
  %1335 = vmatprep.subr.bf16.mxu0 %v1134
  %1336 = vmatpush1.bf16.msra.mxu0 %v1133
  %1337 = vmatprep.subr.bf16.mxu0 %v1136
  %1338 = vmatpush1.bf16.msra.mxu0 %v1135
  %1339 = vmatprep.subr.bf16.mxu0 %v1138
  %1340 = vmatpush1.bf16.msra.mxu0 %v1137
  %1341 = vmatprep.subr.bf16.mxu0 0
  %1342 = vmatpush1.bf16.msra.mxu0 0
  %1343 = vmatprep.subr.bf16.mxu0 0
  %1344 = vmatpush1.bf16.msra.mxu0 0
  %1345 = vmatprep.subr.bf16.mxu0 0
  %1346 = vmatpush1.bf16.msra.mxu0 0
  %1347 = vmatprep.subr.bf16.mxu0 0
  %1348 = vmatpush1.bf16.msra.mxu0 0
  %1349 = vmatprep.subr.bf16.mxu0 0
  %1350 = vmatpush1.bf16.msra.mxu0 0
  %1351 = vmatprep.subr.bf16.mxu0 0
  %1352 = vmatpush1.bf16.msra.mxu0 0
  %1353 = vmatprep.subr.bf16.mxu0 0
  %1354 = vmatpush1.bf16.msra.mxu0 0
  %1355 = vmatprep.subr.bf16.mxu0 0
  %1356 = vmatpush1.bf16.msra.mxu0 0
  %1357 = vmatprep.mubr.bf16.mxu0 0
  %1358 = vmatmul.mubr.bf16.gmra.mrb[0].mxu0 %v734
  %v1359 = vpop.f32.mrb[0].mxu0
  %v1360 = vadd.f32 %v1307, %v1359
  %v1361 = vpop.f32.mrb[0].mxu0
  %v1362 = vadd.f32 %v1309, %v1361
  %v1363 = vpop.f32.mrb[0].mxu0
  %v1364 = vadd.f32 %v1311, %v1363
  %v1365 = vpop.f32.mrb[0].mxu0
  %v1366 = vadd.f32 %v1313, %v1365
  %1367 = vmatprep.mubr.bf16.mxu0 0
  %1368 = vmatmul.mubr.bf16.gmra.mrb[0].mxu0 %v737
  %v1369 = vpop.f32.mrb[0].mxu0
  %v1370 = vadd.f32 %v1317, %v1369
  %v1371 = vpop.f32.mrb[0].mxu0
  %v1372 = vadd.f32 %v1319, %v1371
  %v1373 = vpop.f32.mrb[0].mxu0
  %v1374 = vadd.f32 %v1321, %v1373
  %v1375 = vpop.f32.mrb[0].mxu0
  %v1376 = vadd.f32 %v1323, %v1375
  %1377 = vdwg.mxu0
  %v1378 = vadd.s32 %v35, 8
  %v1379 = vadd.s32 %v35, 16
  %v1380 = vadd.s32 %v35, 24
  %vm1381 = vcmp.lt.s32.totalorder %v35, 17
  %vm1382 = vcmp.lt.s32.totalorder %v1378, 17
  %vm1383 = vcmp.lt.s32.totalorder %v1379, 17
  %vm1384 = vcmp.lt.s32.totalorder %v1380, 17
  %v1385 = vsel %vm1381, %v1360, -1e+30
  %v1386 = vsel %vm1381, %v1362, -1e+30
  %v1387 = vsel %vm1382, %v1364, -1e+30
  %v1388 = vsel %vm1382, %v1366, -1e+30
  %v1389 = vsel %vm1383, %v1370, -1e+30
  %v1390 = vsel %vm1383, %v1372, -1e+30
  %v1391 = vsel %vm1384, %v1374, -1e+30
  %v1392 = vsel %vm1384, %v1376, -1e+30
  %v1393 = vmax.f32 %v1385, %v1389
  %v1394 = vmax.f32 %v1387, %v1391
  %v1395 = vmax.f32 %v1393, %v1394
  %v1396 = vrot.slane %v1395, 4
  %v1397 = vmax.f32 %v1395, %v1396
  %v1398 = vrot.slane %v1397, 2
  %v1399 = vmax.f32 %v1397, %v1398
  %v1400 = vrot.slane %v1399, 1
  %v1401 = vmax.f32 %v1399, %v1400
  %v1402 = vsel %vm385, %v1386, -inf
  %v1403 = vsel %vm385, %v1388, -inf
  %v1404 = vsel %vm385, %v1390, -inf
  %v1405 = vmax.f32 %v1402, %v1404
  %v1406 = vsel %vm385, %v1392, -inf
  %v1407 = vmax.f32 %v1403, %v1406
  %v1408 = vmax.f32 %v1405, %v1407
  %v1409 = vrot.slane %v1408, 4
  %v1410 = vmax.f32 %v1408, %v1409
  %v1411 = vrot.slane %v1410, 2
  %v1412 = vmax.f32 %v1410, %v1411
  %v1413 = vrot.slane %v1412, 1
  %v1414 = vmax.f32 %v1412, %v1413
  %s1415 = scalar_lea.vmem %s0, 32
  %v1416 = vld [vmem:[%s1415] sm:$0xff]
  %v1417 = vld [vmem:[%s1415 + $0x8] sm:$0xff]
  %v1418 = vld [vmem:[%s1415 + $0x10] sm:$0xff]
  %v1419 = vld [vmem:[%s1415 + $0x18] sm:$0xff]
  %v1420 = vpack.c.bf16 %v1417, %v1416
  %v1421 = vpack.c.bf16 %v1419, %v1418
  %v1422 = vrot.slane %v1416, 1
  %v1423 = vrot.slane %v1417, 1
  %v1424 = vrot.slane %v1418, 1
  %v1425 = vrot.slane %v1419, 1
  %v1426 = vsel %vm36, %v1424, %v1425
  %v1427 = vsel %vm36, %v1423, %v1424
  %v1428 = vsel %vm36, %v1422, %v1423
  %v1429 = vsel %vm36, %v1425, %v1422
  %v1430 = vpack.c.bf16 %v1427, %v1428
  %v1431 = vpack.c.bf16 %v1429, %v1426
  %v1432 = vrot.slane %v1416, 2
  %v1433 = vrot.slane %v1417, 2
  %v1434 = vrot.slane %v1418, 2
  %v1435 = vrot.slane %v1419, 2
  %v1436 = vsel %vm47, %v1434, %v1435
  %v1437 = vsel %vm47, %v1433, %v1434
  %v1438 = vsel %vm47, %v1432, %v1433
  %v1439 = vsel %vm47, %v1435, %v1432
  %v1440 = vpack.c.bf16 %v1437, %v1438
  %v1441 = vpack.c.bf16 %v1439, %v1436
  %v1442 = vrot.slane %v1416, 3
  %v1443 = vrot.slane %v1417, 3
  %v1444 = vrot.slane %v1418, 3
  %v1445 = vrot.slane %v1419, 3
  %v1446 = vsel %vm58, %v1444, %v1445
  %v1447 = vsel %vm58, %v1443, %v1444
  %v1448 = vsel %vm58, %v1442, %v1443
  %v1449 = vsel %vm58, %v1445, %v1442
  %v1450 = vpack.c.bf16 %v1447, %v1448
  %v1451 = vpack.c.bf16 %v1449, %v1446
  %1454 = vrot.lane.b32.xlu0 %v1430, 64
  %v1455 = vpop.permute.xlu0 %1454
  %1456 = vrot.lane.b32.xlu0 %v1431, 64
  %v1457 = vpop.permute.xlu0 %1456
  %1460 = vrot.lane.b32.xlu0 %v1450, 64
  %v1461 = vpop.permute.xlu0 %1460
  %1462 = vrot.lane.b32.xlu0 %v1451, 64
  %v1463 = vpop.permute.xlu0 %1462
  %v1466 = vsel %vm77, %v1420, %v1455
  %v1470 = vsel %vm77, %v1421, %v1457
  %v1474 = vsel %vm77, %v1440, %v1461
  %v1478 = vsel %vm77, %v1441, %v1463
  %1480 = vmatprep.subr.bf16.mxu0 0
  %1481 = vmatpush1.bf16.msra.mxu0 %v197
  %1482 = vmatprep.subr.bf16.mxu0 0
  %1483 = vmatpush1.bf16.msra.mxu0 %v198
  %1484 = vmatprep.subr.bf16.mxu0 0
  %1485 = vmatpush1.bf16.msra.mxu0 %v199
  %1486 = vmatprep.subr.bf16.mxu0 0
  %1487 = vmatpush1.bf16.msra.mxu0 %v200
  %1488 = vmatprep.subr.bf16.mxu0 0
  %1489 = vmatpush1.bf16.msra.mxu0 %v201
  %1490 = vmatprep.subr.bf16.mxu0 0
  %1491 = vmatpush1.bf16.msra.mxu0 %v202
  %1492 = vmatprep.subr.bf16.mxu0 0
  %1493 = vmatpush1.bf16.msra.mxu0 %v203
  %1494 = vmatprep.subr.bf16.mxu0 0
  %1495 = vmatpush1.bf16.msra.mxu0 %v204
  %1496 = vmatprep.subr.bf16.mxu0 0
  %1497 = vmatpush1.bf16.msra.mxu0 %v205
  %1498 = vmatprep.subr.bf16.mxu0 0
  %1499 = vmatpush1.bf16.msra.mxu0 %v206
  %1500 = vmatprep.subr.bf16.mxu0 0
  %1501 = vmatpush1.bf16.msra.mxu0 %v207
  %1502 = vmatprep.subr.bf16.mxu0 0
  %1503 = vmatpush1.bf16.msra.mxu0 %v208
  %1504 = vmatprep.subr.bf16.mxu0 0
  %1505 = vmatpush1.bf16.msra.mxu0 %v209
  %1506 = vmatprep.subr.bf16.mxu0 0
  %1507 = vmatpush1.bf16.msra.mxu0 %v210
  %1508 = vmatprep.subr.bf16.mxu0 0
  %1509 = vmatpush1.bf16.msra.mxu0 %v211
  %1510 = vmatprep.subr.bf16.mxu0 0
  %1511 = vmatpush1.bf16.msra.mxu0 %v212
  %1512 = vmatprep.mubr.bf16.mxu0 %v1474
  %1513 = vmatmul.mubr.bf16.gmra.mrb[0].mxu0 %v1466
  %v1514 = vpop.f32.mrb[0].mxu0
  %v1515 = vadd.f32 %v131, %v1514
  %v1516 = vpop.f32.mrb[0].mxu0
  %v1517 = vpop.f32.mrb[0].mxu0
  %v1518 = vadd.f32 %v131, %v1517
  %v1519 = vpop.f32.mrb[0].mxu0
  %1520 = vmatprep.mubr.bf16.mxu0 %v1478
  %1521 = vmatmul.mubr.bf16.gmra.mrb[0].mxu0 %v1470
  %v1522 = vpop.f32.mrb[0].mxu0
  %v1523 = vadd.f32 %v131, %v1522
  %v1524 = vpop.f32.mrb[0].mxu0
  %v1525 = vpop.f32.mrb[0].mxu0
  %v1526 = vadd.f32 %v131, %v1525
  %v1527 = vpop.f32.mrb[0].mxu0
  %1528 = vdwg.mxu0
  %v1529 = vmax.f32 %v1515, 0.0
  %v1530 = vmax.f32 %v1518, 0.0
  %v1531 = vmax.f32 %v1523, 0.0
  %v1532 = vmax.f32 %v1526, 0.0
  %v1533 = vpack.c.bf16 %v1530, %v1529
  %v1534 = vpack.c.bf16 %v1532, %v1531
  %v1535 = vrot.slane %v1529, 1
  %v1536 = vrot.slane %v1530, 1
  %v1537 = vrot.slane %v1531, 1
  %v1538 = vrot.slane %v1532, 1
  %v1539 = vsel %vm36, %v1537, %v1538
  %v1540 = vsel %vm36, %v1536, %v1537
  %v1541 = vsel %vm36, %v1535, %v1536
  %v1542 = vsel %vm36, %v1538, %v1535
  %v1543 = vpack.c.bf16 %v1540, %v1541
  %v1544 = vpack.c.bf16 %v1542, %v1539
  %v1545 = vrot.slane %v1529, 2
  %v1546 = vrot.slane %v1530, 2
  %v1547 = vrot.slane %v1531, 2
  %v1548 = vrot.slane %v1532, 2
  %v1549 = vsel %vm47, %v1547, %v1548
  %v1550 = vsel %vm47, %v1546, %v1547
  %v1551 = vsel %vm47, %v1545, %v1546
  %v1552 = vsel %vm47, %v1548, %v1545
  %v1553 = vpack.c.bf16 %v1550, %v1551
  %v1554 = vpack.c.bf16 %v1552, %v1549
  %v1555 = vrot.slane %v1529, 3
  %v1556 = vrot.slane %v1530, 3
  %v1557 = vrot.slane %v1531, 3
  %v1558 = vrot.slane %v1532, 3
  %v1559 = vsel %vm58, %v1557, %v1558
  %v1560 = vsel %vm58, %v1556, %v1557
  %v1561 = vsel %vm58, %v1555, %v1556
  %v1562 = vsel %vm58, %v1558, %v1555
  %v1563 = vpack.c.bf16 %v1560, %v1561
  %v1564 = vpack.c.bf16 %v1562, %v1559
  %v1565 = vrot.slane %v1529, 4
  %v1566 = vrot.slane %v1530, 4
  %v1567 = vrot.slane %v1531, 4
  %v1568 = vrot.slane %v1532, 4
  %v1569 = vsel %vm318, %v1567, %v1568
  %v1570 = vsel %vm318, %v1566, %v1567
  %v1571 = vsel %vm318, %v1565, %v1566
  %v1572 = vsel %vm318, %v1568, %v1565
  %v1573 = vpack.c.bf16 %v1570, %v1571
  %v1574 = vpack.c.bf16 %v1572, %v1569
  %v1575 = vrot.slane %v1529, 5
  %v1576 = vrot.slane %v1530, 5
  %v1577 = vrot.slane %v1531, 5
  %v1578 = vrot.slane %v1532, 5
  %v1579 = vsel %vm329, %v1577, %v1578
  %v1580 = vsel %vm329, %v1576, %v1577
  %v1581 = vsel %vm329, %v1575, %v1576
  %v1582 = vsel %vm329, %v1578, %v1575
  %v1583 = vpack.c.bf16 %v1580, %v1581
  %v1584 = vpack.c.bf16 %v1582, %v1579
  %1587 = vrot.lane.b32.xlu0 %v1543, 40
  %v1588 = vpop.permute.xlu0 %1587
  %1589 = vrot.lane.b32.xlu0 %v1544, 40
  %v1590 = vpop.permute.xlu0 %1589
  %1593 = vrot.lane.b32.xlu0 %v1553, 80
  %v1594 = vpop.permute.xlu0 %1593
  %1595 = vrot.lane.b32.xlu0 %v1554, 80
  %v1596 = vpop.permute.xlu0 %1595
  %1599 = vrot.lane.b32.xlu0 %v1563, 120
  %v1600 = vpop.permute.xlu0 %1599
  %1601 = vrot.lane.b32.xlu0 %v1564, 120
  %v1602 = vpop.permute.xlu0 %1601
  %1605 = vrot.lane.b32.xlu0 %v1573, 32
  %v1606 = vpop.permute.xlu0 %1605
  %1607 = vrot.lane.b32.xlu0 %v1574, 32
  %v1608 = vpop.permute.xlu0 %1607
  %1611 = vrot.lane.b32.xlu0 %v1583, 72
  %v1612 = vpop.permute.xlu0 %1611
  %1613 = vrot.lane.b32.xlu0 %v1584, 72
  %v1614 = vpop.permute.xlu0 %1613
  %v1617 = vsel %vm366, %v1533, %v1588
  %v1620 = vsel %vm366, %v1534, %v1590
  %v1622 = vsel %vm373, %v1617, %v1594
  %v1624 = vsel %vm373, %v1620, %v1596
  %v1626 = vsel %vm378, %v1622, %v1600
  %v1629 = vsel %vm378, %v1624, %v1602
  %v1632 = vsel %vm385, %v1600, %v1606
  %v1634 = vsel %vm385, %v1602, %v1608
  %v1636 = vsel %vm390, %v1632, %v1612
  %v1638 = vsel %vm390, %v1634, %v1614
  %v1639 = vsel %vm522, %v1636, 0
  %v1641 = vsel %vm522, %v1638, 0
  %1643 = vmatprep.subr.bf16.mxu0 0
  %1644 = vmatpush1.bf16.msra.mxu0 %v492
  %1645 = vmatprep.subr.bf16.mxu0 0
  %1646 = vmatpush1.bf16.msra.mxu0 %v493
  %1647 = vmatprep.subr.bf16.mxu0 0
  %1648 = vmatpush1.bf16.msra.mxu0 %v494
  %1649 = vmatprep.subr.bf16.mxu0 0
  %1650 = vmatpush1.bf16.msra.mxu0 %v495
  %1651 = vmatprep.subr.bf16.mxu0 0
  %1652 = vmatpush1.bf16.msra.mxu0 %v496
  %1653 = vmatprep.subr.bf16.mxu0 0
  %1654 = vmatpush1.bf16.msra.mxu0 %v497
  %1655 = vmatprep.subr.bf16.mxu0 0
  %1656 = vmatpush1.bf16.msra.mxu0 %v498
  %1657 = vmatprep.subr.bf16.mxu0 0
  %1658 = vmatpush1.bf16.msra.mxu0 %v499
  %1659 = vmatprep.subr.bf16.mxu0 0
  %1660 = vmatpush1.bf16.msra.mxu0 %v500
  %1661 = vmatprep.subr.bf16.mxu0 0
  %1662 = vmatpush1.bf16.msra.mxu0 %v501
  %1663 = vmatprep.subr.bf16.mxu0 0
  %1664 = vmatpush1.bf16.msra.mxu0 %v502
  %1665 = vmatprep.subr.bf16.mxu0 0
  %1666 = vmatpush1.bf16.msra.mxu0 %v503
  %1667 = vmatprep.subr.bf16.mxu0 0
  %1668 = vmatpush1.bf16.msra.mxu0 %v504
  %1669 = vmatprep.subr.bf16.mxu0 0
  %1670 = vmatpush1.bf16.msra.mxu0 %v505
  %1671 = vmatprep.subr.bf16.mxu0 0
  %1672 = vmatpush1.bf16.msra.mxu0 %v506
  %1673 = vmatprep.subr.bf16.mxu0 0
  %1674 = vmatpush1.bf16.msra.mxu0 0
  %1675 = vmatprep.mubr.bf16.mxu0 %v1639
  %1676 = vmatmul.mubr.bf16.gmra.mrb[0].mxu0 %v1626
  %v1677 = vpop.f32.mrb[0].mxu0
  %v1678 = vadd.f32 %v430, %v1677
  %v1679 = vpop.f32.mrb[0].mxu0
  %v1680 = vpop.f32.mrb[0].mxu0
  %v1681 = vadd.f32 %v430, %v1680
  %v1682 = vpop.f32.mrb[0].mxu0
  %1683 = vmatprep.mubr.bf16.mxu0 %v1641
  %1684 = vmatmul.mubr.bf16.gmra.mrb[0].mxu0 %v1629
  %v1685 = vpop.f32.mrb[0].mxu0
  %v1686 = vadd.f32 %v430, %v1685
  %v1687 = vpop.f32.mrb[0].mxu0
  %v1688 = vpop.f32.mrb[0].mxu0
  %v1689 = vadd.f32 %v430, %v1688
  %v1690 = vpop.f32.mrb[0].mxu0
  %1691 = vdwg.mxu0
  %v1692 = vmax.f32 %v1678, 0.0
  %v1693 = vmax.f32 %v1681, 0.0
  %v1694 = vmax.f32 %v1686, 0.0
  %v1695 = vmax.f32 %v1689, 0.0
  %v1696 = vpack.c.bf16 %v1693, %v1692
  %v1697 = vpack.c.bf16 %v1695, %v1694
  %v1698 = vrot.slane %v1692, 1
  %v1699 = vrot.slane %v1693, 1
  %v1700 = vrot.slane %v1694, 1
  %v1701 = vrot.slane %v1695, 1
  %v1702 = vsel %vm36, %v1700, %v1701
  %v1703 = vsel %vm36, %v1699, %v1700
  %v1704 = vsel %vm36, %v1698, %v1699
  %v1705 = vsel %vm36, %v1701, %v1698
  %v1706 = vpack.c.bf16 %v1703, %v1704
  %v1707 = vpack.c.bf16 %v1705, %v1702
  %v1708 = vrot.slane %v1692, 2
  %v1709 = vrot.slane %v1693, 2
  %v1710 = vrot.slane %v1694, 2
  %v1711 = vrot.slane %v1695, 2
  %v1712 = vsel %vm47, %v1710, %v1711
  %v1713 = vsel %vm47, %v1709, %v1710
  %v1714 = vsel %vm47, %v1708, %v1709
  %v1715 = vsel %vm47, %v1711, %v1708
  %v1716 = vpack.c.bf16 %v1713, %v1714
  %v1717 = vpack.c.bf16 %v1715, %v1712
  %v1718 = vrot.slane %v1692, 3
  %v1719 = vrot.slane %v1693, 3
  %v1720 = vrot.slane %v1694, 3
  %v1721 = vrot.slane %v1695, 3
  %v1722 = vsel %vm58, %v1720, %v1721
  %v1723 = vsel %vm58, %v1719, %v1720
  %v1724 = vsel %vm58, %v1718, %v1719
  %v1725 = vsel %vm58, %v1721, %v1718
  %v1726 = vpack.c.bf16 %v1723, %v1724
  %v1727 = vpack.c.bf16 %v1725, %v1722
  %v1728 = vrot.slane %v1692, 4
  %v1729 = vrot.slane %v1693, 4
  %v1730 = vrot.slane %v1694, 4
  %v1731 = vrot.slane %v1695, 4
  %v1732 = vsel %vm318, %v1730, %v1731
  %v1733 = vsel %vm318, %v1729, %v1730
  %v1734 = vsel %vm318, %v1728, %v1729
  %v1735 = vsel %vm318, %v1731, %v1728
  %v1736 = vpack.c.bf16 %v1733, %v1734
  %v1737 = vpack.c.bf16 %v1735, %v1732
  %v1738 = vrot.slane %v1692, 5
  %v1739 = vrot.slane %v1693, 5
  %v1740 = vrot.slane %v1694, 5
  %v1741 = vrot.slane %v1695, 5
  %v1742 = vsel %vm329, %v1740, %v1741
  %v1743 = vsel %vm329, %v1739, %v1740
  %v1744 = vsel %vm329, %v1738, %v1739
  %v1745 = vsel %vm329, %v1741, %v1738
  %v1746 = vpack.c.bf16 %v1743, %v1744
  %v1747 = vpack.c.bf16 %v1745, %v1742
  %v1748 = vrot.slane %v1692, 6
  %v1749 = vrot.slane %v1693, 6
  %v1750 = vrot.slane %v1694, 6
  %v1751 = vrot.slane %v1695, 6
  %v1752 = vsel %vm636, %v1750, %v1751
  %v1753 = vsel %vm636, %v1749, %v1750
  %v1754 = vsel %vm636, %v1748, %v1749
  %v1755 = vsel %vm636, %v1751, %v1748
  %v1756 = vpack.c.bf16 %v1753, %v1754
  %v1757 = vpack.c.bf16 %v1755, %v1752
  %v1758 = vrot.slane %v1692, 7
  %v1759 = vrot.slane %v1693, 7
  %v1760 = vrot.slane %v1694, 7
  %v1761 = vrot.slane %v1695, 7
  %v1762 = vsel %vm647, %v1760, %v1761
  %v1763 = vsel %vm647, %v1759, %v1760
  %v1764 = vsel %vm647, %v1758, %v1759
  %v1765 = vsel %vm647, %v1761, %v1758
  %v1766 = vpack.c.bf16 %v1763, %v1764
  %v1767 = vpack.c.bf16 %v1765, %v1762
  %1770 = vrot.lane.b32.xlu0 %v1706, 80
  %v1771 = vpop.permute.xlu0 %1770
  %1772 = vrot.lane.b32.xlu0 %v1707, 80
  %v1773 = vpop.permute.xlu0 %1772
  %1776 = vrot.lane.b32.xlu0 %v1716, 32
  %v1777 = vpop.permute.xlu0 %1776
  %1778 = vrot.lane.b32.xlu0 %v1717, 32
  %v1779 = vpop.permute.xlu0 %1778
  %1782 = vrot.lane.b32.xlu0 %v1726, 112
  %v1783 = vpop.permute.xlu0 %1782
  %1784 = vrot.lane.b32.xlu0 %v1727, 112
  %v1785 = vpop.permute.xlu0 %1784
  %1788 = vrot.lane.b32.xlu0 %v1736, 64
  %v1789 = vpop.permute.xlu0 %1788
  %1790 = vrot.lane.b32.xlu0 %v1737, 64
  %v1791 = vpop.permute.xlu0 %1790
  %1794 = vrot.lane.b32.xlu0 %v1746, 16
  %v1795 = vpop.permute.xlu0 %1794
  %1796 = vrot.lane.b32.xlu0 %v1747, 16
  %v1797 = vpop.permute.xlu0 %1796
  %1800 = vrot.lane.b32.xlu0 %v1756, 96
  %v1801 = vpop.permute.xlu0 %1800
  %1802 = vrot.lane.b32.xlu0 %v1757, 96
  %v1803 = vpop.permute.xlu0 %1802
  %1806 = vrot.lane.b32.xlu0 %v1766, 48
  %v1807 = vpop.permute.xlu0 %1806
  %1808 = vrot.lane.b32.xlu0 %v1767, 48
  %v1809 = vpop.permute.xlu0 %1808
  %v1812 = vsel %vm373, %v1696, %v1771
  %v1816 = vsel %vm373, %v1697, %v1773
  %v1819 = vsel %vm385, %v1771, %v1777
  %v1821 = vsel %vm385, %v1773, %v1779
  %v1823 = vsel %vm522, %v1819, %v1783
  %v1826 = vsel %vm522, %v1821, %v1785
  %v1829 = vsel %vm77, %v1783, %v1789
  %v1832 = vsel %vm77, %v1785, %v1791
  %v1835 = vsel %vm720, %v1789, %v1795
  %v1837 = vsel %vm720, %v1791, %v1797
  %v1839 = vsel %vm725, %v1835, %v1801
  %v1842 = vsel %vm725, %v1837, %v1803
  %v1845 = vsel %vm732, %v1801, %v1807
  %v1848 = vsel %vm732, %v1803, %v1809
  %1850 = vmatprep.subr.bf16.mxu0 %v1060
  %1851 = vmatpush1.bf16.msra.mxu0 %v1059
  %1852 = vmatprep.subr.bf16.mxu0 %v1062
  %1853 = vmatpush1.bf16.msra.mxu0 %v1061
  %1854 = vmatprep.subr.bf16.mxu0 %v1064
  %1855 = vmatpush1.bf16.msra.mxu0 %v1063
  %1856 = vmatprep.subr.bf16.mxu0 %v1066
  %1857 = vmatpush1.bf16.msra.mxu0 %v1065
  %1858 = vmatprep.subr.bf16.mxu0 %v1068
  %1859 = vmatpush1.bf16.msra.mxu0 %v1067
  %1860 = vmatprep.subr.bf16.mxu0 %v1070
  %1861 = vmatpush1.bf16.msra.mxu0 %v1069
  %1862 = vmatprep.subr.bf16.mxu0 %v1072
  %1863 = vmatpush1.bf16.msra.mxu0 %v1071
  %1864 = vmatprep.subr.bf16.mxu0 %v1074
  %1865 = vmatpush1.bf16.msra.mxu0 %v1073
  %1866 = vmatprep.subr.bf16.mxu0 %v1076
  %1867 = vmatpush1.bf16.msra.mxu0 %v1075
  %1868 = vmatprep.subr.bf16.mxu0 %v1078
  %1869 = vmatpush1.bf16.msra.mxu0 %v1077
  %1870 = vmatprep.subr.bf16.mxu0 %v1080
  %1871 = vmatpush1.bf16.msra.mxu0 %v1079
  %1872 = vmatprep.subr.bf16.mxu0 %v1082
  %1873 = vmatpush1.bf16.msra.mxu0 %v1081
  %1874 = vmatprep.subr.bf16.mxu0 %v1084
  %1875 = vmatpush1.bf16.msra.mxu0 %v1083
  %1876 = vmatprep.subr.bf16.mxu0 %v1086
  %1877 = vmatpush1.bf16.msra.mxu0 %v1085
  %1878 = vmatprep.subr.bf16.mxu0 %v1088
  %1879 = vmatpush1.bf16.msra.mxu0 %v1087
  %1880 = vmatprep.subr.bf16.mxu0 %v1090
  %1881 = vmatpush1.bf16.msra.mxu0 %v1089
  %1882 = vmatprep.mubr.bf16.mxu0 %v1823
  %1883 = vmatmul.mubr.bf16.gmra.mrb[0].mxu0 %v1812
  %v1884 = vpop.f32.mrb[0].mxu0
  %v1885 = vadd.f32 0.0, %v1884
  %v1886 = vpop.f32.mrb[0].mxu0
  %v1887 = vadd.f32 0.0, %v1886
  %v1888 = vpop.f32.mrb[0].mxu0
  %v1889 = vadd.f32 0.0, %v1888
  %v1890 = vpop.f32.mrb[0].mxu0
  %v1891 = vadd.f32 0.0, %v1890
  %1892 = vmatprep.mubr.bf16.mxu0 %v1826
  %1893 = vmatmul.mubr.bf16.gmra.mrb[0].mxu0 %v1816
  %v1894 = vpop.f32.mrb[0].mxu0
  %v1895 = vadd.f32 0.0, %v1894
  %v1896 = vpop.f32.mrb[0].mxu0
  %v1897 = vadd.f32 0.0, %v1896
  %v1898 = vpop.f32.mrb[0].mxu0
  %v1899 = vadd.f32 0.0, %v1898
  %v1900 = vpop.f32.mrb[0].mxu0
  %v1901 = vadd.f32 0.0, %v1900
  %1902 = vdwg.mxu0
  %1903 = vmatprep.subr.bf16.mxu0 %v1092
  %1904 = vmatpush1.bf16.msra.mxu0 %v1091
  %1905 = vmatprep.subr.bf16.mxu0 %v1094
  %1906 = vmatpush1.bf16.msra.mxu0 %v1093
  %1907 = vmatprep.subr.bf16.mxu0 %v1096
  %1908 = vmatpush1.bf16.msra.mxu0 %v1095
  %1909 = vmatprep.subr.bf16.mxu0 %v1098
  %1910 = vmatpush1.bf16.msra.mxu0 %v1097
  %1911 = vmatprep.subr.bf16.mxu0 %v1100
  %1912 = vmatpush1.bf16.msra.mxu0 %v1099
  %1913 = vmatprep.subr.bf16.mxu0 %v1102
  %1914 = vmatpush1.bf16.msra.mxu0 %v1101
  %1915 = vmatprep.subr.bf16.mxu0 %v1104
  %1916 = vmatpush1.bf16.msra.mxu0 %v1103
  %1917 = vmatprep.subr.bf16.mxu0 %v1106
  %1918 = vmatpush1.bf16.msra.mxu0 %v1105
  %1919 = vmatprep.subr.bf16.mxu0 %v1108
  %1920 = vmatpush1.bf16.msra.mxu0 %v1107
  %1921 = vmatprep.subr.bf16.mxu0 %v1110
  %1922 = vmatpush1.bf16.msra.mxu0 %v1109
  %1923 = vmatprep.subr.bf16.mxu0 %v1112
  %1924 = vmatpush1.bf16.msra.mxu0 %v1111
  %1925 = vmatprep.subr.bf16.mxu0 %v1114
  %1926 = vmatpush1.bf16.msra.mxu0 %v1113
  %1927 = vmatprep.subr.bf16.mxu0 %v1116
  %1928 = vmatpush1.bf16.msra.mxu0 %v1115
  %1929 = vmatprep.subr.bf16.mxu0 %v1118
  %1930 = vmatpush1.bf16.msra.mxu0 %v1117
  %1931 = vmatprep.subr.bf16.mxu0 %v1120
  %1932 = vmatpush1.bf16.msra.mxu0 %v1119
  %1933 = vmatprep.subr.bf16.mxu0 %v1122
  %1934 = vmatpush1.bf16.msra.mxu0 %v1121
  %1935 = vmatprep.mubr.bf16.mxu0 %v1839
  %1936 = vmatmul.mubr.bf16.gmra.mrb[0].mxu0 %v1829
  %v1937 = vpop.f32.mrb[0].mxu0
  %v1938 = vadd.f32 %v1885, %v1937
  %v1939 = vpop.f32.mrb[0].mxu0
  %v1940 = vadd.f32 %v1887, %v1939
  %v1941 = vpop.f32.mrb[0].mxu0
  %v1942 = vadd.f32 %v1889, %v1941
  %v1943 = vpop.f32.mrb[0].mxu0
  %v1944 = vadd.f32 %v1891, %v1943
  %1945 = vmatprep.mubr.bf16.mxu0 %v1842
  %1946 = vmatmul.mubr.bf16.gmra.mrb[0].mxu0 %v1832
  %v1947 = vpop.f32.mrb[0].mxu0
  %v1948 = vadd.f32 %v1895, %v1947
  %v1949 = vpop.f32.mrb[0].mxu0
  %v1950 = vadd.f32 %v1897, %v1949
  %v1951 = vpop.f32.mrb[0].mxu0
  %v1952 = vadd.f32 %v1899, %v1951
  %v1953 = vpop.f32.mrb[0].mxu0
  %v1954 = vadd.f32 %v1901, %v1953
  %1955 = vdwg.mxu0
  %1956 = vmatprep.subr.bf16.mxu0 %v1124
  %1957 = vmatpush1.bf16.msra.mxu0 %v1123
  %1958 = vmatprep.subr.bf16.mxu0 %v1126
  %1959 = vmatpush1.bf16.msra.mxu0 %v1125
  %1960 = vmatprep.subr.bf16.mxu0 %v1128
  %1961 = vmatpush1.bf16.msra.mxu0 %v1127
  %1962 = vmatprep.subr.bf16.mxu0 %v1130
  %1963 = vmatpush1.bf16.msra.mxu0 %v1129
  %1964 = vmatprep.subr.bf16.mxu0 %v1132
  %1965 = vmatpush1.bf16.msra.mxu0 %v1131
  %1966 = vmatprep.subr.bf16.mxu0 %v1134
  %1967 = vmatpush1.bf16.msra.mxu0 %v1133
  %1968 = vmatprep.subr.bf16.mxu0 %v1136
  %1969 = vmatpush1.bf16.msra.mxu0 %v1135
  %1970 = vmatprep.subr.bf16.mxu0 %v1138
  %1971 = vmatpush1.bf16.msra.mxu0 %v1137
  %1972 = vmatprep.subr.bf16.mxu0 0
  %1973 = vmatpush1.bf16.msra.mxu0 0
  %1974 = vmatprep.subr.bf16.mxu0 0
  %1975 = vmatpush1.bf16.msra.mxu0 0
  %1976 = vmatprep.subr.bf16.mxu0 0
  %1977 = vmatpush1.bf16.msra.mxu0 0
  %1978 = vmatprep.subr.bf16.mxu0 0
  %1979 = vmatpush1.bf16.msra.mxu0 0
  %1980 = vmatprep.subr.bf16.mxu0 0
  %1981 = vmatpush1.bf16.msra.mxu0 0
  %1982 = vmatprep.subr.bf16.mxu0 0
  %1983 = vmatpush1.bf16.msra.mxu0 0
  %1984 = vmatprep.subr.bf16.mxu0 0
  %1985 = vmatpush1.bf16.msra.mxu0 0
  %1986 = vmatprep.subr.bf16.mxu0 0
  %1987 = vmatpush1.bf16.msra.mxu0 0
  %1988 = vmatprep.mubr.bf16.mxu0 0
  %1989 = vmatmul.mubr.bf16.gmra.mrb[0].mxu0 %v1845
  %v1990 = vpop.f32.mrb[0].mxu0
  %v1991 = vadd.f32 %v1938, %v1990
  %v1992 = vpop.f32.mrb[0].mxu0
  %v1993 = vadd.f32 %v1940, %v1992
  %v1994 = vpop.f32.mrb[0].mxu0
  %v1995 = vadd.f32 %v1942, %v1994
  %v1996 = vpop.f32.mrb[0].mxu0
  %v1997 = vadd.f32 %v1944, %v1996
  %1998 = vmatprep.mubr.bf16.mxu0 0
  %1999 = vmatmul.mubr.bf16.gmra.mrb[0].mxu0 %v1848
  %v2000 = vpop.f32.mrb[0].mxu0
  %v2001 = vadd.f32 %v1948, %v2000
  %v2002 = vpop.f32.mrb[0].mxu0
  %v2003 = vadd.f32 %v1950, %v2002
  %v2004 = vpop.f32.mrb[0].mxu0
  %v2005 = vadd.f32 %v1952, %v2004
  %v2006 = vpop.f32.mrb[0].mxu0
  %v2007 = vadd.f32 %v1954, %v2006
  %2008 = vdwg.mxu0
  %v2009 = vsel %vm1381, %v1991, -1e+30
  %v2010 = vsel %vm1381, %v1993, -1e+30
  %v2011 = vsel %vm1382, %v1995, -1e+30
  %v2012 = vsel %vm1382, %v1997, -1e+30
  %v2013 = vsel %vm1383, %v2001, -1e+30
  %v2014 = vsel %vm1383, %v2003, -1e+30
  %v2015 = vsel %vm1384, %v2005, -1e+30
  %v2016 = vsel %vm1384, %v2007, -1e+30
  %v2017 = vmax.f32 %v2009, %v2013
  %v2018 = vmax.f32 %v2011, %v2015
  %v2019 = vmax.f32 %v2017, %v2018
  %v2020 = vrot.slane %v2019, 4
  %v2021 = vmax.f32 %v2019, %v2020
  %v2022 = vrot.slane %v2021, 2
  %v2023 = vmax.f32 %v2021, %v2022
  %v2024 = vrot.slane %v2023, 1
  %v2025 = vmax.f32 %v2023, %v2024
  %v2026 = vsel %vm385, %v2010, -inf
  %v2027 = vsel %vm385, %v2012, -inf
  %v2028 = vsel %vm385, %v2014, -inf
  %v2029 = vmax.f32 %v2026, %v2028
  %v2030 = vsel %vm385, %v2016, -inf
  %v2031 = vmax.f32 %v2027, %v2030
  %v2032 = vmax.f32 %v2029, %v2031
  %v2033 = vrot.slane %v2032, 4
  %v2034 = vmax.f32 %v2032, %v2033
  %v2035 = vrot.slane %v2034, 2
  %v2036 = vmax.f32 %v2034, %v2035
  %v2037 = vrot.slane %v2036, 1
  %v2038 = vmax.f32 %v2036, %v2037
  %vm2039 = vcmask 1040384
  %v2040 = vsel %vm2039, %v1401, %v2025
  %v2041 = vsel %vm2039, %v1414, %v2038
  %v2044 = vcombine.low %v2040, %v2041
  %v2046 = vunpack.c.l.s4 1983009808
  %v2047 = vunpack.c.0.s8 %v2046
  %v2048 = vlaneseq
  %v2049 = vshrl.u32 %v2048, 7
  %v2050 = vsub.s32 %v2047, %v2049
  %v2051 = vrot.slane %v2044, %v2050
  %vm2053 = vcmask 1041408
  %vm2054 = vcmask 257026
  %vm2055 = vmor %vm2054, %vm2053
  %2056 = vst.msk [vmem:[%s6] sm:$0xf] %vm2055, %v2051
  // Predicated region
  $region26: #{cnn_forward.3} parent=0 // pred_check
    _
  $region27: #{cnn_forward.3} parent=0 // pred_check_branch
    %2058 = sbr.rel (0) target = $region29
  $region28: #{cnn_forward.3} parent=0 // pred_region
    _
  $region29: #{cnn_forward.3} parent=0 // pred_fallthru
    _
  // Predicated region
  $region30: #{cnn_forward.3} parent=0 // pred_check
    _
  $region31: #{cnn_forward.3} parent=0 // pred_check_branch
    %2060 = sbr.rel (0) target = $region33
  $region32: #{cnn_forward.3} parent=0 // pred_region
    _
  $region33: #{cnn_forward.3} parent=0 // pred_fallthru
    _

// kernel: cnn_forward.2
$region0: #{cnn_forward.2}
  #allocation0 [shape = 'u32[]', space=smem, size = 0x4, offset = 0x4, fixed_abs, tag = 'smem constant byte address 0x4 - core index']
  #allocation1 [shape = 'u32[144,128]{1,0:T(1,128)}', space=vmem, size = 0x12000, scoped, tag = 'internal scratch']
  %s0 = inlined_call_operand.vmem [shape: f32[2,64,64], index: 0, kind: input, shape index: {}]
  %s1 = inlined_call_operand.vmem [shape: bf16[256,40], index: 1, kind: input, shape index: {}]
  %s2 = inlined_call_operand.vmem [shape: f32[1,40], index: 2, kind: input, shape index: {}]
  %s3 = inlined_call_operand.vmem [shape: bf16[320,80], index: 3, kind: input, shape index: {}]
  %s4 = inlined_call_operand.vmem [shape: f32[1,80], index: 4, kind: input, shape index: {}]
  %s5 = inlined_call_operand.vmem [shape: bf16[960,160], index: 5, kind: input, shape index: {}]
  %s6 = inlined_call_operand.vmem [shape: f32[2,160], index: 6, kind: output, shape index: {}]
  %s7 = sld [smem:[#allocation0]]
  $region34: #{cnn_forward.2} parent=0
    _
  %s9 = ssub.s32 1, %s7
  %s10 = scalar_select 0, %s9, %s7
  // Predicated region
  $region2: #{cnn_forward.2} parent=0 // pred_check
    _
  $region3: #{cnn_forward.2} parent=0 // pred_check_branch
    %12 = sbr.rel (0) target = $region5
  $region4: #{cnn_forward.2} parent=0 // pred_region
    _
  $region5: #{cnn_forward.2} parent=0 // pred_fallthru
    _
  // Predicated region
  $region6: #{cnn_forward.2} parent=0 // pred_check
    _
  $region7: #{cnn_forward.2} parent=0 // pred_check_branch
    %14 = sbr.rel (0) target = $region9
  $region8: #{cnn_forward.2} parent=0 // pred_region
    _
  $region9: #{cnn_forward.2} parent=0 // pred_fallthru
    _
  // Predicated region
  $region10: #{cnn_forward.2} parent=0 // pred_check
    _
  $region11: #{cnn_forward.2} parent=0 // pred_check_branch
    %16 = sbr.rel (0) target = $region13
  $region12: #{cnn_forward.2} parent=0 // pred_region
    _
  $region13: #{cnn_forward.2} parent=0 // pred_fallthru
    _
  // Predicated region
  $region14: #{cnn_forward.2} parent=0 // pred_check
    _
  $region15: #{cnn_forward.2} parent=0 // pred_check_branch
    %18 = sbr.rel (0) target = $region17
  $region16: #{cnn_forward.2} parent=0 // pred_region
    _
  $region17: #{cnn_forward.2} parent=0 // pred_fallthru
    _
  // Predicated region
  $region18: #{cnn_forward.2} parent=0 // pred_check
    _
  $region19: #{cnn_forward.2} parent=0 // pred_check_branch
    %20 = sbr.rel (0) target = $region21
  $region20: #{cnn_forward.2} parent=0 // pred_region
    _
  $region21: #{cnn_forward.2} parent=0 // pred_fallthru
    _
  // Predicated region
  $region22: #{cnn_forward.2} parent=0 // pred_check
    _
  $region23: #{cnn_forward.2} parent=0 // pred_check_branch
    %22 = sbr.rel (0) target = $region25
  $region24: #{cnn_forward.2} parent=0 // pred_region
    _
  $region25: #{cnn_forward.2} parent=0 // pred_fallthru
    _
  %v24 = vld [vmem:[%s0] sm:$0xff]
  %v25 = vld [vmem:[%s0 + $0x8] sm:$0xff]
  %v26 = vld [vmem:[%s0 + $0x10] sm:$0xff]
  %v27 = vld [vmem:[%s0 + $0x18] sm:$0xff]
  %v28 = vld [vmem:[%s0 + $0x20] sm:$0xff]
  %v29 = vld [vmem:[%s0 + $0x28] sm:$0xff]
  %v30 = vld [vmem:[%s0 + $0x30] sm:$0xff]
  %v31 = vld [vmem:[%s0 + $0x38] sm:$0xff]
  %v32 = vpack.c.bf16 %v25, %v24
  %v33 = vpack.c.bf16 %v27, %v26
  %v34 = vpack.c.bf16 %v29, %v28
  %v35 = vpack.c.bf16 %v31, %v30
  %v36 = vrot.slane %v24, 1
  %v37 = vrot.slane %v25, 1
  %v38 = vrot.slane %v26, 1
  %v39 = vrot.slane %v27, 1
  %v40 = vrot.slane %v28, 1
  %v41 = vrot.slane %v29, 1
  %v42 = vrot.slane %v30, 1
  %v43 = vrot.slane %v31, 1
  %v44 = vlaneseq
  %v45 = vshrl.u32 %v44, 7
  %vm46 = vcmp.lt.s32.totalorder %v45, 7
  %v47 = vsel %vm46, %v42, %v43
  %v48 = vsel %vm46, %v41, %v42
  %v49 = vsel %vm46, %v40, %v41
  %v50 = vsel %vm46, %v39, %v40
  %v51 = vsel %vm46, %v38, %v39
  %v52 = vsel %vm46, %v37, %v38
  %v53 = vsel %vm46, %v36, %v37
  %v54 = vsel %vm46, %v43, %v36
  %v55 = vpack.c.bf16 %v52, %v53
  %v56 = vpack.c.bf16 %v50, %v51
  %v57 = vpack.c.bf16 %v48, %v49
  %v58 = vpack.c.bf16 %v54, %v47
  %v59 = vrot.slane %v24, 2
  %v60 = vrot.slane %v25, 2
  %v61 = vrot.slane %v26, 2
  %v62 = vrot.slane %v27, 2
  %v63 = vrot.slane %v28, 2
  %v64 = vrot.slane %v29, 2
  %v65 = vrot.slane %v30, 2
  %v66 = vrot.slane %v31, 2
  %vm67 = vcmp.lt.s32.totalorder %v45, 6
  %v68 = vsel %vm67, %v65, %v66
  %v69 = vsel %vm67, %v64, %v65
  %v70 = vsel %vm67, %v63, %v64
  %v71 = vsel %vm67, %v62, %v63
  %v72 = vsel %vm67, %v61, %v62
  %v73 = vsel %vm67, %v60, %v61
  %v74 = vsel %vm67, %v59, %v60
  %v75 = vsel %vm67, %v66, %v59
  %v76 = vpack.c.bf16 %v73, %v74
  %v77 = vpack.c.bf16 %v71, %v72
  %v78 = vpack.c.bf16 %v69, %v70
  %v79 = vpack.c.bf16 %v75, %v68
  %v80 = vrot.slane %v24, 3
  %v81 = vrot.slane %v25, 3
  %v82 = vrot.slane %v26, 3
  %v83 = vrot.slane %v27, 3
  %v84 = vrot.slane %v28, 3
  %v85 = vrot.slane %v29, 3
  %v86 = vrot.slane %v30, 3
  %v87 = vrot.slane %v31, 3
  %vm88 = vcmp.lt.s32.totalorder %v45, 5
  %v89 = vsel %vm88, %v86, %v87
  %v90 = vsel %vm88, %v85, %v86
  %v91 = vsel %vm88, %v84, %v85
  %v92 = vsel %vm88, %v83, %v84
  %v93 = vsel %vm88, %v82, %v83
  %v94 = vsel %vm88, %v81, %v82
  %v95 = vsel %vm88, %v80, %v81
  %v96 = vsel %vm88, %v87, %v80
  %v97 = vpack.c.bf16 %v94, %v95
  %v98 = vpack.c.bf16 %v92, %v93
  %v99 = vpack.c.bf16 %v90, %v91
  %v100 = vpack.c.bf16 %v96, %v89
  %105 = vrot.lane.b32.xlu0 %v55, 64
  %v106 = vpop.permute.xlu0 %105
  %107 = vrot.lane.b32.xlu0 %v56, 64
  %v108 = vpop.permute.xlu0 %107
  %109 = vrot.lane.b32.xlu0 %v57, 64
  %v110 = vpop.permute.xlu0 %109
  %111 = vrot.lane.b32.xlu0 %v58, 64
  %v112 = vpop.permute.xlu0 %111
  %117 = vrot.lane.b32.xlu0 %v97, 64
  %v118 = vpop.permute.xlu0 %117
  %119 = vrot.lane.b32.xlu0 %v98, 64
  %v120 = vpop.permute.xlu0 %119
  %121 = vrot.lane.b32.xlu0 %v99, 64
  %v122 = vpop.permute.xlu0 %121
  %123 = vrot.lane.b32.xlu0 %v100, 64
  %v124 = vpop.permute.xlu0 %123
  %vm125 = vcmask 523264
  %v128 = vsel %vm125, %v32, %v106
  %v132 = vsel %vm125, %v33, %v108
  %v136 = vsel %vm125, %v34, %v110
  %v140 = vsel %vm125, %v35, %v112
  %v144 = vsel %vm125, %v76, %v118
  %v148 = vsel %vm125, %v77, %v120
  %v152 = vsel %vm125, %v78, %v122
  %v156 = vsel %vm125, %v79, %v124
  %v158 = vld [vmem:[%s1] sm:$0xf]
  %v159 = vld [vmem:[%s1 + $0x4] sm:$0xf]
  %v160 = vld [vmem:[%s1 + $0x8] sm:$0xf]
  %v161 = vld [vmem:[%s1 + $0xc] sm:$0xf]
  %v162 = vld [vmem:[%s1 + $0x10] sm:$0xf]
  %v163 = vld [vmem:[%s1 + $0x14] sm:$0xf]
  %v164 = vld [vmem:[%s1 + $0x18] sm:$0xf]
  %v165 = vld [vmem:[%s1 + $0x1c] sm:$0xf]
  %v166 = vld [vmem:[%s1 + $0x20] sm:$0xf]
  %v167 = vld [vmem:[%s1 + $0x24] sm:$0xf]
  %v168 = vld [vmem:[%s1 + $0x28] sm:$0xf]
  %v169 = vld [vmem:[%s1 + $0x2c] sm:$0xf]
  %v170 = vld [vmem:[%s1 + $0x30] sm:$0xf]
  %v171 = vld [vmem:[%s1 + $0x34] sm:$0xf]
  %v172 = vld [vmem:[%s1 + $0x38] sm:$0xf]
  %v173 = vld [vmem:[%s1 + $0x3c] sm:$0xf]
  %v174 = vld [vmem:[%s1 + $0x40] sm:$0xf]
  %v175 = vld [vmem:[%s1 + $0x44] sm:$0xf]
  %v176 = vld [vmem:[%s1 + $0x48] sm:$0xf]
  %v177 = vld [vmem:[%s1 + $0x4c] sm:$0xf]
  %v178 = vld [vmem:[%s1 + $0x50] sm:$0xf]
  %v179 = vld [vmem:[%s1 + $0x54] sm:$0xf]
  %v180 = vld [vmem:[%s1 + $0x58] sm:$0xf]
  %v181 = vld [vmem:[%s1 + $0x5c] sm:$0xf]
  %v182 = vld [vmem:[%s1 + $0x60] sm:$0xf]
  %v183 = vld [vmem:[%s1 + $0x64] sm:$0xf]
  %v184 = vld [vmem:[%s1 + $0x68] sm:$0xf]
  %v185 = vld [vmem:[%s1 + $0x6c] sm:$0xf]
  %v186 = vld [vmem:[%s1 + $0x70] sm:$0xf]
  %v187 = vld [vmem:[%s1 + $0x74] sm:$0xf]
  %v188 = vld [vmem:[%s1 + $0x78] sm:$0xf]
  %v189 = vld [vmem:[%s1 + $0x7c] sm:$0xf]
  %v190 = vld [vmem:[%s2] sm:$0x1]
  %v192 = vlaneseq
  %v193 = vshrl.u32 %v192, 7
  %v194 = vsub.s32 0, %v193
  %v195 = vrot.slane %v190, %v194
  %v229 = vunpack.c.l.b16 %v158
  %v230 = vunpack.c.l.b16 %v159
  %v231 = vunpack.c.l.b16 %v160
  %v232 = vunpack.c.l.b16 %v161
  %v233 = vunpack.c.l.b16 %v162
  %v234 = vunpack.c.l.b16 %v163
  %v235 = vunpack.c.l.b16 %v164
  %v236 = vunpack.c.l.b16 %v165
  %v237 = vunpack.c.l.b16 %v166
  %v238 = vunpack.c.l.b16 %v167
  %v239 = vunpack.c.l.b16 %v168
  %v240 = vunpack.c.l.b16 %v169
  %v241 = vunpack.c.l.b16 %v170
  %v242 = vunpack.c.l.b16 %v171
  %v243 = vunpack.c.l.b16 %v172
  %v244 = vunpack.c.l.b16 %v173
  %v245 = vunpack.c.l.b16 %v174
  %v246 = vunpack.c.l.b16 %v175
  %v247 = vunpack.c.l.b16 %v176
  %v248 = vunpack.c.l.b16 %v177
  %v249 = vunpack.c.l.b16 %v178
  %v250 = vunpack.c.l.b16 %v179
  %v251 = vunpack.c.l.b16 %v180
  %v252 = vunpack.c.l.b16 %v181
  %v253 = vunpack.c.l.b16 %v182
  %v254 = vunpack.c.l.b16 %v183
  %v255 = vunpack.c.l.b16 %v184
  %v256 = vunpack.c.l.b16 %v185
  %v257 = vunpack.c.l.b16 %v186
  %v258 = vunpack.c.l.b16 %v187
  %v259 = vunpack.c.l.b16 %v188
  %v260 = vunpack.c.l.b16 %v189
  %v261 = vpack.c.b16 %v230, %v229
  %v262 = vpack.c.b16 %v232, %v231
  %v263 = vpack.c.b16 %v234, %v233
  %v264 = vpack.c.b16 %v236, %v235
  %v265 = vpack.c.b16 %v238, %v237
  %v266 = vpack.c.b16 %v240, %v239
  %v267 = vpack.c.b16 %v242, %v241
  %v268 = vpack.c.b16 %v244, %v243
  %v269 = vpack.c.b16 %v246, %v245
  %v270 = vpack.c.b16 %v248, %v247
  %v271 = vpack.c.b16 %v250, %v249
  %v272 = vpack.c.b16 %v252, %v251
  %v273 = vpack.c.b16 %v254, %v253
  %v274 = vpack.c.b16 %v256, %v255
  %v275 = vpack.c.b16 %v258, %v257
  %v276 = vpack.c.b16 %v260, %v259
  %293 = vmatprep.subr.bf16.mxu0 0
  %294 = vmatpush1.bf16.msra.mxu0 %v261
  %295 = vmatprep.subr.bf16.mxu0 0
  %296 = vmatpush1.bf16.msra.mxu0 %v262
  %297 = vmatprep.subr.bf16.mxu0 0
  %298 = vmatpush1.bf16.msra.mxu0 %v263
  %299 = vmatprep.subr.bf16.mxu0 0
  %300 = vmatpush1.bf16.msra.mxu0 %v264
  %301 = vmatprep.subr.bf16.mxu0 0
  %302 = vmatpush1.bf16.msra.mxu0 %v265
  %303 = vmatprep.subr.bf16.mxu0 0
  %304 = vmatpush1.bf16.msra.mxu0 %v266
  %305 = vmatprep.subr.bf16.mxu0 0
  %306 = vmatpush1.bf16.msra.mxu0 %v267
  %307 = vmatprep.subr.bf16.mxu0 0
  %308 = vmatpush1.bf16.msra.mxu0 %v268
  %309 = vmatprep.subr.bf16.mxu0 0
  %310 = vmatpush1.bf16.msra.mxu0 %v269
  %311 = vmatprep.subr.bf16.mxu0 0
  %312 = vmatpush1.bf16.msra.mxu0 %v270
  %313 = vmatprep.subr.bf16.mxu0 0
  %314 = vmatpush1.bf16.msra.mxu0 %v271
  %315 = vmatprep.subr.bf16.mxu0 0
  %316 = vmatpush1.bf16.msra.mxu0 %v272
  %317 = vmatprep.subr.bf16.mxu0 0
  %318 = vmatpush1.bf16.msra.mxu0 %v273
  %319 = vmatprep.subr.bf16.mxu0 0
  %320 = vmatpush1.bf16.msra.mxu0 %v274
  %321 = vmatprep.subr.bf16.mxu0 0
  %322 = vmatpush1.bf16.msra.mxu0 %v275
  %323 = vmatprep.subr.bf16.mxu0 0
  %324 = vmatpush1.bf16.msra.mxu0 %v276
  %325 = vmatprep.mubr.bf16.mxu0 %v144
  %326 = vmatmul.mubr.bf16.gmra.mrb[0].mxu0 %v128
  %v327 = vpop.f32.mrb[0].mxu0
  %v328 = vadd.f32 %v195, %v327
  %v329 = vpop.f32.mrb[0].mxu0
  %v330 = vpop.f32.mrb[0].mxu0
  %v331 = vadd.f32 %v195, %v330
  %v332 = vpop.f32.mrb[0].mxu0
  %333 = vmatprep.mubr.bf16.mxu0 %v148
  %334 = vmatmul.mubr.bf16.gmra.mrb[0].mxu0 %v132
  %v335 = vpop.f32.mrb[0].mxu0
  %v336 = vadd.f32 %v195, %v335
  %v337 = vpop.f32.mrb[0].mxu0
  %v338 = vpop.f32.mrb[0].mxu0
  %v339 = vadd.f32 %v195, %v338
  %v340 = vpop.f32.mrb[0].mxu0
  %341 = vmatprep.mubr.bf16.mxu0 %v152
  %342 = vmatmul.mubr.bf16.gmra.mrb[0].mxu0 %v136
  %v343 = vpop.f32.mrb[0].mxu0
  %v344 = vadd.f32 %v195, %v343
  %v345 = vpop.f32.mrb[0].mxu0
  %v346 = vpop.f32.mrb[0].mxu0
  %v347 = vadd.f32 %v195, %v346
  %v348 = vpop.f32.mrb[0].mxu0
  %349 = vmatprep.mubr.bf16.mxu0 %v156
  %350 = vmatmul.mubr.bf16.gmra.mrb[0].mxu0 %v140
  %v351 = vpop.f32.mrb[0].mxu0
  %v352 = vadd.f32 %v195, %v351
  %v353 = vpop.f32.mrb[0].mxu0
  %v354 = vpop.f32.mrb[0].mxu0
  %v355 = vadd.f32 %v195, %v354
  %v356 = vpop.f32.mrb[0].mxu0
  %357 = vdwg.mxu0
  %v358 = vmax.f32 %v328, 0.0
  %v359 = vmax.f32 %v331, 0.0
  %v360 = vmax.f32 %v336, 0.0
  %v361 = vmax.f32 %v339, 0.0
  %v362 = vmax.f32 %v344, 0.0
  %v363 = vmax.f32 %v347, 0.0
  %v364 = vmax.f32 %v352, 0.0
  %v365 = vmax.f32 %v355, 0.0
  %v366 = vpack.c.bf16 %v359, %v358
  %v367 = vpack.c.bf16 %v361, %v360
  %v368 = vpack.c.bf16 %v363, %v362
  %v369 = vpack.c.bf16 %v365, %v364
  %v370 = vrot.slane %v358, 1
  %v371 = vrot.slane %v359, 1
  %v372 = vrot.slane %v360, 1
  %v373 = vrot.slane %v361, 1
  %v374 = vrot.slane %v362, 1
  %v375 = vrot.slane %v363, 1
  %v376 = vrot.slane %v364, 1
  %v377 = vrot.slane %v365, 1
  %v378 = vsel %vm46, %v376, %v377
  %v379 = vsel %vm46, %v375, %v376
  %v380 = vsel %vm46, %v374, %v375
  %v381 = vsel %vm46, %v373, %v374
  %v382 = vsel %vm46, %v372, %v373
  %v383 = vsel %vm46, %v371, %v372
  %v384 = vsel %vm46, %v370, %v371
  %v385 = vsel %vm46, %v377, %v370
  %v386 = vpack.c.bf16 %v383, %v384
  %v387 = vpack.c.bf16 %v381, %v382
  %v388 = vpack.c.bf16 %v379, %v380
  %v389 = vpack.c.bf16 %v385, %v378
  %v390 = vrot.slane %v358, 2
  %v391 = vrot.slane %v359, 2
  %v392 = vrot.slane %v360, 2
  %v393 = vrot.slane %v361, 2
  %v394 = vrot.slane %v362, 2
  %v395 = vrot.slane %v363, 2
  %v396 = vrot.slane %v364, 2
  %v397 = vrot.slane %v365, 2
  %v398 = vsel %vm67, %v396, %v397
  %v399 = vsel %vm67, %v395, %v396
  %v400 = vsel %vm67, %v394, %v395
  %v401 = vsel %vm67, %v393, %v394
  %v402 = vsel %vm67, %v392, %v393
  %v403 = vsel %vm67, %v391, %v392
  %v404 = vsel %vm67, %v390, %v391
  %v405 = vsel %vm67, %v397, %v390
  %v406 = vpack.c.bf16 %v403, %v404
  %v407 = vpack.c.bf16 %v401, %v402
  %v408 = vpack.c.bf16 %v399, %v400
  %v409 = vpack.c.bf16 %v405, %v398
  %v410 = vrot.slane %v358, 3
  %v411 = vrot.slane %v359, 3
  %v412 = vrot.slane %v360, 3
  %v413 = vrot.slane %v361, 3
  %v414 = vrot.slane %v362, 3
  %v415 = vrot.slane %v363, 3
  %v416 = vrot.slane %v364, 3
  %v417 = vrot.slane %v365, 3
  %v418 = vsel %vm88, %v416, %v417
  %v419 = vsel %vm88, %v415, %v416
  %v420 = vsel %vm88, %v414, %v415
  %v421 = vsel %vm88, %v413, %v414
  %v422 = vsel %vm88, %v412, %v413
  %v423 = vsel %vm88, %v411, %v412
  %v424 = vsel %vm88, %v410, %v411
  %v425 = vsel %vm88, %v417, %v410
  %v426 = vpack.c.bf16 %v423, %v424
  %v427 = vpack.c.bf16 %v421, %v422
  %v428 = vpack.c.bf16 %v419, %v420
  %v429 = vpack.c.bf16 %v425, %v418
  %v430 = vrot.slane %v358, 4
  %v431 = vrot.slane %v359, 4
  %v432 = vrot.slane %v360, 4
  %v433 = vrot.slane %v361, 4
  %v434 = vrot.slane %v362, 4
  %v435 = vrot.slane %v363, 4
  %v436 = vrot.slane %v364, 4
  %v437 = vrot.slane %v365, 4
  %vm438 = vcmp.lt.s32.totalorder %v45, 4
  %v439 = vsel %vm438, %v436, %v437
  %v440 = vsel %vm438, %v435, %v436
  %v441 = vsel %vm438, %v434, %v435
  %v442 = vsel %vm438, %v433, %v434
  %v443 = vsel %vm438, %v432, %v433
  %v444 = vsel %vm438, %v431, %v432
  %v445 = vsel %vm438, %v430, %v431
  %v446 = vsel %vm438, %v437, %v430
  %v447 = vpack.c.bf16 %v444, %v445
  %v448 = vpack.c.bf16 %v442, %v443
  %v449 = vpack.c.bf16 %v440, %v441
  %v450 = vpack.c.bf16 %v446, %v439
  %v451 = vrot.slane %v358, 5
  %v452 = vrot.slane %v359, 5
  %v453 = vrot.slane %v360, 5
  %v454 = vrot.slane %v361, 5
  %v455 = vrot.slane %v362, 5
  %v456 = vrot.slane %v363, 5
  %v457 = vrot.slane %v364, 5
  %v458 = vrot.slane %v365, 5
  %vm459 = vcmp.lt.s32.totalorder %v45, 3
  %v460 = vsel %vm459, %v457, %v458
  %v461 = vsel %vm459, %v456, %v457
  %v462 = vsel %vm459, %v455, %v456
  %v463 = vsel %vm459, %v454, %v455
  %v464 = vsel %vm459, %v453, %v454
  %v465 = vsel %vm459, %v452, %v453
  %v466 = vsel %vm459, %v451, %v452
  %v467 = vsel %vm459, %v458, %v451
  %v468 = vpack.c.bf16 %v465, %v466
  %v469 = vpack.c.bf16 %v463, %v464
  %v470 = vpack.c.bf16 %v461, %v462
  %v471 = vpack.c.bf16 %v467, %v460
  %v472 = vrot.slane %v358, 6
  %v473 = vrot.slane %v359, 6
  %v474 = vrot.slane %v360, 6
  %v475 = vrot.slane %v361, 6
  %v476 = vrot.slane %v362, 6
  %v477 = vrot.slane %v363, 6
  %v478 = vrot.slane %v364, 6
  %v479 = vrot.slane %v365, 6
  %vm480 = vcmp.lt.s32.totalorder %v45, 2
  %v481 = vsel %vm480, %v478, %v479
  %v482 = vsel %vm480, %v477, %v478
  %v483 = vsel %vm480, %v476, %v477
  %v484 = vsel %vm480, %v475, %v476
  %v485 = vsel %vm480, %v474, %v475
  %v486 = vsel %vm480, %v473, %v474
  %v487 = vsel %vm480, %v472, %v473
  %v488 = vsel %vm480, %v479, %v472
  %v489 = vpack.c.bf16 %v486, %v487
  %v490 = vpack.c.bf16 %v484, %v485
  %v491 = vpack.c.bf16 %v482, %v483
  %v492 = vpack.c.bf16 %v488, %v481
  %v493 = vrot.slane %v358, 7
  %v494 = vrot.slane %v359, 7
  %v495 = vrot.slane %v360, 7
  %v496 = vrot.slane %v361, 7
  %v497 = vrot.slane %v362, 7
  %v498 = vrot.slane %v363, 7
  %v499 = vrot.slane %v364, 7
  %v500 = vrot.slane %v365, 7
  %vm501 = vcmp.lt.s32.totalorder %v45, 1
  %v502 = vsel %vm501, %v499, %v500
  %v503 = vsel %vm501, %v498, %v499
  %v504 = vsel %vm501, %v497, %v498
  %v505 = vsel %vm501, %v496, %v497
  %v506 = vsel %vm501, %v495, %v496
  %v507 = vsel %vm501, %v494, %v495
  %v508 = vsel %vm501, %v493, %v494
  %v509 = vsel %vm501, %v500, %v493
  %v510 = vpack.c.bf16 %v507, %v508
  %v511 = vpack.c.bf16 %v505, %v506
  %v512 = vpack.c.bf16 %v503, %v504
  %v513 = vpack.c.bf16 %v509, %v502
  %518 = vrot.lane.b32.xlu0 %v386, 40
  %v519 = vpop.permute.xlu0 %518
  %520 = vrot.lane.b32.xlu0 %v387, 40
  %v521 = vpop.permute.xlu0 %520
  %522 = vrot.lane.b32.xlu0 %v388, 40
  %v523 = vpop.permute.xlu0 %522
  %524 = vrot.lane.b32.xlu0 %v389, 40
  %v525 = vpop.permute.xlu0 %524
  %530 = vrot.lane.b32.xlu0 %v406, 80
  %v531 = vpop.permute.xlu0 %530
  %532 = vrot.lane.b32.xlu0 %v407, 80
  %v533 = vpop.permute.xlu0 %532
  %534 = vrot.lane.b32.xlu0 %v408, 80
  %v535 = vpop.permute.xlu0 %534
  %536 = vrot.lane.b32.xlu0 %v409, 80
  %v537 = vpop.permute.xlu0 %536
  %542 = vrot.lane.b32.xlu0 %v426, 120
  %v543 = vpop.permute.xlu0 %542
  %544 = vrot.lane.b32.xlu0 %v427, 120
  %v545 = vpop.permute.xlu0 %544
  %546 = vrot.lane.b32.xlu0 %v428, 120
  %v547 = vpop.permute.xlu0 %546
  %548 = vrot.lane.b32.xlu0 %v429, 120
  %v549 = vpop.permute.xlu0 %548
  %554 = vrot.lane.b32.xlu0 %v447, 32
  %v555 = vpop.permute.xlu0 %554
  %556 = vrot.lane.b32.xlu0 %v448, 32
  %v557 = vpop.permute.xlu0 %556
  %558 = vrot.lane.b32.xlu0 %v449, 32
  %v559 = vpop.permute.xlu0 %558
  %560 = vrot.lane.b32.xlu0 %v450, 32
  %v561 = vpop.permute.xlu0 %560
  %566 = vrot.lane.b32.xlu0 %v468, 72
  %v567 = vpop.permute.xlu0 %566
  %568 = vrot.lane.b32.xlu0 %v469, 72
  %v569 = vpop.permute.xlu0 %568
  %570 = vrot.lane.b32.xlu0 %v470, 72
  %v571 = vpop.permute.xlu0 %570
  %572 = vrot.lane.b32.xlu0 %v471, 72
  %v573 = vpop.permute.xlu0 %572
  %578 = vrot.lane.b32.xlu0 %v489, 112
  %v579 = vpop.permute.xlu0 %578
  %580 = vrot.lane.b32.xlu0 %v490, 112
  %v581 = vpop.permute.xlu0 %580
  %582 = vrot.lane.b32.xlu0 %v491, 112
  %v583 = vpop.permute.xlu0 %582
  %584 = vrot.lane.b32.xlu0 %v492, 112
  %v585 = vpop.permute.xlu0 %584
  %590 = vrot.lane.b32.xlu0 %v510, 24
  %v591 = vpop.permute.xlu0 %590
  %592 = vrot.lane.b32.xlu0 %v511, 24
  %v593 = vpop.permute.xlu0 %592
  %594 = vrot.lane.b32.xlu0 %v512, 24
  %v595 = vpop.permute.xlu0 %594
  %596 = vrot.lane.b32.xlu0 %v513, 24
  %v597 = vpop.permute.xlu0 %596
  %vm598 = vcmask 326656
  %v601 = vsel %vm598, %v366, %v519
  %v604 = vsel %vm598, %v367, %v521
  %v607 = vsel %vm598, %v368, %v523
  %v610 = vsel %vm598, %v369, %v525
  %vm611 = vcmask 654336
  %v613 = vsel %vm611, %v601, %v531
  %v615 = vsel %vm611, %v604, %v533
  %v617 = vsel %vm611, %v607, %v535
  %v619 = vsel %vm611, %v610, %v537
  %vm620 = vcmask 982016
  %v622 = vsel %vm620, %v613, %v543
  %v625 = vsel %vm620, %v615, %v545
  %v628 = vsel %vm620, %v617, %v547
  %v631 = vsel %vm620, %v619, %v549
  %vm633 = vcmask 261120
  %v635 = vsel %vm633, %v543, %v555
  %v637 = vsel %vm633, %v545, %v557
  %v639 = vsel %vm633, %v547, %v559
  %v641 = vsel %vm633, %v549, %v561
  %vm642 = vcmask 588800
  %v644 = vsel %vm642, %v635, %v567
  %v646 = vsel %vm642, %v637, %v569
  %v648 = vsel %vm642, %v639, %v571
  %v650 = vsel %vm642, %v641, %v573
  %vm651 = vcmask 916480
  %v653 = vsel %vm651, %v644, %v579
  %v656 = vsel %vm651, %v646, %v581
  %v659 = vsel %vm651, %v648, %v583
  %v662 = vsel %vm651, %v650, %v585
  %vm664 = vcmask 195584
  %v666 = vsel %vm664, %v579, %v591
  %v668 = vsel %vm664, %v581, %v593
  %v670 = vsel %vm664, %v583, %v595
  %v672 = vsel %vm664, %v585, %v597
  %v673 = vld [vmem:[%s3] sm:$0xf]
  %v674 = vld [vmem:[%s3 + $0x4] sm:$0xf]
  %v675 = vld [vmem:[%s3 + $0x8] sm:$0xf]
  %v676 = vld [vmem:[%s3 + $0xc] sm:$0xf]
  %v677 = vld [vmem:[%s3 + $0x10] sm:$0xf]
  %v678 = vld [vmem:[%s3 + $0x14] sm:$0xf]
  %v679 = vld [vmem:[%s3 + $0x18] sm:$0xf]
  %v680 = vld [vmem:[%s3 + $0x1c] sm:$0xf]
  %v681 = vld [vmem:[%s3 + $0x20] sm:$0xf]
  %v682 = vld [vmem:[%s3 + $0x24] sm:$0xf]
  %v683 = vld [vmem:[%s3 + $0x28] sm:$0xf]
  %v684 = vld [vmem:[%s3 + $0x2c] sm:$0xf]
  %v685 = vld [vmem:[%s3 + $0x30] sm:$0xf]
  %v686 = vld [vmem:[%s3 + $0x34] sm:$0xf]
  %v687 = vld [vmem:[%s3 + $0x38] sm:$0xf]
  %v688 = vld [vmem:[%s3 + $0x3c] sm:$0xf]
  %v689 = vld [vmem:[%s3 + $0x40] sm:$0xf]
  %v690 = vld [vmem:[%s3 + $0x44] sm:$0xf]
  %v691 = vld [vmem:[%s3 + $0x48] sm:$0xf]
  %v692 = vld [vmem:[%s3 + $0x4c] sm:$0xf]
  %v693 = vld [vmem:[%s3 + $0x50] sm:$0xf]
  %v694 = vld [vmem:[%s3 + $0x54] sm:$0xf]
  %v695 = vld [vmem:[%s3 + $0x58] sm:$0xf]
  %v696 = vld [vmem:[%s3 + $0x5c] sm:$0xf]
  %v697 = vld [vmem:[%s3 + $0x60] sm:$0xf]
  %v698 = vld [vmem:[%s3 + $0x64] sm:$0xf]
  %v699 = vld [vmem:[%s3 + $0x68] sm:$0xf]
  %v700 = vld [vmem:[%s3 + $0x6c] sm:$0xf]
  %v701 = vld [vmem:[%s3 + $0x70] sm:$0xf]
  %v702 = vld [vmem:[%s3 + $0x74] sm:$0xf]
  %v703 = vld [vmem:[%s3 + $0x78] sm:$0xf]
  %v704 = vld [vmem:[%s3 + $0x7c] sm:$0xf]
  %v705 = vld [vmem:[%s3 + $0x80] sm:$0xf]
  %v706 = vld [vmem:[%s3 + $0x84] sm:$0xf]
  %v707 = vld [vmem:[%s3 + $0x88] sm:$0xf]
  %v708 = vld [vmem:[%s3 + $0x8c] sm:$0xf]
  %v709 = vld [vmem:[%s3 + $0x90] sm:$0xf]
  %v710 = vld [vmem:[%s3 + $0x94] sm:$0xf]
  %v711 = vld [vmem:[%s3 + $0x98] sm:$0xf]
  %v712 = vld [vmem:[%s3 + $0x9c] sm:$0xf]
  %v713 = vld [vmem:[%s4] sm:$0x1]
  %v715 = vlaneseq
  %v716 = vshrl.u32 %v715, 7
  %v717 = vsub.s32 0, %v716
  %v718 = vrot.slane %v713, %v717
  %v760 = vunpack.c.l.b16 %v673
  %v761 = vunpack.c.l.b16 %v674
  %v762 = vunpack.c.l.b16 %v675
  %v763 = vunpack.c.l.b16 %v676
  %v764 = vunpack.c.l.b16 %v677
  %v765 = vunpack.c.l.b16 %v678
  %v766 = vunpack.c.l.b16 %v679
  %v767 = vunpack.c.l.b16 %v680
  %v768 = vunpack.c.l.b16 %v681
  %v769 = vunpack.c.l.b16 %v682
  %v770 = vunpack.c.l.b16 %v683
  %v771 = vunpack.c.l.b16 %v684
  %v772 = vunpack.c.l.b16 %v685
  %v773 = vunpack.c.l.b16 %v686
  %v774 = vunpack.c.l.b16 %v687
  %v775 = vunpack.c.l.b16 %v688
  %v776 = vunpack.c.l.b16 %v689
  %v777 = vunpack.c.l.b16 %v690
  %v778 = vunpack.c.l.b16 %v691
  %v779 = vunpack.c.l.b16 %v692
  %v780 = vunpack.c.l.b16 %v693
  %v781 = vunpack.c.l.b16 %v694
  %v782 = vunpack.c.l.b16 %v695
  %v783 = vunpack.c.l.b16 %v696
  %v784 = vunpack.c.l.b16 %v697
  %v785 = vunpack.c.l.b16 %v698
  %v786 = vunpack.c.l.b16 %v699
  %v787 = vunpack.c.l.b16 %v700
  %v788 = vunpack.c.l.b16 %v701
  %v789 = vunpack.c.l.b16 %v702
  %v790 = vunpack.c.l.b16 %v703
  %v791 = vunpack.c.l.b16 %v704
  %v792 = vunpack.c.l.b16 %v705
  %v793 = vunpack.c.l.b16 %v706
  %v794 = vunpack.c.l.b16 %v707
  %v795 = vunpack.c.l.b16 %v708
  %v796 = vunpack.c.l.b16 %v709
  %v797 = vunpack.c.l.b16 %v710
  %v798 = vunpack.c.l.b16 %v711
  %v799 = vunpack.c.l.b16 %v712
  %v800 = vpack.c.b16 %v761, %v760
  %v801 = vpack.c.b16 %v763, %v762
  %v802 = vpack.c.b16 %v765, %v764
  %v803 = vpack.c.b16 %v767, %v766
  %v804 = vpack.c.b16 %v769, %v768
  %v805 = vpack.c.b16 %v771, %v770
  %v806 = vpack.c.b16 %v773, %v772
  %v807 = vpack.c.b16 %v775, %v774
  %v808 = vpack.c.b16 %v777, %v776
  %v809 = vpack.c.b16 %v779, %v778
  %v810 = vpack.c.b16 %v781, %v780
  %v811 = vpack.c.b16 %v783, %v782
  %v812 = vpack.c.b16 %v785, %v784
  %v813 = vpack.c.b16 %v787, %v786
  %v814 = vpack.c.b16 %v789, %v788
  %v815 = vpack.c.b16 %v791, %v790
  %v816 = vpack.c.b16 %v793, %v792
  %v817 = vpack.c.b16 %v795, %v794
  %v818 = vpack.c.b16 %v797, %v796
  %v819 = vpack.c.b16 %v799, %v798
  %v840 = vsel %vm125, %v666, 0
  %v842 = vsel %vm125, %v668, 0
  %v844 = vsel %vm125, %v670, 0
  %v846 = vsel %vm125, %v672, 0
  %848 = vmatprep.subr.bf16.mxu0 0
  %849 = vmatpush1.bf16.msra.mxu0 %v800
  %850 = vmatprep.subr.bf16.mxu0 0
  %851 = vmatpush1.bf16.msra.mxu0 %v801
  %852 = vmatprep.subr.bf16.mxu0 0
  %853 = vmatpush1.bf16.msra.mxu0 %v802
  %854 = vmatprep.subr.bf16.mxu0 0
  %855 = vmatpush1.bf16.msra.mxu0 %v803
  %856 = vmatprep.subr.bf16.mxu0 0
  %857 = vmatpush1.bf16.msra.mxu0 %v804
  %858 = vmatprep.subr.bf16.mxu0 0
  %859 = vmatpush1.bf16.msra.mxu0 %v805
  %860 = vmatprep.subr.bf16.mxu0 0
  %861 = vmatpush1.bf16.msra.mxu0 %v806
  %862 = vmatprep.subr.bf16.mxu0 0
  %863 = vmatpush1.bf16.msra.mxu0 %v807
  %864 = vmatprep.subr.bf16.mxu0 0
  %865 = vmatpush1.bf16.msra.mxu0 %v808
  %866 = vmatprep.subr.bf16.mxu0 0
  %867 = vmatpush1.bf16.msra.mxu0 %v809
  %868 = vmatprep.subr.bf16.mxu0 0
  %869 = vmatpush1.bf16.msra.mxu0 %v810
  %870 = vmatprep.subr.bf16.mxu0 0
  %871 = vmatpush1.bf16.msra.mxu0 %v811
  %872 = vmatprep.subr.bf16.mxu0 0
  %873 = vmatpush1.bf16.msra.mxu0 %v812
  %874 = vmatprep.subr.bf16.mxu0 0
  %875 = vmatpush1.bf16.msra.mxu0 %v813
  %876 = vmatprep.subr.bf16.mxu0 0
  %877 = vmatpush1.bf16.msra.mxu0 %v814
  %878 = vmatprep.subr.bf16.mxu0 0
  %879 = vmatpush1.bf16.msra.mxu0 %v815
  %880 = vmatprep.mubr.bf16.mxu0 %v653
  %881 = vmatmul.mubr.bf16.gmra.mrb[0].mxu0 %v622
  %v882 = vpop.f32.mrb[0].mxu0
  %v883 = vadd.f32 %v718, %v882
  %v884 = vpop.f32.mrb[0].mxu0
  %v885 = vpop.f32.mrb[0].mxu0
  %v886 = vadd.f32 %v718, %v885
  %v887 = vpop.f32.mrb[0].mxu0
  %888 = vmatprep.mubr.bf16.mxu0 %v656
  %889 = vmatmul.mubr.bf16.gmra.mrb[0].mxu0 %v625
  %v890 = vpop.f32.mrb[0].mxu0
  %v891 = vadd.f32 %v718, %v890
  %v892 = vpop.f32.mrb[0].mxu0
  %v893 = vpop.f32.mrb[0].mxu0
  %v894 = vadd.f32 %v718, %v893
  %v895 = vpop.f32.mrb[0].mxu0
  %896 = vmatprep.mubr.bf16.mxu0 %v659
  %897 = vmatmul.mubr.bf16.gmra.mrb[0].mxu0 %v628
  %v898 = vpop.f32.mrb[0].mxu0
  %v899 = vadd.f32 %v718, %v898
  %v900 = vpop.f32.mrb[0].mxu0
  %v901 = vpop.f32.mrb[0].mxu0
  %v902 = vadd.f32 %v718, %v901
  %v903 = vpop.f32.mrb[0].mxu0
  %904 = vmatprep.mubr.bf16.mxu0 %v662
  %905 = vmatmul.mubr.bf16.gmra.mrb[0].mxu0 %v631
  %v906 = vpop.f32.mrb[0].mxu0
  %v907 = vadd.f32 %v718, %v906
  %v908 = vpop.f32.mrb[0].mxu0
  %v909 = vpop.f32.mrb[0].mxu0
  %v910 = vadd.f32 %v718, %v909
  %v911 = vpop.f32.mrb[0].mxu0
  %912 = vdwg.mxu0
  %913 = vmatprep.subr.bf16.mxu0 0
  %914 = vmatpush1.bf16.msra.mxu0 %v816
  %915 = vmatprep.subr.bf16.mxu0 0
  %916 = vmatpush1.bf16.msra.mxu0 %v817
  %917 = vmatprep.subr.bf16.mxu0 0
  %918 = vmatpush1.bf16.msra.mxu0 %v818
  %919 = vmatprep.subr.bf16.mxu0 0
  %920 = vmatpush1.bf16.msra.mxu0 %v819
  %921 = vmatprep.subr.bf16.mxu0 0
  %922 = vmatpush1.bf16.msra.mxu0 0
  %923 = vmatprep.subr.bf16.mxu0 0
  %924 = vmatpush1.bf16.msra.mxu0 0
  %925 = vmatprep.subr.bf16.mxu0 0
  %926 = vmatpush1.bf16.msra.mxu0 0
  %927 = vmatprep.subr.bf16.mxu0 0
  %928 = vmatpush1.bf16.msra.mxu0 0
  %929 = vmatprep.subr.bf16.mxu0 0
  %930 = vmatpush1.bf16.msra.mxu0 0
  %931 = vmatprep.subr.bf16.mxu0 0
  %932 = vmatpush1.bf16.msra.mxu0 0
  %933 = vmatprep.subr.bf16.mxu0 0
  %934 = vmatpush1.bf16.msra.mxu0 0
  %935 = vmatprep.subr.bf16.mxu0 0
  %936 = vmatpush1.bf16.msra.mxu0 0
  %937 = vmatprep.subr.bf16.mxu0 0
  %938 = vmatpush1.bf16.msra.mxu0 0
  %939 = vmatprep.subr.bf16.mxu0 0
  %940 = vmatpush1.bf16.msra.mxu0 0
  %941 = vmatprep.subr.bf16.mxu0 0
  %942 = vmatpush1.bf16.msra.mxu0 0
  %943 = vmatprep.subr.bf16.mxu0 0
  %944 = vmatpush1.bf16.msra.mxu0 0
  %945 = vmatprep.mubr.bf16.mxu0 0
  %946 = vmatmul.mubr.bf16.gmra.mrb[0].mxu0 %v840
  %v947 = vpop.f32.mrb[0].mxu0
  %v948 = vadd.f32 %v883, %v947
  %v949 = vpop.f32.mrb[0].mxu0
  %v950 = vpop.f32.mrb[0].mxu0
  %v951 = vadd.f32 %v886, %v950
  %v952 = vpop.f32.mrb[0].mxu0
  %953 = vmatprep.mubr.bf16.mxu0 0
  %954 = vmatmul.mubr.bf16.gmra.mrb[0].mxu0 %v842
  %v955 = vpop.f32.mrb[0].mxu0
  %v956 = vadd.f32 %v891, %v955
  %v957 = vpop.f32.mrb[0].mxu0
  %v958 = vpop.f32.mrb[0].mxu0
  %v959 = vadd.f32 %v894, %v958
  %v960 = vpop.f32.mrb[0].mxu0
  %961 = vmatprep.mubr.bf16.mxu0 0
  %962 = vmatmul.mubr.bf16.gmra.mrb[0].mxu0 %v844
  %v963 = vpop.f32.mrb[0].mxu0
  %v964 = vadd.f32 %v899, %v963
  %v965 = vpop.f32.mrb[0].mxu0
  %v966 = vpop.f32.mrb[0].mxu0
  %v967 = vadd.f32 %v902, %v966
  %v968 = vpop.f32.mrb[0].mxu0
  %969 = vmatprep.mubr.bf16.mxu0 0
  %970 = vmatmul.mubr.bf16.gmra.mrb[0].mxu0 %v846
  %v971 = vpop.f32.mrb[0].mxu0
  %v972 = vadd.f32 %v907, %v971
  %v973 = vpop.f32.mrb[0].mxu0
  %v974 = vpop.f32.mrb[0].mxu0
  %v975 = vadd.f32 %v910, %v974
  %v976 = vpop.f32.mrb[0].mxu0
  %977 = vdwg.mxu0
  %v978 = vmax.f32 %v948, 0.0
  %v979 = vmax.f32 %v951, 0.0
  %v980 = vmax.f32 %v956, 0.0
  %v981 = vmax.f32 %v959, 0.0
  %v982 = vmax.f32 %v964, 0.0
  %v983 = vmax.f32 %v967, 0.0
  %v984 = vmax.f32 %v972, 0.0
  %v985 = vmax.f32 %v975, 0.0
  %v986 = vpack.c.bf16 %v979, %v978
  %v987 = vpack.c.bf16 %v981, %v980
  %v988 = vpack.c.bf16 %v983, %v982
  %v989 = vpack.c.bf16 %v985, %v984
  %v990 = vrot.slane %v978, 1
  %v991 = vrot.slane %v979, 1
  %v992 = vrot.slane %v980, 1
  %v993 = vrot.slane %v981, 1
  %v994 = vrot.slane %v982, 1
  %v995 = vrot.slane %v983, 1
  %v996 = vrot.slane %v984, 1
  %v997 = vrot.slane %v985, 1
  %v998 = vsel %vm46, %v996, %v997
  %v999 = vsel %vm46, %v995, %v996
  %v1000 = vsel %vm46, %v994, %v995
  %v1001 = vsel %vm46, %v993, %v994
  %v1002 = vsel %vm46, %v992, %v993
  %v1003 = vsel %vm46, %v991, %v992
  %v1004 = vsel %vm46, %v990, %v991
  %v1005 = vsel %vm46, %v997, %v990
  %v1006 = vpack.c.bf16 %v1003, %v1004
  %v1007 = vpack.c.bf16 %v1001, %v1002
  %v1008 = vpack.c.bf16 %v999, %v1000
  %v1009 = vpack.c.bf16 %v1005, %v998
  %v1010 = vrot.slane %v978, 2
  %v1011 = vrot.slane %v979, 2
  %v1012 = vrot.slane %v980, 2
  %v1013 = vrot.slane %v981, 2
  %v1014 = vrot.slane %v982, 2
  %v1015 = vrot.slane %v983, 2
  %v1016 = vrot.slane %v984, 2
  %v1017 = vrot.slane %v985, 2
  %v1018 = vsel %vm67, %v1016, %v1017
  %v1019 = vsel %vm67, %v1015, %v1016
  %v1020 = vsel %vm67, %v1014, %v1015
  %v1021 = vsel %vm67, %v1013, %v1014
  %v1022 = vsel %vm67, %v1012, %v1013
  %v1023 = vsel %vm67, %v1011, %v1012
  %v1024 = vsel %vm67, %v1010, %v1011
  %v1025 = vsel %vm67, %v1017, %v1010
  %v1026 = vpack.c.bf16 %v1023, %v1024
  %v1027 = vpack.c.bf16 %v1021, %v1022
  %v1028 = vpack.c.bf16 %v1019, %v1020
  %v1029 = vpack.c.bf16 %v1025, %v1018
  %v1030 = vrot.slane %v978, 3
  %v1031 = vrot.slane %v979, 3
  %v1032 = vrot.slane %v980, 3
  %v1033 = vrot.slane %v981, 3
  %v1034 = vrot.slane %v982, 3
  %v1035 = vrot.slane %v983, 3
  %v1036 = vrot.slane %v984, 3
  %v1037 = vrot.slane %v985, 3
  %v1038 = vsel %vm88, %v1036, %v1037
  %v1039 = vsel %vm88, %v1035, %v1036
  %v1040 = vsel %vm88, %v1034, %v1035
  %v1041 = vsel %vm88, %v1033, %v1034
  %v1042 = vsel %vm88, %v1032, %v1033
  %v1043 = vsel %vm88, %v1031, %v1032
  %v1044 = vsel %vm88, %v1030, %v1031
  %v1045 = vsel %vm88, %v1037, %v1030
  %v1046 = vpack.c.bf16 %v1043, %v1044
  %v1047 = vpack.c.bf16 %v1041, %v1042
  %v1048 = vpack.c.bf16 %v1039, %v1040
  %v1049 = vpack.c.bf16 %v1045, %v1038
  %v1050 = vrot.slane %v978, 4
  %v1051 = vrot.slane %v979, 4
  %v1052 = vrot.slane %v980, 4
  %v1053 = vrot.slane %v981, 4
  %v1054 = vrot.slane %v982, 4
  %v1055 = vrot.slane %v983, 4
  %v1056 = vrot.slane %v984, 4
  %v1057 = vrot.slane %v985, 4
  %v1058 = vsel %vm438, %v1056, %v1057
  %v1059 = vsel %vm438, %v1055, %v1056
  %v1060 = vsel %vm438, %v1054, %v1055
  %v1061 = vsel %vm438, %v1053, %v1054
  %v1062 = vsel %vm438, %v1052, %v1053
  %v1063 = vsel %vm438, %v1051, %v1052
  %v1064 = vsel %vm438, %v1050, %v1051
  %v1065 = vsel %vm438, %v1057, %v1050
  %v1066 = vpack.c.bf16 %v1063, %v1064
  %v1067 = vpack.c.bf16 %v1061, %v1062
  %v1068 = vpack.c.bf16 %v1059, %v1060
  %v1069 = vpack.c.bf16 %v1065, %v1058
  %v1070 = vrot.slane %v978, 5
  %v1071 = vrot.slane %v979, 5
  %v1072 = vrot.slane %v980, 5
  %v1073 = vrot.slane %v981, 5
  %v1074 = vrot.slane %v982, 5
  %v1075 = vrot.slane %v983, 5
  %v1076 = vrot.slane %v984, 5
  %v1077 = vrot.slane %v985, 5
  %v1078 = vsel %vm459, %v1076, %v1077
  %v1079 = vsel %vm459, %v1075, %v1076
  %v1080 = vsel %vm459, %v1074, %v1075
  %v1081 = vsel %vm459, %v1073, %v1074
  %v1082 = vsel %vm459, %v1072, %v1073
  %v1083 = vsel %vm459, %v1071, %v1072
  %v1084 = vsel %vm459, %v1070, %v1071
  %v1085 = vsel %vm459, %v1077, %v1070
  %v1086 = vpack.c.bf16 %v1083, %v1084
  %v1087 = vpack.c.bf16 %v1081, %v1082
  %v1088 = vpack.c.bf16 %v1079, %v1080
  %v1089 = vpack.c.bf16 %v1085, %v1078
  %v1090 = vrot.slane %v978, 6
  %v1091 = vrot.slane %v979, 6
  %v1092 = vrot.slane %v980, 6
  %v1093 = vrot.slane %v981, 6
  %v1094 = vrot.slane %v982, 6
  %v1095 = vrot.slane %v983, 6
  %v1096 = vrot.slane %v984, 6
  %v1097 = vrot.slane %v985, 6
  %v1098 = vsel %vm480, %v1096, %v1097
  %v1099 = vsel %vm480, %v1095, %v1096
  %v1100 = vsel %vm480, %v1094, %v1095
  %v1101 = vsel %vm480, %v1093, %v1094
  %v1102 = vsel %vm480, %v1092, %v1093
  %v1103 = vsel %vm480, %v1091, %v1092
  %v1104 = vsel %vm480, %v1090, %v1091
  %v1105 = vsel %vm480, %v1097, %v1090
  %v1106 = vpack.c.bf16 %v1103, %v1104
  %v1107 = vpack.c.bf16 %v1101, %v1102
  %v1108 = vpack.c.bf16 %v1099, %v1100
  %v1109 = vpack.c.bf16 %v1105, %v1098
  %v1110 = vrot.slane %v978, 7
  %v1111 = vrot.slane %v979, 7
  %v1112 = vrot.slane %v980, 7
  %v1113 = vrot.slane %v981, 7
  %v1114 = vrot.slane %v982, 7
  %v1115 = vrot.slane %v983, 7
  %v1116 = vrot.slane %v984, 7
  %v1117 = vrot.slane %v985, 7
  %v1118 = vsel %vm501, %v1116, %v1117
  %v1119 = vsel %vm501, %v1115, %v1116
  %v1120 = vsel %vm501, %v1114, %v1115
  %v1121 = vsel %vm501, %v1113, %v1114
  %v1122 = vsel %vm501, %v1112, %v1113
  %v1123 = vsel %vm501, %v1111, %v1112
  %v1124 = vsel %vm501, %v1110, %v1111
  %v1125 = vsel %vm501, %v1117, %v1110
  %v1126 = vpack.c.bf16 %v1123, %v1124
  %v1127 = vpack.c.bf16 %v1121, %v1122
  %v1128 = vpack.c.bf16 %v1119, %v1120
  %v1129 = vpack.c.bf16 %v1125, %v1118
  %v1130 = vpack.c.bf16 %v980, %v979
  %v1131 = vpack.c.bf16 %v982, %v981
  %v1132 = vpack.c.bf16 %v984, %v983
  %v1133 = vpack.c.bf16 %v978, %v985
  %v1134 = vpack.c.bf16 %v1002, %v1003
  %v1135 = vpack.c.bf16 %v1000, %v1001
  %v1136 = vpack.c.bf16 %v998, %v999
  %v1137 = vpack.c.bf16 %v1004, %v1005
  %v1138 = vpack.c.bf16 %v1022, %v1023
  %v1139 = vpack.c.bf16 %v1020, %v1021
  %v1140 = vpack.c.bf16 %v1018, %v1019
  %v1141 = vpack.c.bf16 %v1024, %v1025
  %v1142 = vpack.c.bf16 %v1042, %v1043
  %v1143 = vpack.c.bf16 %v1040, %v1041
  %v1144 = vpack.c.bf16 %v1038, %v1039
  %v1145 = vpack.c.bf16 %v1044, %v1045
  %1150 = vrot.lane.b32.xlu0 %v1006, 80
  %v1151 = vpop.permute.xlu0 %1150
  %1152 = vrot.lane.b32.xlu0 %v1007, 80
  %v1153 = vpop.permute.xlu0 %1152
  %1154 = vrot.lane.b32.xlu0 %v1008, 80
  %v1155 = vpop.permute.xlu0 %1154
  %1156 = vrot.lane.b32.xlu0 %v1009, 80
  %v1157 = vpop.permute.xlu0 %1156
  %1162 = vrot.lane.b32.xlu0 %v1026, 32
  %v1163 = vpop.permute.xlu0 %1162
  %1164 = vrot.lane.b32.xlu0 %v1027, 32
  %v1165 = vpop.permute.xlu0 %1164
  %1166 = vrot.lane.b32.xlu0 %v1028, 32
  %v1167 = vpop.permute.xlu0 %1166
  %1168 = vrot.lane.b32.xlu0 %v1029, 32
  %v1169 = vpop.permute.xlu0 %1168
  %1174 = vrot.lane.b32.xlu0 %v1046, 112
  %v1175 = vpop.permute.xlu0 %1174
  %1176 = vrot.lane.b32.xlu0 %v1047, 112
  %v1177 = vpop.permute.xlu0 %1176
  %1178 = vrot.lane.b32.xlu0 %v1048, 112
  %v1179 = vpop.permute.xlu0 %1178
  %1180 = vrot.lane.b32.xlu0 %v1049, 112
  %v1181 = vpop.permute.xlu0 %1180
  %1186 = vrot.lane.b32.xlu0 %v1066, 64
  %v1187 = vpop.permute.xlu0 %1186
  %1188 = vrot.lane.b32.xlu0 %v1067, 64
  %v1189 = vpop.permute.xlu0 %1188
  %1190 = vrot.lane.b32.xlu0 %v1068, 64
  %v1191 = vpop.permute.xlu0 %1190
  %1192 = vrot.lane.b32.xlu0 %v1069, 64
  %v1193 = vpop.permute.xlu0 %1192
  %1198 = vrot.lane.b32.xlu0 %v1086, 16
  %v1199 = vpop.permute.xlu0 %1198
  %1200 = vrot.lane.b32.xlu0 %v1087, 16
  %v1201 = vpop.permute.xlu0 %1200
  %1202 = vrot.lane.b32.xlu0 %v1088, 16
  %v1203 = vpop.permute.xlu0 %1202
  %1204 = vrot.lane.b32.xlu0 %v1089, 16
  %v1205 = vpop.permute.xlu0 %1204
  %1210 = vrot.lane.b32.xlu0 %v1106, 96
  %v1211 = vpop.permute.xlu0 %1210
  %1212 = vrot.lane.b32.xlu0 %v1107, 96
  %v1213 = vpop.permute.xlu0 %1212
  %1214 = vrot.lane.b32.xlu0 %v1108, 96
  %v1215 = vpop.permute.xlu0 %1214
  %1216 = vrot.lane.b32.xlu0 %v1109, 96
  %v1217 = vpop.permute.xlu0 %1216
  %1222 = vrot.lane.b32.xlu0 %v1126, 48
  %v1223 = vpop.permute.xlu0 %1222
  %1224 = vrot.lane.b32.xlu0 %v1127, 48
  %v1225 = vpop.permute.xlu0 %1224
  %1226 = vrot.lane.b32.xlu0 %v1128, 48
  %v1227 = vpop.permute.xlu0 %1226
  %1228 = vrot.lane.b32.xlu0 %v1129, 48
  %v1229 = vpop.permute.xlu0 %1228
  %1234 = vrot.lane.b32.xlu0 %v1134, 80
  %v1235 = vpop.permute.xlu0 %1234
  %1236 = vrot.lane.b32.xlu0 %v1135, 80
  %v1237 = vpop.permute.xlu0 %1236
  %1238 = vrot.lane.b32.xlu0 %v1136, 80
  %v1239 = vpop.permute.xlu0 %1238
  %1240 = vrot.lane.b32.xlu0 %v1137, 80
  %v1241 = vpop.permute.xlu0 %1240
  %1246 = vrot.lane.b32.xlu0 %v1138, 32
  %v1247 = vpop.permute.xlu0 %1246
  %1248 = vrot.lane.b32.xlu0 %v1139, 32
  %v1249 = vpop.permute.xlu0 %1248
  %1250 = vrot.lane.b32.xlu0 %v1140, 32
  %v1251 = vpop.permute.xlu0 %1250
  %1252 = vrot.lane.b32.xlu0 %v1141, 32
  %v1253 = vpop.permute.xlu0 %1252
  %1258 = vrot.lane.b32.xlu0 %v1142, 112
  %v1259 = vpop.permute.xlu0 %1258
  %1260 = vrot.lane.b32.xlu0 %v1143, 112
  %v1261 = vpop.permute.xlu0 %1260
  %1262 = vrot.lane.b32.xlu0 %v1144, 112
  %v1263 = vpop.permute.xlu0 %1262
  %1264 = vrot.lane.b32.xlu0 %v1145, 112
  %v1265 = vpop.permute.xlu0 %1264
  %v1268 = vsel %vm611, %v986, %v1151
  %v1272 = vsel %vm611, %v987, %v1153
  %v1276 = vsel %vm611, %v988, %v1155
  %v1280 = vsel %vm611, %v989, %v1157
  %v1283 = vsel %vm633, %v1151, %v1163
  %v1285 = vsel %vm633, %v1153, %v1165
  %v1287 = vsel %vm633, %v1155, %v1167
  %v1289 = vsel %vm633, %v1157, %v1169
  %v1291 = vsel %vm651, %v1283, %v1175
  %v1294 = vsel %vm651, %v1285, %v1177
  %v1297 = vsel %vm651, %v1287, %v1179
  %v1300 = vsel %vm651, %v1289, %v1181
  %v1303 = vsel %vm125, %v1175, %v1187
  %v1306 = vsel %vm125, %v1177, %v1189
  %v1309 = vsel %vm125, %v1179, %v1191
  %v1312 = vsel %vm125, %v1181, %v1193
  %vm1314 = vcmask 130048
  %v1316 = vsel %vm1314, %v1187, %v1199
  %v1318 = vsel %vm1314, %v1189, %v1201
  %v1320 = vsel %vm1314, %v1191, %v1203
  %v1322 = vsel %vm1314, %v1193, %v1205
  %vm1323 = vcmask 785408
  %v1325 = vsel %vm1323, %v1316, %v1211
  %v1328 = vsel %vm1323, %v1318, %v1213
  %v1331 = vsel %vm1323, %v1320, %v1215
  %v1334 = vsel %vm1323, %v1322, %v1217
  %vm1336 = vcmask 392192
  %v1338 = vsel %vm1336, %v1211, %v1223
  %v1341 = vsel %vm1336, %v1213, %v1225
  %v1344 = vsel %vm1336, %v1215, %v1227
  %v1347 = vsel %vm1336, %v1217, %v1229
  %v1351 = vsel %vm611, %v1130, %v1235
  %v1355 = vsel %vm611, %v1131, %v1237
  %v1359 = vsel %vm611, %v1132, %v1239
  %v1363 = vsel %vm611, %v1133, %v1241
  %v1366 = vsel %vm633, %v1235, %v1247
  %v1368 = vsel %vm633, %v1237, %v1249
  %v1370 = vsel %vm633, %v1239, %v1251
  %v1372 = vsel %vm633, %v1241, %v1253
  %v1374 = vsel %vm651, %v1366, %v1259
  %v1377 = vsel %vm651, %v1368, %v1261
  %v1380 = vsel %vm651, %v1370, %v1263
  %v1383 = vsel %vm651, %v1372, %v1265
  %v1385 = vld [vmem:[%s5] sm:$0xff]
  %v1386 = vld [vmem:[%s5 + $0x8] sm:$0xff]
  %v1387 = vld [vmem:[%s5 + $0x10] sm:$0xff]
  %v1388 = vld [vmem:[%s5 + $0x18] sm:$0xff]
  %v1389 = vld [vmem:[%s5 + $0x20] sm:$0xff]
  %v1390 = vld [vmem:[%s5 + $0x28] sm:$0xff]
  %v1391 = vld [vmem:[%s5 + $0x30] sm:$0xff]
  %v1392 = vld [vmem:[%s5 + $0x38] sm:$0xff]
  %v1393 = vld [vmem:[%s5 + $0x40] sm:$0xff]
  %v1394 = vld [vmem:[%s5 + $0x48] sm:$0xff]
  %v1395 = vld [vmem:[%s5 + $0x50] sm:$0xff]
  %v1396 = vld [vmem:[%s5 + $0x58] sm:$0xff]
  %v1397 = vld [vmem:[%s5 + $0x60] sm:$0xff]
  %v1398 = vld [vmem:[%s5 + $0x68] sm:$0xff]
  %v1399 = vld [vmem:[%s5 + $0x70] sm:$0xff]
  %v1400 = vld [vmem:[%s5 + $0x78] sm:$0xff]
  %v1401 = vld [vmem:[%s5 + $0x80] sm:$0xff]
  %v1402 = vld [vmem:[%s5 + $0x88] sm:$0xff]
  %v1403 = vld [vmem:[%s5 + $0x90] sm:$0xff]
  %v1404 = vld [vmem:[%s5 + $0x98] sm:$0xff]
  %v1405 = vld [vmem:[%s5 + $0xa0] sm:$0xff]
  %v1406 = vld [vmem:[%s5 + $0xa8] sm:$0xff]
  %v1407 = vld [vmem:[%s5 + $0xb0] sm:$0xff]
  %v1408 = vld [vmem:[%s5 + $0xb8] sm:$0xff]
  %v1409 = vld [vmem:[%s5 + $0xc0] sm:$0xff]
  %v1410 = vld [vmem:[%s5 + $0xc8] sm:$0xff]
  %v1411 = vld [vmem:[%s5 + $0xd0] sm:$0xff]
  %v1412 = vld [vmem:[%s5 + $0xd8] sm:$0xff]
  %v1413 = vld [vmem:[%s5 + $0xe0] sm:$0xff]
  %v1414 = vld [vmem:[%s5 + $0xe8] sm:$0xff]
  %v1415 = vld [vmem:[%s5 + $0xf0] sm:$0xff]
  %v1416 = vld [vmem:[%s5 + $0xf8] sm:$0xff]
  %v1417 = vld [vmem:[%s5 + $0x100] sm:$0xff]
  %v1418 = vld [vmem:[%s5 + $0x108] sm:$0xff]
  %v1419 = vld [vmem:[%s5 + $0x110] sm:$0xff]
  %v1420 = vld [vmem:[%s5 + $0x118] sm:$0xff]
  %v1421 = vld [vmem:[%s5 + $0x120] sm:$0xff]
  %v1422 = vld [vmem:[%s5 + $0x128] sm:$0xff]
  %v1423 = vld [vmem:[%s5 + $0x130] sm:$0xff]
  %v1424 = vld [vmem:[%s5 + $0x138] sm:$0xff]
  %v1425 = vld [vmem:[%s5 + $0x140] sm:$0xff]
  %v1426 = vld [vmem:[%s5 + $0x148] sm:$0xff]
  %v1427 = vld [vmem:[%s5 + $0x150] sm:$0xff]
  %v1428 = vld [vmem:[%s5 + $0x158] sm:$0xff]
  %v1429 = vld [vmem:[%s5 + $0x160] sm:$0xff]
  %v1430 = vld [vmem:[%s5 + $0x168] sm:$0xff]
  %v1431 = vld [vmem:[%s5 + $0x170] sm:$0xff]
  %v1432 = vld [vmem:[%s5 + $0x178] sm:$0xff]
  %v1433 = vld [vmem:[%s5 + $0x180] sm:$0xff]
  %v1434 = vld [vmem:[%s5 + $0x188] sm:$0xff]
  %v1435 = vld [vmem:[%s5 + $0x190] sm:$0xff]
  %v1436 = vld [vmem:[%s5 + $0x198] sm:$0xff]
  %v1437 = vld [vmem:[%s5 + $0x1a0] sm:$0xff]
  %v1438 = vld [vmem:[%s5 + $0x1a8] sm:$0xff]
  %v1439 = vld [vmem:[%s5 + $0x1b0] sm:$0xff]
  %v1440 = vld [vmem:[%s5 + $0x1b8] sm:$0xff]
  %v1441 = vld [vmem:[%s5 + $0x1c0] sm:$0xff]
  %v1442 = vld [vmem:[%s5 + $0x1c8] sm:$0xff]
  %v1443 = vld [vmem:[%s5 + $0x1d0] sm:$0xff]
  %v1444 = vld [vmem:[%s5 + $0x1d8] sm:$0xff]
  %v1445 = vld [vmem:[%s5 + $0x1e0] sm:$0xff]
  %v1446 = vld [vmem:[%s5 + $0x1e8] sm:$0xff]
  %v1447 = vld [vmem:[%s5 + $0x1f0] sm:$0xff]
  %v1448 = vld [vmem:[%s5 + $0x1f8] sm:$0xff]
  %v1449 = vld [vmem:[%s5 + $0x200] sm:$0xff]
  %v1450 = vld [vmem:[%s5 + $0x208] sm:$0xff]
  %v1451 = vld [vmem:[%s5 + $0x210] sm:$0xff]
  %v1452 = vld [vmem:[%s5 + $0x218] sm:$0xff]
  %v1453 = vld [vmem:[%s5 + $0x220] sm:$0xff]
  %v1454 = vld [vmem:[%s5 + $0x228] sm:$0xff]
  %v1455 = vld [vmem:[%s5 + $0x230] sm:$0xff]
  %v1456 = vld [vmem:[%s5 + $0x238] sm:$0xff]
  %v1457 = vld [vmem:[%s5 + $0x240] sm:$0xff]
  %v1458 = vld [vmem:[%s5 + $0x248] sm:$0xff]
  %v1459 = vld [vmem:[%s5 + $0x250] sm:$0xff]
  %v1460 = vld [vmem:[%s5 + $0x258] sm:$0xff]
  %v1461 = vld [vmem:[%s5 + $0x260] sm:$0xff]
  %v1462 = vld [vmem:[%s5 + $0x268] sm:$0xff]
  %v1463 = vld [vmem:[%s5 + $0x270] sm:$0xff]
  %v1464 = vld [vmem:[%s5 + $0x278] sm:$0xff]
  %v1465 = vld [vmem:[%s5 + $0x280] sm:$0xff]
  %v1466 = vld [vmem:[%s5 + $0x288] sm:$0xff]
  %v1467 = vld [vmem:[%s5 + $0x290] sm:$0xff]
  %v1468 = vld [vmem:[%s5 + $0x298] sm:$0xff]
  %v1469 = vld [vmem:[%s5 + $0x2a0] sm:$0xff]
  %v1470 = vld [vmem:[%s5 + $0x2a8] sm:$0xff]
  %v1471 = vld [vmem:[%s5 + $0x2b0] sm:$0xff]
  %v1472 = vld [vmem:[%s5 + $0x2b8] sm:$0xff]
  %v1473 = vld [vmem:[%s5 + $0x2c0] sm:$0xff]
  %v1474 = vld [vmem:[%s5 + $0x2c8] sm:$0xff]
  %v1475 = vld [vmem:[%s5 + $0x2d0] sm:$0xff]
  %v1476 = vld [vmem:[%s5 + $0x2d8] sm:$0xff]
  %v1477 = vld [vmem:[%s5 + $0x2e0] sm:$0xff]
  %v1478 = vld [vmem:[%s5 + $0x2e8] sm:$0xff]
  %v1479 = vld [vmem:[%s5 + $0x2f0] sm:$0xff]
  %v1480 = vld [vmem:[%s5 + $0x2f8] sm:$0xff]
  %v1481 = vld [vmem:[%s5 + $0x300] sm:$0xff]
  %v1482 = vld [vmem:[%s5 + $0x308] sm:$0xff]
  %v1483 = vld [vmem:[%s5 + $0x310] sm:$0xff]
  %v1484 = vld [vmem:[%s5 + $0x318] sm:$0xff]
  %v1485 = vld [vmem:[%s5 + $0x320] sm:$0xff]
  %v1486 = vld [vmem:[%s5 + $0x328] sm:$0xff]
  %v1487 = vld [vmem:[%s5 + $0x330] sm:$0xff]
  %v1488 = vld [vmem:[%s5 + $0x338] sm:$0xff]
  %v1489 = vld [vmem:[%s5 + $0x340] sm:$0xff]
  %v1490 = vld [vmem:[%s5 + $0x348] sm:$0xff]
  %v1491 = vld [vmem:[%s5 + $0x350] sm:$0xff]
  %v1492 = vld [vmem:[%s5 + $0x358] sm:$0xff]
  %v1493 = vld [vmem:[%s5 + $0x360] sm:$0xff]
  %v1494 = vld [vmem:[%s5 + $0x368] sm:$0xff]
  %v1495 = vld [vmem:[%s5 + $0x370] sm:$0xff]
  %v1496 = vld [vmem:[%s5 + $0x378] sm:$0xff]
  %v1497 = vld [vmem:[%s5 + $0x380] sm:$0xff]
  %v1498 = vld [vmem:[%s5 + $0x388] sm:$0xff]
  %v1499 = vld [vmem:[%s5 + $0x390] sm:$0xff]
  %v1500 = vld [vmem:[%s5 + $0x398] sm:$0xff]
  %v1501 = vld [vmem:[%s5 + $0x3a0] sm:$0xff]
  %v1502 = vld [vmem:[%s5 + $0x3a8] sm:$0xff]
  %v1503 = vld [vmem:[%s5 + $0x3b0] sm:$0xff]
  %v1504 = vld [vmem:[%s5 + $0x3b8] sm:$0xff]
  %v1625 = vunpack.c.l.b16 %v1385
  %v1626 = vunpack.c.h.b16 %v1385
  %v1627 = vunpack.c.l.b16 %v1386
  %v1628 = vunpack.c.h.b16 %v1386
  %v1629 = vunpack.c.l.b16 %v1387
  %v1630 = vunpack.c.h.b16 %v1387
  %v1631 = vunpack.c.l.b16 %v1388
  %v1632 = vunpack.c.h.b16 %v1388
  %v1633 = vunpack.c.l.b16 %v1389
  %v1634 = vunpack.c.h.b16 %v1389
  %v1635 = vunpack.c.l.b16 %v1390
  %v1636 = vunpack.c.h.b16 %v1390
  %v1637 = vunpack.c.l.b16 %v1391
  %v1638 = vunpack.c.h.b16 %v1391
  %v1639 = vunpack.c.l.b16 %v1392
  %v1640 = vunpack.c.h.b16 %v1392
  %v1641 = vunpack.c.l.b16 %v1393
  %v1642 = vunpack.c.h.b16 %v1393
  %v1643 = vunpack.c.l.b16 %v1394
  %v1644 = vunpack.c.h.b16 %v1394
  %v1645 = vunpack.c.l.b16 %v1395
  %v1646 = vunpack.c.h.b16 %v1395
  %v1647 = vunpack.c.l.b16 %v1396
  %v1648 = vunpack.c.h.b16 %v1396
  %v1649 = vunpack.c.l.b16 %v1397
  %v1650 = vunpack.c.h.b16 %v1397
  %v1651 = vunpack.c.l.b16 %v1398
  %v1652 = vunpack.c.h.b16 %v1398
  %v1653 = vunpack.c.l.b16 %v1399
  %v1654 = vunpack.c.h.b16 %v1399
  %v1655 = vunpack.c.l.b16 %v1400
  %v1656 = vunpack.c.h.b16 %v1400
  %v1657 = vunpack.c.l.b16 %v1401
  %v1658 = vunpack.c.h.b16 %v1401
  %v1659 = vunpack.c.l.b16 %v1402
  %v1660 = vunpack.c.h.b16 %v1402
  %v1661 = vunpack.c.l.b16 %v1403
  %v1662 = vunpack.c.h.b16 %v1403
  %v1663 = vunpack.c.l.b16 %v1404
  %v1664 = vunpack.c.h.b16 %v1404
  %v1665 = vunpack.c.l.b16 %v1405
  %v1666 = vunpack.c.h.b16 %v1405
  %v1667 = vunpack.c.l.b16 %v1406
  %v1668 = vunpack.c.h.b16 %v1406
  %v1669 = vunpack.c.l.b16 %v1407
  %v1670 = vunpack.c.h.b16 %v1407
  %v1671 = vunpack.c.l.b16 %v1408
  %v1672 = vunpack.c.h.b16 %v1408
  %v1673 = vunpack.c.l.b16 %v1409
  %v1674 = vunpack.c.h.b16 %v1409
  %v1675 = vunpack.c.l.b16 %v1410
  %v1676 = vunpack.c.h.b16 %v1410
  %v1677 = vunpack.c.l.b16 %v1411
  %v1678 = vunpack.c.h.b16 %v1411
  %v1679 = vunpack.c.l.b16 %v1412
  %v1680 = vunpack.c.h.b16 %v1412
  %v1681 = vunpack.c.l.b16 %v1413
  %v1682 = vunpack.c.h.b16 %v1413
  %v1683 = vunpack.c.l.b16 %v1414
  %v1684 = vunpack.c.h.b16 %v1414
  %v1685 = vunpack.c.l.b16 %v1415
  %v1686 = vunpack.c.h.b16 %v1415
  %v1687 = vunpack.c.l.b16 %v1416
  %v1688 = vunpack.c.h.b16 %v1416
  %v1689 = vunpack.c.l.b16 %v1417
  %v1690 = vunpack.c.h.b16 %v1417
  %v1691 = vunpack.c.l.b16 %v1418
  %v1692 = vunpack.c.h.b16 %v1418
  %v1693 = vunpack.c.l.b16 %v1419
  %v1694 = vunpack.c.h.b16 %v1419
  %v1695 = vunpack.c.l.b16 %v1420
  %v1696 = vunpack.c.h.b16 %v1420
  %v1697 = vunpack.c.l.b16 %v1421
  %v1698 = vunpack.c.h.b16 %v1421
  %v1699 = vunpack.c.l.b16 %v1422
  %v1700 = vunpack.c.h.b16 %v1422
  %v1701 = vunpack.c.l.b16 %v1423
  %v1702 = vunpack.c.h.b16 %v1423
  %v1703 = vunpack.c.l.b16 %v1424
  %v1704 = vunpack.c.h.b16 %v1424
  %v1705 = vunpack.c.l.b16 %v1425
  %v1706 = vunpack.c.h.b16 %v1425
  %v1707 = vunpack.c.l.b16 %v1426
  %v1708 = vunpack.c.h.b16 %v1426
  %v1709 = vunpack.c.l.b16 %v1427
  %v1710 = vunpack.c.h.b16 %v1427
  %v1711 = vunpack.c.l.b16 %v1428
  %v1712 = vunpack.c.h.b16 %v1428
  %v1713 = vunpack.c.l.b16 %v1429
  %v1714 = vunpack.c.h.b16 %v1429
  %v1715 = vunpack.c.l.b16 %v1430
  %v1716 = vunpack.c.h.b16 %v1430
  %v1717 = vunpack.c.l.b16 %v1431
  %v1718 = vunpack.c.h.b16 %v1431
  %v1719 = vunpack.c.l.b16 %v1432
  %v1720 = vunpack.c.h.b16 %v1432
  %v1721 = vunpack.c.l.b16 %v1433
  %v1722 = vunpack.c.h.b16 %v1433
  %v1723 = vunpack.c.l.b16 %v1434
  %v1724 = vunpack.c.h.b16 %v1434
  %v1725 = vunpack.c.l.b16 %v1435
  %v1726 = vunpack.c.h.b16 %v1435
  %v1727 = vunpack.c.l.b16 %v1436
  %v1728 = vunpack.c.h.b16 %v1436
  %v1729 = vunpack.c.l.b16 %v1437
  %v1730 = vunpack.c.h.b16 %v1437
  %v1731 = vunpack.c.l.b16 %v1438
  %v1732 = vunpack.c.h.b16 %v1438
  %v1733 = vunpack.c.l.b16 %v1439
  %v1734 = vunpack.c.h.b16 %v1439
  %v1735 = vunpack.c.l.b16 %v1440
  %v1736 = vunpack.c.h.b16 %v1440
  %v1737 = vunpack.c.l.b16 %v1441
  %v1738 = vunpack.c.h.b16 %v1441
  %v1739 = vunpack.c.l.b16 %v1442
  %v1740 = vunpack.c.h.b16 %v1442
  %v1741 = vunpack.c.l.b16 %v1443
  %v1742 = vunpack.c.h.b16 %v1443
  %v1743 = vunpack.c.l.b16 %v1444
  %v1744 = vunpack.c.h.b16 %v1444
  %v1745 = vunpack.c.l.b16 %v1445
  %v1746 = vunpack.c.h.b16 %v1445
  %v1747 = vunpack.c.l.b16 %v1446
  %v1748 = vunpack.c.h.b16 %v1446
  %v1749 = vunpack.c.l.b16 %v1447
  %v1750 = vunpack.c.h.b16 %v1447
  %v1751 = vunpack.c.l.b16 %v1448
  %v1752 = vunpack.c.h.b16 %v1448
  %v1753 = vunpack.c.l.b16 %v1449
  %v1754 = vunpack.c.h.b16 %v1449
  %v1755 = vunpack.c.l.b16 %v1450
  %v1756 = vunpack.c.h.b16 %v1450
  %v1757 = vunpack.c.l.b16 %v1451
  %v1758 = vunpack.c.h.b16 %v1451
  %v1759 = vunpack.c.l.b16 %v1452
  %v1760 = vunpack.c.h.b16 %v1452
  %v1761 = vunpack.c.l.b16 %v1453
  %v1762 = vunpack.c.h.b16 %v1453
  %v1763 = vunpack.c.l.b16 %v1454
  %v1764 = vunpack.c.h.b16 %v1454
  %v1765 = vunpack.c.l.b16 %v1455
  %v1766 = vunpack.c.h.b16 %v1455
  %v1767 = vunpack.c.l.b16 %v1456
  %v1768 = vunpack.c.h.b16 %v1456
  %v1769 = vunpack.c.l.b16 %v1457
  %v1770 = vunpack.c.h.b16 %v1457
  %v1771 = vunpack.c.l.b16 %v1458
  %v1772 = vunpack.c.h.b16 %v1458
  %v1773 = vunpack.c.l.b16 %v1459
  %v1774 = vunpack.c.h.b16 %v1459
  %v1775 = vunpack.c.l.b16 %v1460
  %v1776 = vunpack.c.h.b16 %v1460
  %v1777 = vunpack.c.l.b16 %v1461
  %v1778 = vunpack.c.h.b16 %v1461
  %v1779 = vunpack.c.l.b16 %v1462
  %v1780 = vunpack.c.h.b16 %v1462
  %v1781 = vunpack.c.l.b16 %v1463
  %v1782 = vunpack.c.h.b16 %v1463
  %v1783 = vunpack.c.l.b16 %v1464
  %v1784 = vunpack.c.h.b16 %v1464
  %v1785 = vunpack.c.l.b16 %v1465
  %v1786 = vunpack.c.h.b16 %v1465
  %v1787 = vunpack.c.l.b16 %v1466
  %v1788 = vunpack.c.h.b16 %v1466
  %v1789 = vunpack.c.l.b16 %v1467
  %v1790 = vunpack.c.h.b16 %v1467
  %v1791 = vunpack.c.l.b16 %v1468
  %v1792 = vunpack.c.h.b16 %v1468
  %v1793 = vunpack.c.l.b16 %v1469
  %v1794 = vunpack.c.h.b16 %v1469
  %v1795 = vunpack.c.l.b16 %v1470
  %v1796 = vunpack.c.h.b16 %v1470
  %v1797 = vunpack.c.l.b16 %v1471
  %v1798 = vunpack.c.h.b16 %v1471
  %v1799 = vunpack.c.l.b16 %v1472
  %v1800 = vunpack.c.h.b16 %v1472
  %v1801 = vunpack.c.l.b16 %v1473
  %v1802 = vunpack.c.h.b16 %v1473
  %v1803 = vunpack.c.l.b16 %v1474
  %v1804 = vunpack.c.h.b16 %v1474
  %v1805 = vunpack.c.l.b16 %v1475
  %v1806 = vunpack.c.h.b16 %v1475
  %v1807 = vunpack.c.l.b16 %v1476
  %v1808 = vunpack.c.h.b16 %v1476
  %v1809 = vunpack.c.l.b16 %v1477
  %v1810 = vunpack.c.h.b16 %v1477
  %v1811 = vunpack.c.l.b16 %v1478
  %v1812 = vunpack.c.h.b16 %v1478
  %v1813 = vunpack.c.l.b16 %v1479
  %v1814 = vunpack.c.h.b16 %v1479
  %v1815 = vunpack.c.l.b16 %v1480
  %v1816 = vunpack.c.h.b16 %v1480
  %v1817 = vunpack.c.l.b16 %v1481
  %v1818 = vunpack.c.h.b16 %v1481
  %v1819 = vunpack.c.l.b16 %v1482
  %v1820 = vunpack.c.h.b16 %v1482
  %v1821 = vunpack.c.l.b16 %v1483
  %v1822 = vunpack.c.h.b16 %v1483
  %v1823 = vunpack.c.l.b16 %v1484
  %v1824 = vunpack.c.h.b16 %v1484
  %v1825 = vunpack.c.l.b16 %v1485
  %v1826 = vunpack.c.h.b16 %v1485
  %v1827 = vunpack.c.l.b16 %v1486
  %v1828 = vunpack.c.h.b16 %v1486
  %v1829 = vunpack.c.l.b16 %v1487
  %v1830 = vunpack.c.h.b16 %v1487
  %v1831 = vunpack.c.l.b16 %v1488
  %v1832 = vunpack.c.h.b16 %v1488
  %v1833 = vunpack.c.l.b16 %v1489
  %v1834 = vunpack.c.h.b16 %v1489
  %v1835 = vunpack.c.l.b16 %v1490
  %v1836 = vunpack.c.h.b16 %v1490
  %v1837 = vunpack.c.l.b16 %v1491
  %v1838 = vunpack.c.h.b16 %v1491
  %v1839 = vunpack.c.l.b16 %v1492
  %v1840 = vunpack.c.h.b16 %v1492
  %v1841 = vunpack.c.l.b16 %v1493
  %v1842 = vunpack.c.h.b16 %v1493
  %v1843 = vunpack.c.l.b16 %v1494
  %v1844 = vunpack.c.h.b16 %v1494
  %v1845 = vunpack.c.l.b16 %v1495
  %v1846 = vunpack.c.h.b16 %v1495
  %v1847 = vunpack.c.l.b16 %v1496
  %v1848 = vunpack.c.h.b16 %v1496
  %v1849 = vunpack.c.l.b16 %v1497
  %v1850 = vunpack.c.h.b16 %v1497
  %v1851 = vunpack.c.l.b16 %v1498
  %v1852 = vunpack.c.h.b16 %v1498
  %v1853 = vunpack.c.l.b16 %v1499
  %v1854 = vunpack.c.h.b16 %v1499
  %v1855 = vunpack.c.l.b16 %v1500
  %v1856 = vunpack.c.h.b16 %v1500
  %v1857 = vunpack.c.l.b16 %v1501
  %v1858 = vunpack.c.h.b16 %v1501
  %v1859 = vunpack.c.l.b16 %v1502
  %v1860 = vunpack.c.h.b16 %v1502
  %v1861 = vunpack.c.l.b16 %v1503
  %v1862 = vunpack.c.h.b16 %v1503
  %v1863 = vunpack.c.l.b16 %v1504
  %v1864 = vunpack.c.h.b16 %v1504
  %v1865 = vpack.c.b16 %v1627, %v1625
  %v1866 = vpack.c.b16 %v1628, %v1626
  %v1867 = vpack.c.b16 %v1631, %v1629
  %v1868 = vpack.c.b16 %v1632, %v1630
  %v1869 = vpack.c.b16 %v1635, %v1633
  %v1870 = vpack.c.b16 %v1636, %v1634
  %v1871 = vpack.c.b16 %v1639, %v1637
  %v1872 = vpack.c.b16 %v1640, %v1638
  %v1873 = vpack.c.b16 %v1643, %v1641
  %v1874 = vpack.c.b16 %v1644, %v1642
  %v1875 = vpack.c.b16 %v1647, %v1645
  %v1876 = vpack.c.b16 %v1648, %v1646
  %v1877 = vpack.c.b16 %v1651, %v1649
  %v1878 = vpack.c.b16 %v1652, %v1650
  %v1879 = vpack.c.b16 %v1655, %v1653
  %v1880 = vpack.c.b16 %v1656, %v1654
  %v1881 = vpack.c.b16 %v1659, %v1657
  %v1882 = vpack.c.b16 %v1660, %v1658
  %v1883 = vpack.c.b16 %v1663, %v1661
  %v1884 = vpack.c.b16 %v1664, %v1662
  %v1885 = vpack.c.b16 %v1667, %v1665
  %v1886 = vpack.c.b16 %v1668, %v1666
  %v1887 = vpack.c.b16 %v1671, %v1669
  %v1888 = vpack.c.b16 %v1672, %v1670
  %v1889 = vpack.c.b16 %v1675, %v1673
  %v1890 = vpack.c.b16 %v1676, %v1674
  %v1891 = vpack.c.b16 %v1679, %v1677
  %v1892 = vpack.c.b16 %v1680, %v1678
  %v1893 = vpack.c.b16 %v1683, %v1681
  %v1894 = vpack.c.b16 %v1684, %v1682
  %v1895 = vpack.c.b16 %v1687, %v1685
  %v1896 = vpack.c.b16 %v1688, %v1686
  %v1897 = vpack.c.b16 %v1691, %v1689
  %v1898 = vpack.c.b16 %v1692, %v1690
  %v1899 = vpack.c.b16 %v1695, %v1693
  %v1900 = vpack.c.b16 %v1696, %v1694
  %v1901 = vpack.c.b16 %v1699, %v1697
  %v1902 = vpack.c.b16 %v1700, %v1698
  %v1903 = vpack.c.b16 %v1703, %v1701
  %v1904 = vpack.c.b16 %v1704, %v1702
  %v1905 = vpack.c.b16 %v1707, %v1705
  %v1906 = vpack.c.b16 %v1708, %v1706
  %v1907 = vpack.c.b16 %v1711, %v1709
  %v1908 = vpack.c.b16 %v1712, %v1710
  %v1909 = vpack.c.b16 %v1715, %v1713
  %v1910 = vpack.c.b16 %v1716, %v1714
  %v1911 = vpack.c.b16 %v1719, %v1717
  %v1912 = vpack.c.b16 %v1720, %v1718
  %v1913 = vpack.c.b16 %v1723, %v1721
  %v1914 = vpack.c.b16 %v1724, %v1722
  %v1915 = vpack.c.b16 %v1727, %v1725
  %v1916 = vpack.c.b16 %v1728, %v1726
  %v1917 = vpack.c.b16 %v1731, %v1729
  %v1918 = vpack.c.b16 %v1732, %v1730
  %v1919 = vpack.c.b16 %v1735, %v1733
  %v1920 = vpack.c.b16 %v1736, %v1734
  %v1921 = vpack.c.b16 %v1739, %v1737
  %v1922 = vpack.c.b16 %v1740, %v1738
  %v1923 = vpack.c.b16 %v1743, %v1741
  %v1924 = vpack.c.b16 %v1744, %v1742
  %v1925 = vpack.c.b16 %v1747, %v1745
  %v1926 = vpack.c.b16 %v1748, %v1746
  %v1927 = vpack.c.b16 %v1751, %v1749
  %v1928 = vpack.c.b16 %v1752, %v1750
  %v1929 = vpack.c.b16 %v1755, %v1753
  %v1930 = vpack.c.b16 %v1756, %v1754
  %v1931 = vpack.c.b16 %v1759, %v1757
  %v1932 = vpack.c.b16 %v1760, %v1758
  %v1933 = vpack.c.b16 %v1763, %v1761
  %v1934 = vpack.c.b16 %v1764, %v1762
  %v1935 = vpack.c.b16 %v1767, %v1765
  %v1936 = vpack.c.b16 %v1768, %v1766
  %v1937 = vpack.c.b16 %v1771, %v1769
  %v1938 = vpack.c.b16 %v1772, %v1770
  %v1939 = vpack.c.b16 %v1775, %v1773
  %v1940 = vpack.c.b16 %v1776, %v1774
  %v1941 = vpack.c.b16 %v1779, %v1777
  %v1942 = vpack.c.b16 %v1780, %v1778
  %v1943 = vpack.c.b16 %v1783, %v1781
  %v1944 = vpack.c.b16 %v1784, %v1782
  %v1945 = vpack.c.b16 %v1787, %v1785
  %v1946 = vpack.c.b16 %v1788, %v1786
  %v1947 = vpack.c.b16 %v1791, %v1789
  %v1948 = vpack.c.b16 %v1792, %v1790
  %v1949 = vpack.c.b16 %v1795, %v1793
  %v1950 = vpack.c.b16 %v1796, %v1794
  %v1951 = vpack.c.b16 %v1799, %v1797
  %v1952 = vpack.c.b16 %v1800, %v1798
  %v1953 = vpack.c.b16 %v1803, %v1801
  %v1954 = vpack.c.b16 %v1804, %v1802
  %v1955 = vpack.c.b16 %v1807, %v1805
  %v1956 = vpack.c.b16 %v1808, %v1806
  %v1957 = vpack.c.b16 %v1811, %v1809
  %v1958 = vpack.c.b16 %v1812, %v1810
  %v1959 = vpack.c.b16 %v1815, %v1813
  %v1960 = vpack.c.b16 %v1816, %v1814
  %v1961 = vpack.c.b16 %v1819, %v1817
  %v1962 = vpack.c.b16 %v1820, %v1818
  %v1963 = vpack.c.b16 %v1823, %v1821
  %v1964 = vpack.c.b16 %v1824, %v1822
  %v1965 = vpack.c.b16 %v1827, %v1825
  %v1966 = vpack.c.b16 %v1828, %v1826
  %v1967 = vpack.c.b16 %v1831, %v1829
  %v1968 = vpack.c.b16 %v1832, %v1830
  %v1969 = vpack.c.b16 %v1835, %v1833
  %v1970 = vpack.c.b16 %v1836, %v1834
  %v1971 = vpack.c.b16 %v1839, %v1837
  %v1972 = vpack.c.b16 %v1840, %v1838
  %v1973 = vpack.c.b16 %v1843, %v1841
  %v1974 = vpack.c.b16 %v1844, %v1842
  %v1975 = vpack.c.b16 %v1847, %v1845
  %v1976 = vpack.c.b16 %v1848, %v1846
  %v1977 = vpack.c.b16 %v1851, %v1849
  %v1978 = vpack.c.b16 %v1852, %v1850
  %v1979 = vpack.c.b16 %v1855, %v1853
  %v1980 = vpack.c.b16 %v1856, %v1854
  %v1981 = vpack.c.b16 %v1859, %v1857
  %v1982 = vpack.c.b16 %v1860, %v1858
  %v1983 = vpack.c.b16 %v1863, %v1861
  %v1984 = vpack.c.b16 %v1864, %v1862
  %v2105 = vsel %vm125, %v1259, 0
  %v2107 = vsel %vm125, %v1261, 0
  %v2109 = vsel %vm125, %v1263, 0
  %v2111 = vsel %vm125, %v1265, 0
  %2113 = vmatprep.subr.bf16.mxu0 %v1866
  %2114 = vmatpush1.bf16.msra.mxu0 %v1865
  %2115 = vmatprep.subr.bf16.mxu0 %v1868
  %2116 = vmatpush1.bf16.msra.mxu0 %v1867
  %2117 = vmatprep.subr.bf16.mxu0 %v1870
  %2118 = vmatpush1.bf16.msra.mxu0 %v1869
  %2119 = vmatprep.subr.bf16.mxu0 %v1872
  %2120 = vmatpush1.bf16.msra.mxu0 %v1871
  %2121 = vmatprep.subr.bf16.mxu0 %v1874
  %2122 = vmatpush1.bf16.msra.mxu0 %v1873
  %2123 = vmatprep.subr.bf16.mxu0 %v1876
  %2124 = vmatpush1.bf16.msra.mxu0 %v1875
  %2125 = vmatprep.subr.bf16.mxu0 %v1878
  %2126 = vmatpush1.bf16.msra.mxu0 %v1877
  %2127 = vmatprep.subr.bf16.mxu0 %v1880
  %2128 = vmatpush1.bf16.msra.mxu0 %v1879
  %2129 = vmatprep.subr.bf16.mxu0 %v1882
  %2130 = vmatpush1.bf16.msra.mxu0 %v1881
  %2131 = vmatprep.subr.bf16.mxu0 %v1884
  %2132 = vmatpush1.bf16.msra.mxu0 %v1883
  %2133 = vmatprep.subr.bf16.mxu0 %v1886
  %2134 = vmatpush1.bf16.msra.mxu0 %v1885
  %2135 = vmatprep.subr.bf16.mxu0 %v1888
  %2136 = vmatpush1.bf16.msra.mxu0 %v1887
  %2137 = vmatprep.subr.bf16.mxu0 %v1890
  %2138 = vmatpush1.bf16.msra.mxu0 %v1889
  %2139 = vmatprep.subr.bf16.mxu0 %v1892
  %2140 = vmatpush1.bf16.msra.mxu0 %v1891
  %2141 = vmatprep.subr.bf16.mxu0 %v1894
  %2142 = vmatpush1.bf16.msra.mxu0 %v1893
  %2143 = vmatprep.subr.bf16.mxu0 %v1896
  %2144 = vmatpush1.bf16.msra.mxu0 %v1895
  %2145 = vmatprep.mubr.bf16.mxu0 %v1291
  %2146 = vmatmul.mubr.bf16.gmra.mrb[0].mxu0 %v1268
  %v2147 = vpop.f32.mrb[0].mxu0
  %v2148 = vadd.f32 0.0, %v2147
  %v2149 = vpop.f32.mrb[0].mxu0
  %v2150 = vadd.f32 0.0, %v2149
  %v2151 = vpop.f32.mrb[0].mxu0
  %v2152 = vadd.f32 0.0, %v2151
  %v2153 = vpop.f32.mrb[0].mxu0
  %v2154 = vadd.f32 0.0, %v2153
  %2155 = vmatprep.mubr.bf16.mxu0 %v1294
  %2156 = vmatmul.mubr.bf16.gmra.mrb[0].mxu0 %v1272
  %v2157 = vpop.f32.mrb[0].mxu0
  %v2158 = vadd.f32 0.0, %v2157
  %v2159 = vpop.f32.mrb[0].mxu0
  %v2160 = vadd.f32 0.0, %v2159
  %v2161 = vpop.f32.mrb[0].mxu0
  %v2162 = vadd.f32 0.0, %v2161
  %v2163 = vpop.f32.mrb[0].mxu0
  %v2164 = vadd.f32 0.0, %v2163
  %2165 = vmatprep.mubr.bf16.mxu0 %v1297
  %2166 = vmatmul.mubr.bf16.gmra.mrb[0].mxu0 %v1276
  %v2167 = vpop.f32.mrb[0].mxu0
  %v2168 = vadd.f32 0.0, %v2167
  %v2169 = vpop.f32.mrb[0].mxu0
  %v2170 = vadd.f32 0.0, %v2169
  %v2171 = vpop.f32.mrb[0].mxu0
  %v2172 = vadd.f32 0.0, %v2171
  %v2173 = vpop.f32.mrb[0].mxu0
  %v2174 = vadd.f32 0.0, %v2173
  %2175 = vmatprep.mubr.bf16.mxu0 %v1300
  %2176 = vmatmul.mubr.bf16.gmra.mrb[0].mxu0 %v1280
  %v2177 = vpop.f32.mrb[0].mxu0
  %v2178 = vadd.f32 0.0, %v2177
  %v2179 = vpop.f32.mrb[0].mxu0
  %v2180 = vadd.f32 0.0, %v2179
  %v2181 = vpop.f32.mrb[0].mxu0
  %v2182 = vadd.f32 0.0, %v2181
  %v2183 = vpop.f32.mrb[0].mxu0
  %v2184 = vadd.f32 0.0, %v2183
  %2185 = vdwg.mxu0
  %2186 = vmatprep.subr.bf16.mxu0 %v1898
  %2187 = vmatpush1.bf16.msra.mxu0 %v1897
  %2188 = vmatprep.subr.bf16.mxu0 %v1900
  %2189 = vmatpush1.bf16.msra.mxu0 %v1899
  %2190 = vmatprep.subr.bf16.mxu0 %v1902
  %2191 = vmatpush1.bf16.msra.mxu0 %v1901
  %2192 = vmatprep.subr.bf16.mxu0 %v1904
  %2193 = vmatpush1.bf16.msra.mxu0 %v1903
  %2194 = vmatprep.subr.bf16.mxu0 %v1906
  %2195 = vmatpush1.bf16.msra.mxu0 %v1905
  %2196 = vmatprep.subr.bf16.mxu0 %v1908
  %2197 = vmatpush1.bf16.msra.mxu0 %v1907
  %2198 = vmatprep.subr.bf16.mxu0 %v1910
  %2199 = vmatpush1.bf16.msra.mxu0 %v1909
  %2200 = vmatprep.subr.bf16.mxu0 %v1912
  %2201 = vmatpush1.bf16.msra.mxu0 %v1911
  %2202 = vmatprep.subr.bf16.mxu0 %v1914
  %2203 = vmatpush1.bf16.msra.mxu0 %v1913
  %2204 = vmatprep.subr.bf16.mxu0 %v1916
  %2205 = vmatpush1.bf16.msra.mxu0 %v1915
  %2206 = vmatprep.subr.bf16.mxu0 %v1918
  %2207 = vmatpush1.bf16.msra.mxu0 %v1917
  %2208 = vmatprep.subr.bf16.mxu0 %v1920
  %2209 = vmatpush1.bf16.msra.mxu0 %v1919
  %2210 = vmatprep.subr.bf16.mxu0 %v1922
  %2211 = vmatpush1.bf16.msra.mxu0 %v1921
  %2212 = vmatprep.subr.bf16.mxu0 %v1924
  %2213 = vmatpush1.bf16.msra.mxu0 %v1923
  %2214 = vmatprep.subr.bf16.mxu0 %v1926
  %2215 = vmatpush1.bf16.msra.mxu0 %v1925
  %2216 = vmatprep.subr.bf16.mxu0 %v1928
  %2217 = vmatpush1.bf16.msra.mxu0 %v1927
  %2218 = vmatprep.mubr.bf16.mxu0 %v1325
  %2219 = vmatmul.mubr.bf16.gmra.mrb[0].mxu0 %v1303
  %v2220 = vpop.f32.mrb[0].mxu0
  %v2221 = vadd.f32 %v2148, %v2220
  %v2222 = vpop.f32.mrb[0].mxu0
  %v2223 = vadd.f32 %v2150, %v2222
  %v2224 = vpop.f32.mrb[0].mxu0
  %v2225 = vadd.f32 %v2152, %v2224
  %v2226 = vpop.f32.mrb[0].mxu0
  %v2227 = vadd.f32 %v2154, %v2226
  %2228 = vmatprep.mubr.bf16.mxu0 %v1328
  %2229 = vmatmul.mubr.bf16.gmra.mrb[0].mxu0 %v1306
  %v2230 = vpop.f32.mrb[0].mxu0
  %v2231 = vadd.f32 %v2158, %v2230
  %v2232 = vpop.f32.mrb[0].mxu0
  %v2233 = vadd.f32 %v2160, %v2232
  %v2234 = vpop.f32.mrb[0].mxu0
  %v2235 = vadd.f32 %v2162, %v2234
  %v2236 = vpop.f32.mrb[0].mxu0
  %v2237 = vadd.f32 %v2164, %v2236
  %2238 = vmatprep.mubr.bf16.mxu0 %v1331
  %2239 = vmatmul.mubr.bf16.gmra.mrb[0].mxu0 %v1309
  %v2240 = vpop.f32.mrb[0].mxu0
  %v2241 = vadd.f32 %v2168, %v2240
  %v2242 = vpop.f32.mrb[0].mxu0
  %v2243 = vadd.f32 %v2170, %v2242
  %v2244 = vpop.f32.mrb[0].mxu0
  %v2245 = vadd.f32 %v2172, %v2244
  %v2246 = vpop.f32.mrb[0].mxu0
  %v2247 = vadd.f32 %v2174, %v2246
  %2248 = vmatprep.mubr.bf16.mxu0 %v1334
  %2249 = vmatmul.mubr.bf16.gmra.mrb[0].mxu0 %v1312
  %v2250 = vpop.f32.mrb[0].mxu0
  %v2251 = vadd.f32 %v2178, %v2250
  %v2252 = vpop.f32.mrb[0].mxu0
  %v2253 = vadd.f32 %v2180, %v2252
  %v2254 = vpop.f32.mrb[0].mxu0
  %v2255 = vadd.f32 %v2182, %v2254
  %v2256 = vpop.f32.mrb[0].mxu0
  %v2257 = vadd.f32 %v2184, %v2256
  %2258 = vdwg.mxu0
  %2259 = vmatprep.subr.bf16.mxu0 %v1930
  %2260 = vmatpush1.bf16.msra.mxu0 %v1929
  %2261 = vmatprep.subr.bf16.mxu0 %v1932
  %2262 = vmatpush1.bf16.msra.mxu0 %v1931
  %2263 = vmatprep.subr.bf16.mxu0 %v1934
  %2264 = vmatpush1.bf16.msra.mxu0 %v1933
  %2265 = vmatprep.subr.bf16.mxu0 %v1936
  %2266 = vmatpush1.bf16.msra.mxu0 %v1935
  %2267 = vmatprep.subr.bf16.mxu0 %v1938
  %2268 = vmatpush1.bf16.msra.mxu0 %v1937
  %2269 = vmatprep.subr.bf16.mxu0 %v1940
  %2270 = vmatpush1.bf16.msra.mxu0 %v1939
  %2271 = vmatprep.subr.bf16.mxu0 %v1942
  %2272 = vmatpush1.bf16.msra.mxu0 %v1941
  %2273 = vmatprep.subr.bf16.mxu0 %v1944
  %2274 = vmatpush1.bf16.msra.mxu0 %v1943
  %2275 = vmatprep.subr.bf16.mxu0 %v1946
  %2276 = vmatpush1.bf16.msra.mxu0 %v1945
  %2277 = vmatprep.subr.bf16.mxu0 %v1948
  %2278 = vmatpush1.bf16.msra.mxu0 %v1947
  %2279 = vmatprep.subr.bf16.mxu0 %v1950
  %2280 = vmatpush1.bf16.msra.mxu0 %v1949
  %2281 = vmatprep.subr.bf16.mxu0 %v1952
  %2282 = vmatpush1.bf16.msra.mxu0 %v1951
  %2283 = vmatprep.subr.bf16.mxu0 %v1954
  %2284 = vmatpush1.bf16.msra.mxu0 %v1953
  %2285 = vmatprep.subr.bf16.mxu0 %v1956
  %2286 = vmatpush1.bf16.msra.mxu0 %v1955
  %2287 = vmatprep.subr.bf16.mxu0 %v1958
  %2288 = vmatpush1.bf16.msra.mxu0 %v1957
  %2289 = vmatprep.subr.bf16.mxu0 %v1960
  %2290 = vmatpush1.bf16.msra.mxu0 %v1959
  %2291 = vmatprep.mubr.bf16.mxu0 %v1351
  %2292 = vmatmul.mubr.bf16.gmra.mrb[0].mxu0 %v1338
  %v2293 = vpop.f32.mrb[0].mxu0
  %v2294 = vadd.f32 %v2221, %v2293
  %v2295 = vpop.f32.mrb[0].mxu0
  %v2296 = vadd.f32 %v2223, %v2295
  %v2297 = vpop.f32.mrb[0].mxu0
  %v2298 = vadd.f32 %v2225, %v2297
  %v2299 = vpop.f32.mrb[0].mxu0
  %v2300 = vadd.f32 %v2227, %v2299
  %2301 = vmatprep.mubr.bf16.mxu0 %v1355
  %2302 = vmatmul.mubr.bf16.gmra.mrb[0].mxu0 %v1341
  %v2303 = vpop.f32.mrb[0].mxu0
  %v2304 = vadd.f32 %v2231, %v2303
  %v2305 = vpop.f32.mrb[0].mxu0
  %v2306 = vadd.f32 %v2233, %v2305
  %v2307 = vpop.f32.mrb[0].mxu0
  %v2308 = vadd.f32 %v2235, %v2307
  %v2309 = vpop.f32.mrb[0].mxu0
  %v2310 = vadd.f32 %v2237, %v2309
  %2311 = vmatprep.mubr.bf16.mxu0 %v1359
  %2312 = vmatmul.mubr.bf16.gmra.mrb[0].mxu0 %v1344
  %v2313 = vpop.f32.mrb[0].mxu0
  %v2314 = vadd.f32 %v2241, %v2313
  %v2315 = vpop.f32.mrb[0].mxu0
  %v2316 = vadd.f32 %v2243, %v2315
  %v2317 = vpop.f32.mrb[0].mxu0
  %v2318 = vadd.f32 %v2245, %v2317
  %v2319 = vpop.f32.mrb[0].mxu0
  %v2320 = vadd.f32 %v2247, %v2319
  %2321 = vmatprep.mubr.bf16.mxu0 %v1363
  %2322 = vmatmul.mubr.bf16.gmra.mrb[0].mxu0 %v1347
  %v2323 = vpop.f32.mrb[0].mxu0
  %v2324 = vadd.f32 %v2251, %v2323
  %v2325 = vpop.f32.mrb[0].mxu0
  %v2326 = vadd.f32 %v2253, %v2325
  %v2327 = vpop.f32.mrb[0].mxu0
  %v2328 = vadd.f32 %v2255, %v2327
  %v2329 = vpop.f32.mrb[0].mxu0
  %v2330 = vadd.f32 %v2257, %v2329
  %2331 = vdwg.mxu0
  %2332 = vmatprep.subr.bf16.mxu0 %v1962
  %2333 = vmatpush1.bf16.msra.mxu0 %v1961
  %2334 = vmatprep.subr.bf16.mxu0 %v1964
  %2335 = vmatpush1.bf16.msra.mxu0 %v1963
  %2336 = vmatprep.subr.bf16.mxu0 %v1966
  %2337 = vmatpush1.bf16.msra.mxu0 %v1965
  %2338 = vmatprep.subr.bf16.mxu0 %v1968
  %2339 = vmatpush1.bf16.msra.mxu0 %v1967
  %2340 = vmatprep.subr.bf16.mxu0 %v1970
  %2341 = vmatpush1.bf16.msra.mxu0 %v1969
  %2342 = vmatprep.subr.bf16.mxu0 %v1972
  %2343 = vmatpush1.bf16.msra.mxu0 %v1971
  %2344 = vmatprep.subr.bf16.mxu0 %v1974
  %2345 = vmatpush1.bf16.msra.mxu0 %v1973
  %2346 = vmatprep.subr.bf16.mxu0 %v1976
  %2347 = vmatpush1.bf16.msra.mxu0 %v1975
  %2348 = vmatprep.subr.bf16.mxu0 %v1978
  %2349 = vmatpush1.bf16.msra.mxu0 %v1977
  %2350 = vmatprep.subr.bf16.mxu0 %v1980
  %2351 = vmatpush1.bf16.msra.mxu0 %v1979
  %2352 = vmatprep.subr.bf16.mxu0 %v1982
  %2353 = vmatpush1.bf16.msra.mxu0 %v1981
  %2354 = vmatprep.subr.bf16.mxu0 %v1984
  %2355 = vmatpush1.bf16.msra.mxu0 %v1983
  %2356 = vmatprep.subr.bf16.mxu0 0
  %2357 = vmatpush1.bf16.msra.mxu0 0
  %2358 = vmatprep.subr.bf16.mxu0 0
  %2359 = vmatpush1.bf16.msra.mxu0 0
  %2360 = vmatprep.subr.bf16.mxu0 0
  %2361 = vmatpush1.bf16.msra.mxu0 0
  %2362 = vmatprep.subr.bf16.mxu0 0
  %2363 = vmatpush1.bf16.msra.mxu0 0
  %2364 = vmatprep.mubr.bf16.mxu0 %v2105
  %2365 = vmatmul.mubr.bf16.gmra.mrb[0].mxu0 %v1374
  %v2366 = vpop.f32.mrb[0].mxu0
  %v2367 = vadd.f32 %v2294, %v2366
  %v2368 = vpop.f32.mrb[0].mxu0
  %v2369 = vadd.f32 %v2296, %v2368
  %v2370 = vpop.f32.mrb[0].mxu0
  %v2371 = vadd.f32 %v2298, %v2370
  %v2372 = vpop.f32.mrb[0].mxu0
  %v2373 = vadd.f32 %v2300, %v2372
  %2374 = vmatprep.mubr.bf16.mxu0 %v2107
  %2375 = vmatmul.mubr.bf16.gmra.mrb[0].mxu0 %v1377
  %v2376 = vpop.f32.mrb[0].mxu0
  %v2377 = vadd.f32 %v2304, %v2376
  %v2378 = vpop.f32.mrb[0].mxu0
  %v2379 = vadd.f32 %v2306, %v2378
  %v2380 = vpop.f32.mrb[0].mxu0
  %v2381 = vadd.f32 %v2308, %v2380
  %v2382 = vpop.f32.mrb[0].mxu0
  %v2383 = vadd.f32 %v2310, %v2382
  %2384 = vmatprep.mubr.bf16.mxu0 %v2109
  %2385 = vmatmul.mubr.bf16.gmra.mrb[0].mxu0 %v1380
  %v2386 = vpop.f32.mrb[0].mxu0
  %v2387 = vadd.f32 %v2314, %v2386
  %v2388 = vpop.f32.mrb[0].mxu0
  %v2389 = vadd.f32 %v2316, %v2388
  %v2390 = vpop.f32.mrb[0].mxu0
  %v2391 = vadd.f32 %v2318, %v2390
  %v2392 = vpop.f32.mrb[0].mxu0
  %v2393 = vadd.f32 %v2320, %v2392
  %2394 = vmatprep.mubr.bf16.mxu0 %v2111
  %2395 = vmatmul.mubr.bf16.gmra.mrb[0].mxu0 %v1383
  %v2396 = vpop.f32.mrb[0].mxu0
  %v2397 = vadd.f32 %v2324, %v2396
  %v2398 = vpop.f32.mrb[0].mxu0
  %v2399 = vadd.f32 %v2326, %v2398
  %v2400 = vpop.f32.mrb[0].mxu0
  %v2401 = vadd.f32 %v2328, %v2400
  %v2402 = vpop.f32.mrb[0].mxu0
  %v2403 = vadd.f32 %v2330, %v2402
  %2404 = vdwg.mxu0
  %v2405 = vadd.s32 %v45, 8
  %v2406 = vadd.s32 %v45, 16
  %v2407 = vadd.s32 %v45, 24
  %v2408 = vadd.s32 %v45, 32
  %v2409 = vadd.s32 %v45, 40
  %v2410 = vadd.s32 %v45, 48
  %v2411 = vadd.s32 %v45, 56
  %vm2412 = vcmp.lt.s32.totalorder %v45, 43
  %vm2413 = vcmp.lt.s32.totalorder %v2405, 43
  %vm2414 = vcmp.lt.s32.totalorder %v2406, 43
  %vm2415 = vcmp.lt.s32.totalorder %v2407, 43
  %vm2416 = vcmp.lt.s32.totalorder %v2408, 43
  %vm2417 = vcmp.lt.s32.totalorder %v2409, 43
  %vm2418 = vcmp.lt.s32.totalorder %v2410, 43
  %vm2419 = vcmp.lt.s32.totalorder %v2411, 43
  %v2420 = vsel %vm2412, %v2367, -1e+30
  %v2421 = vsel %vm2412, %v2369, -1e+30
  %v2422 = vsel %vm2413, %v2371, -1e+30
  %v2423 = vsel %vm2413, %v2373, -1e+30
  %v2424 = vsel %vm2414, %v2377, -1e+30
  %v2425 = vsel %vm2414, %v2379, -1e+30
  %v2426 = vsel %vm2415, %v2381, -1e+30
  %v2427 = vsel %vm2415, %v2383, -1e+30
  %v2428 = vsel %vm2416, %v2387, -1e+30
  %v2429 = vsel %vm2416, %v2389, -1e+30
  %v2430 = vsel %vm2417, %v2391, -1e+30
  %v2431 = vsel %vm2417, %v2393, -1e+30
  %v2432 = vsel %vm2418, %v2397, -1e+30
  %v2433 = vsel %vm2418, %v2399, -1e+30
  %v2434 = vsel %vm2419, %v2401, -1e+30
  %v2435 = vsel %vm2419, %v2403, -1e+30
  %v2436 = vmax.f32 %v2420, %v2424
  %v2437 = vmax.f32 %v2422, %v2426
  %v2438 = vmax.f32 %v2436, %v2428
  %v2439 = vmax.f32 %v2437, %v2430
  %v2440 = vmax.f32 %v2438, %v2432
  %v2441 = vmax.f32 %v2439, %v2434
  %v2442 = vmax.f32 %v2440, %v2441
  %v2443 = vrot.slane %v2442, 4
  %v2444 = vmax.f32 %v2442, %v2443
  %v2445 = vrot.slane %v2444, 2
  %v2446 = vmax.f32 %v2444, %v2445
  %v2447 = vrot.slane %v2446, 1
  %v2448 = vmax.f32 %v2446, %v2447
  %v2449 = vsel %vm633, %v2421, -inf
  %v2450 = vsel %vm633, %v2423, -inf
  %v2451 = vsel %vm633, %v2425, -inf
  %v2452 = vmax.f32 %v2449, %v2451
  %v2453 = vsel %vm633, %v2427, -inf
  %v2454 = vmax.f32 %v2450, %v2453
  %v2455 = vsel %vm633, %v2429, -inf
  %v2456 = vmax.f32 %v2452, %v2455
  %v2457 = vsel %vm633, %v2431, -inf
  %v2458 = vmax.f32 %v2454, %v2457
  %v2459 = vsel %vm633, %v2433, -inf
  %v2460 = vmax.f32 %v2456, %v2459
  %v2461 = vsel %vm633, %v2435, -inf
  %v2462 = vmax.f32 %v2458, %v2461
  %v2463 = vmax.f32 %v2460, %v2462
  %v2464 = vrot.slane %v2463, 4
  %v2465 = vmax.f32 %v2463, %v2464
  %v2466 = vrot.slane %v2465, 2
  %v2467 = vmax.f32 %v2465, %v2466
  %v2468 = vrot.slane %v2467, 1
  %v2469 = vmax.f32 %v2467, %v2468
  %s2470 = scalar_lea.vmem %s0, 64
  %v2471 = vld [vmem:[%s2470] sm:$0xff]
  %v2472 = vld [vmem:[%s2470 + $0x8] sm:$0xff]
  %v2473 = vld [vmem:[%s2470 + $0x10] sm:$0xff]
  %v2474 = vld [vmem:[%s2470 + $0x18] sm:$0xff]
  %v2475 = vld [vmem:[%s2470 + $0x20] sm:$0xff]
  %v2476 = vld [vmem:[%s2470 + $0x28] sm:$0xff]
  %v2477 = vld [vmem:[%s2470 + $0x30] sm:$0xff]
  %v2478 = vld [vmem:[%s2470 + $0x38] sm:$0xff]
  %v2479 = vpack.c.bf16 %v2472, %v2471
  %v2480 = vpack.c.bf16 %v2474, %v2473
  %v2481 = vpack.c.bf16 %v2476, %v2475
  %v2482 = vpack.c.bf16 %v2478, %v2477
  %v2483 = vrot.slane %v2471, 1
  %v2484 = vrot.slane %v2472, 1
  %v2485 = vrot.slane %v2473, 1
  %v2486 = vrot.slane %v2474, 1
  %v2487 = vrot.slane %v2475, 1
  %v2488 = vrot.slane %v2476, 1
  %v2489 = vrot.slane %v2477, 1
  %v2490 = vrot.slane %v2478, 1
  %v2491 = vsel %vm46, %v2489, %v2490
  %v2492 = vsel %vm46, %v2488, %v2489
  %v2493 = vsel %vm46, %v2487, %v2488
  %v2494 = vsel %vm46, %v2486, %v2487
  %v2495 = vsel %vm46, %v2485, %v2486
  %v2496 = vsel %vm46, %v2484, %v2485
  %v2497 = vsel %vm46, %v2483, %v2484
  %v2498 = vsel %vm46, %v2490, %v2483
  %v2499 = vpack.c.bf16 %v2496, %v2497
  %v2500 = vpack.c.bf16 %v2494, %v2495
  %v2501 = vpack.c.bf16 %v2492, %v2493
  %v2502 = vpack.c.bf16 %v2498, %v2491
  %v2503 = vrot.slane %v2471, 2
  %v2504 = vrot.slane %v2472, 2
  %v2505 = vrot.slane %v2473, 2
  %v2506 = vrot.slane %v2474, 2
  %v2507 = vrot.slane %v2475, 2
  %v2508 = vrot.slane %v2476, 2
  %v2509 = vrot.slane %v2477, 2
  %v2510 = vrot.slane %v2478, 2
  %v2511 = vsel %vm67, %v2509, %v2510
  %v2512 = vsel %vm67, %v2508, %v2509
  %v2513 = vsel %vm67, %v2507, %v2508
  %v2514 = vsel %vm67, %v2506, %v2507
  %v2515 = vsel %vm67, %v2505, %v2506
  %v2516 = vsel %vm67, %v2504, %v2505
  %v2517 = vsel %vm67, %v2503, %v2504
  %v2518 = vsel %vm67, %v2510, %v2503
  %v2519 = vpack.c.bf16 %v2516, %v2517
  %v2520 = vpack.c.bf16 %v2514, %v2515
  %v2521 = vpack.c.bf16 %v2512, %v2513
  %v2522 = vpack.c.bf16 %v2518, %v2511
  %v2523 = vrot.slane %v2471, 3
  %v2524 = vrot.slane %v2472, 3
  %v2525 = vrot.slane %v2473, 3
  %v2526 = vrot.slane %v2474, 3
  %v2527 = vrot.slane %v2475, 3
  %v2528 = vrot.slane %v2476, 3
  %v2529 = vrot.slane %v2477, 3
  %v2530 = vrot.slane %v2478, 3
  %v2531 = vsel %vm88, %v2529, %v2530
  %v2532 = vsel %vm88, %v2528, %v2529
  %v2533 = vsel %vm88, %v2527, %v2528
  %v2534 = vsel %vm88, %v2526, %v2527
  %v2535 = vsel %vm88, %v2525, %v2526
  %v2536 = vsel %vm88, %v2524, %v2525
  %v2537 = vsel %vm88, %v2523, %v2524
  %v2538 = vsel %vm88, %v2530, %v2523
  %v2539 = vpack.c.bf16 %v2536, %v2537
  %v2540 = vpack.c.bf16 %v2534, %v2535
  %v2541 = vpack.c.bf16 %v2532, %v2533
  %v2542 = vpack.c.bf16 %v2538, %v2531
  %2547 = vrot.lane.b32.xlu0 %v2499, 64
  %v2548 = vpop.permute.xlu0 %2547
  %2549 = vrot.lane.b32.xlu0 %v2500, 64
  %v2550 = vpop.permute.xlu0 %2549
  %2551 = vrot.lane.b32.xlu0 %v2501, 64
  %v2552 = vpop.permute.xlu0 %2551
  %2553 = vrot.lane.b32.xlu0 %v2502, 64
  %v2554 = vpop.permute.xlu0 %2553
  %2559 = vrot.lane.b32.xlu0 %v2539, 64
  %v2560 = vpop.permute.xlu0 %2559
  %2561 = vrot.lane.b32.xlu0 %v2540, 64
  %v2562 = vpop.permute.xlu0 %2561
  %2563 = vrot.lane.b32.xlu0 %v2541, 64
  %v2564 = vpop.permute.xlu0 %2563
  %2565 = vrot.lane.b32.xlu0 %v2542, 64
  %v2566 = vpop.permute.xlu0 %2565
  %v2569 = vsel %vm125, %v2479, %v2548
  %v2573 = vsel %vm125, %v2480, %v2550
  %v2577 = vsel %vm125, %v2481, %v2552
  %v2581 = vsel %vm125, %v2482, %v2554
  %v2585 = vsel %vm125, %v2519, %v2560
  %v2589 = vsel %vm125, %v2520, %v2562
  %v2593 = vsel %vm125, %v2521, %v2564
  %v2597 = vsel %vm125, %v2522, %v2566
  %2599 = vmatprep.subr.bf16.mxu0 0
  %2600 = vmatpush1.bf16.msra.mxu0 %v261
  %2601 = vmatprep.subr.bf16.mxu0 0
  %2602 = vmatpush1.bf16.msra.mxu0 %v262
  %2603 = vmatprep.subr.bf16.mxu0 0
  %2604 = vmatpush1.bf16.msra.mxu0 %v263
  %2605 = vmatprep.subr.bf16.mxu0 0
  %2606 = vmatpush1.bf16.msra.mxu0 %v264
  %2607 = vmatprep.subr.bf16.mxu0 0
  %2608 = vmatpush1.bf16.msra.mxu0 %v265
  %2609 = vmatprep.subr.bf16.mxu0 0
  %2610 = vmatpush1.bf16.msra.mxu0 %v266
  %2611 = vmatprep.subr.bf16.mxu0 0
  %2612 = vmatpush1.bf16.msra.mxu0 %v267
  %2613 = vmatprep.subr.bf16.mxu0 0
  %2614 = vmatpush1.bf16.msra.mxu0 %v268
  %2615 = vmatprep.subr.bf16.mxu0 0
  %2616 = vmatpush1.bf16.msra.mxu0 %v269
  %2617 = vmatprep.subr.bf16.mxu0 0
  %2618 = vmatpush1.bf16.msra.mxu0 %v270
  %2619 = vmatprep.subr.bf16.mxu0 0
  %2620 = vmatpush1.bf16.msra.mxu0 %v271
  %2621 = vmatprep.subr.bf16.mxu0 0
  %2622 = vmatpush1.bf16.msra.mxu0 %v272
  %2623 = vmatprep.subr.bf16.mxu0 0
  %2624 = vmatpush1.bf16.msra.mxu0 %v273
  %2625 = vmatprep.subr.bf16.mxu0 0
  %2626 = vmatpush1.bf16.msra.mxu0 %v274
  %2627 = vmatprep.subr.bf16.mxu0 0
  %2628 = vmatpush1.bf16.msra.mxu0 %v275
  %2629 = vmatprep.subr.bf16.mxu0 0
  %2630 = vmatpush1.bf16.msra.mxu0 %v276
  %2631 = vmatprep.mubr.bf16.mxu0 %v2585
  %2632 = vmatmul.mubr.bf16.gmra.mrb[0].mxu0 %v2569
  %v2633 = vpop.f32.mrb[0].mxu0
  %v2634 = vadd.f32 %v195, %v2633
  %v2635 = vpop.f32.mrb[0].mxu0
  %v2636 = vpop.f32.mrb[0].mxu0
  %v2637 = vadd.f32 %v195, %v2636
  %v2638 = vpop.f32.mrb[0].mxu0
  %2639 = vmatprep.mubr.bf16.mxu0 %v2589
  %2640 = vmatmul.mubr.bf16.gmra.mrb[0].mxu0 %v2573
  %v2641 = vpop.f32.mrb[0].mxu0
  %v2642 = vadd.f32 %v195, %v2641
  %v2643 = vpop.f32.mrb[0].mxu0
  %v2644 = vpop.f32.mrb[0].mxu0
  %v2645 = vadd.f32 %v195, %v2644
  %v2646 = vpop.f32.mrb[0].mxu0
  %2647 = vmatprep.mubr.bf16.mxu0 %v2593
  %2648 = vmatmul.mubr.bf16.gmra.mrb[0].mxu0 %v2577
  %v2649 = vpop.f32.mrb[0].mxu0
  %v2650 = vadd.f32 %v195, %v2649
  %v2651 = vpop.f32.mrb[0].mxu0
  %v2652 = vpop.f32.mrb[0].mxu0
  %v2653 = vadd.f32 %v195, %v2652
  %v2654 = vpop.f32.mrb[0].mxu0
  %2655 = vmatprep.mubr.bf16.mxu0 %v2597
  %2656 = vmatmul.mubr.bf16.gmra.mrb[0].mxu0 %v2581
  %v2657 = vpop.f32.mrb[0].mxu0
  %v2658 = vadd.f32 %v195, %v2657
  %v2659 = vpop.f32.mrb[0].mxu0
  %v2660 = vpop.f32.mrb[0].mxu0
  %v2661 = vadd.f32 %v195, %v2660
  %v2662 = vpop.f32.mrb[0].mxu0
  %2663 = vdwg.mxu0
  %v2664 = vmax.f32 %v2634, 0.0
  %v2665 = vmax.f32 %v2637, 0.0
  %v2666 = vmax.f32 %v2642, 0.0
  %v2667 = vmax.f32 %v2645, 0.0
  %v2668 = vmax.f32 %v2650, 0.0
  %v2669 = vmax.f32 %v2653, 0.0
  %v2670 = vmax.f32 %v2658, 0.0
  %v2671 = vmax.f32 %v2661, 0.0
  %v2672 = vpack.c.bf16 %v2665, %v2664
  %v2673 = vpack.c.bf16 %v2667, %v2666
  %v2674 = vpack.c.bf16 %v2669, %v2668
  %v2675 = vpack.c.bf16 %v2671, %v2670
  %v2676 = vrot.slane %v2664, 1
  %v2677 = vrot.slane %v2665, 1
  %v2678 = vrot.slane %v2666, 1
  %v2679 = vrot.slane %v2667, 1
  %v2680 = vrot.slane %v2668, 1
  %v2681 = vrot.slane %v2669, 1
  %v2682 = vrot.slane %v2670, 1
  %v2683 = vrot.slane %v2671, 1
  %v2684 = vsel %vm46, %v2682, %v2683
  %v2685 = vsel %vm46, %v2681, %v2682
  %v2686 = vsel %vm46, %v2680, %v2681
  %v2687 = vsel %vm46, %v2679, %v2680
  %v2688 = vsel %vm46, %v2678, %v2679
  %v2689 = vsel %vm46, %v2677, %v2678
  %v2690 = vsel %vm46, %v2676, %v2677
  %v2691 = vsel %vm46, %v2683, %v2676
  %v2692 = vpack.c.bf16 %v2689, %v2690
  %v2693 = vpack.c.bf16 %v2687, %v2688
  %v2694 = vpack.c.bf16 %v2685, %v2686
  %v2695 = vpack.c.bf16 %v2691, %v2684
  %v2696 = vrot.slane %v2664, 2
  %v2697 = vrot.slane %v2665, 2
  %v2698 = vrot.slane %v2666, 2
  %v2699 = vrot.slane %v2667, 2
  %v2700 = vrot.slane %v2668, 2
  %v2701 = vrot.slane %v2669, 2
  %v2702 = vrot.slane %v2670, 2
  %v2703 = vrot.slane %v2671, 2
  %v2704 = vsel %vm67, %v2702, %v2703
  %v2705 = vsel %vm67, %v2701, %v2702
  %v2706 = vsel %vm67, %v2700, %v2701
  %v2707 = vsel %vm67, %v2699, %v2700
  %v2708 = vsel %vm67, %v2698, %v2699
  %v2709 = vsel %vm67, %v2697, %v2698
  %v2710 = vsel %vm67, %v2696, %v2697
  %v2711 = vsel %vm67, %v2703, %v2696
  %v2712 = vpack.c.bf16 %v2709, %v2710
  %v2713 = vpack.c.bf16 %v2707, %v2708
  %v2714 = vpack.c.bf16 %v2705, %v2706
  %v2715 = vpack.c.bf16 %v2711, %v2704
  %v2716 = vrot.slane %v2664, 3
  %v2717 = vrot.slane %v2665, 3
  %v2718 = vrot.slane %v2666, 3
  %v2719 = vrot.slane %v2667, 3
  %v2720 = vrot.slane %v2668, 3
  %v2721 = vrot.slane %v2669, 3
  %v2722 = vrot.slane %v2670, 3
  %v2723 = vrot.slane %v2671, 3
  %v2724 = vsel %vm88, %v2722, %v2723
  %v2725 = vsel %vm88, %v2721, %v2722
  %v2726 = vsel %vm88, %v2720, %v2721
  %v2727 = vsel %vm88, %v2719, %v2720
  %v2728 = vsel %vm88, %v2718, %v2719
  %v2729 = vsel %vm88, %v2717, %v2718
  %v2730 = vsel %vm88, %v2716, %v2717
  %v2731 = vsel %vm88, %v2723, %v2716
  %v2732 = vpack.c.bf16 %v2729, %v2730
  %v2733 = vpack.c.bf16 %v2727, %v2728
  %v2734 = vpack.c.bf16 %v2725, %v2726
  %v2735 = vpack.c.bf16 %v2731, %v2724
  %v2736 = vrot.slane %v2664, 4
  %v2737 = vrot.slane %v2665, 4
  %v2738 = vrot.slane %v2666, 4
  %v2739 = vrot.slane %v2667, 4
  %v2740 = vrot.slane %v2668, 4
  %v2741 = vrot.slane %v2669, 4
  %v2742 = vrot.slane %v2670, 4
  %v2743 = vrot.slane %v2671, 4
  %v2744 = vsel %vm438, %v2742, %v2743
  %v2745 = vsel %vm438, %v2741, %v2742
  %v2746 = vsel %vm438, %v2740, %v2741
  %v2747 = vsel %vm438, %v2739, %v2740
  %v2748 = vsel %vm438, %v2738, %v2739
  %v2749 = vsel %vm438, %v2737, %v2738
  %v2750 = vsel %vm438, %v2736, %v2737
  %v2751 = vsel %vm438, %v2743, %v2736
  %v2752 = vpack.c.bf16 %v2749, %v2750
  %v2753 = vpack.c.bf16 %v2747, %v2748
  %v2754 = vpack.c.bf16 %v2745, %v2746
  %v2755 = vpack.c.bf16 %v2751, %v2744
  %v2756 = vrot.slane %v2664, 5
  %v2757 = vrot.slane %v2665, 5
  %v2758 = vrot.slane %v2666, 5
  %v2759 = vrot.slane %v2667, 5
  %v2760 = vrot.slane %v2668, 5
  %v2761 = vrot.slane %v2669, 5
  %v2762 = vrot.slane %v2670, 5
  %v2763 = vrot.slane %v2671, 5
  %v2764 = vsel %vm459, %v2762, %v2763
  %v2765 = vsel %vm459, %v2761, %v2762
  %v2766 = vsel %vm459, %v2760, %v2761
  %v2767 = vsel %vm459, %v2759, %v2760
  %v2768 = vsel %vm459, %v2758, %v2759
  %v2769 = vsel %vm459, %v2757, %v2758
  %v2770 = vsel %vm459, %v2756, %v2757
  %v2771 = vsel %vm459, %v2763, %v2756
  %v2772 = vpack.c.bf16 %v2769, %v2770
  %v2773 = vpack.c.bf16 %v2767, %v2768
  %v2774 = vpack.c.bf16 %v2765, %v2766
  %v2775 = vpack.c.bf16 %v2771, %v2764
  %v2776 = vrot.slane %v2664, 6
  %v2777 = vrot.slane %v2665, 6
  %v2778 = vrot.slane %v2666, 6
  %v2779 = vrot.slane %v2667, 6
  %v2780 = vrot.slane %v2668, 6
  %v2781 = vrot.slane %v2669, 6
  %v2782 = vrot.slane %v2670, 6
  %v2783 = vrot.slane %v2671, 6
  %v2784 = vsel %vm480, %v2782, %v2783
  %v2785 = vsel %vm480, %v2781, %v2782
  %v2786 = vsel %vm480, %v2780, %v2781
  %v2787 = vsel %vm480, %v2779, %v2780
  %v2788 = vsel %vm480, %v2778, %v2779
  %v2789 = vsel %vm480, %v2777, %v2778
  %v2790 = vsel %vm480, %v2776, %v2777
  %v2791 = vsel %vm480, %v2783, %v2776
  %v2792 = vpack.c.bf16 %v2789, %v2790
  %v2793 = vpack.c.bf16 %v2787, %v2788
  %v2794 = vpack.c.bf16 %v2785, %v2786
  %v2795 = vpack.c.bf16 %v2791, %v2784
  %v2796 = vrot.slane %v2664, 7
  %v2797 = vrot.slane %v2665, 7
  %v2798 = vrot.slane %v2666, 7
  %v2799 = vrot.slane %v2667, 7
  %v2800 = vrot.slane %v2668, 7
  %v2801 = vrot.slane %v2669, 7
  %v2802 = vrot.slane %v2670, 7
  %v2803 = vrot.slane %v2671, 7
  %v2804 = vsel %vm501, %v2802, %v2803
  %v2805 = vsel %vm501, %v2801, %v2802
  %v2806 = vsel %vm501, %v2800, %v2801
  %v2807 = vsel %vm501, %v2799, %v2800
  %v2808 = vsel %vm501, %v2798, %v2799
  %v2809 = vsel %vm501, %v2797, %v2798
  %v2810 = vsel %vm501, %v2796, %v2797
  %v2811 = vsel %vm501, %v2803, %v2796
  %v2812 = vpack.c.bf16 %v2809, %v2810
  %v2813 = vpack.c.bf16 %v2807, %v2808
  %v2814 = vpack.c.bf16 %v2805, %v2806
  %v2815 = vpack.c.bf16 %v2811, %v2804
  %2820 = vrot.lane.b32.xlu0 %v2692, 40
  %v2821 = vpop.permute.xlu0 %2820
  %2822 = vrot.lane.b32.xlu0 %v2693, 40
  %v2823 = vpop.permute.xlu0 %2822
  %2824 = vrot.lane.b32.xlu0 %v2694, 40
  %v2825 = vpop.permute.xlu0 %2824
  %2826 = vrot.lane.b32.xlu0 %v2695, 40
  %v2827 = vpop.permute.xlu0 %2826
  %2832 = vrot.lane.b32.xlu0 %v2712, 80
  %v2833 = vpop.permute.xlu0 %2832
  %2834 = vrot.lane.b32.xlu0 %v2713, 80
  %v2835 = vpop.permute.xlu0 %2834
  %2836 = vrot.lane.b32.xlu0 %v2714, 80
  %v2837 = vpop.permute.xlu0 %2836
  %2838 = vrot.lane.b32.xlu0 %v2715, 80
  %v2839 = vpop.permute.xlu0 %2838
  %2844 = vrot.lane.b32.xlu0 %v2732, 120
  %v2845 = vpop.permute.xlu0 %2844
  %2846 = vrot.lane.b32.xlu0 %v2733, 120
  %v2847 = vpop.permute.xlu0 %2846
  %2848 = vrot.lane.b32.xlu0 %v2734, 120
  %v2849 = vpop.permute.xlu0 %2848
  %2850 = vrot.lane.b32.xlu0 %v2735, 120
  %v2851 = vpop.permute.xlu0 %2850
  %2856 = vrot.lane.b32.xlu0 %v2752, 32
  %v2857 = vpop.permute.xlu0 %2856
  %2858 = vrot.lane.b32.xlu0 %v2753, 32
  %v2859 = vpop.permute.xlu0 %2858
  %2860 = vrot.lane.b32.xlu0 %v2754, 32
  %v2861 = vpop.permute.xlu0 %2860
  %2862 = vrot.lane.b32.xlu0 %v2755, 32
  %v2863 = vpop.permute.xlu0 %2862
  %2868 = vrot.lane.b32.xlu0 %v2772, 72
  %v2869 = vpop.permute.xlu0 %2868
  %2870 = vrot.lane.b32.xlu0 %v2773, 72
  %v2871 = vpop.permute.xlu0 %2870
  %2872 = vrot.lane.b32.xlu0 %v2774, 72
  %v2873 = vpop.permute.xlu0 %2872
  %2874 = vrot.lane.b32.xlu0 %v2775, 72
  %v2875 = vpop.permute.xlu0 %2874
  %2880 = vrot.lane.b32.xlu0 %v2792, 112
  %v2881 = vpop.permute.xlu0 %2880
  %2882 = vrot.lane.b32.xlu0 %v2793, 112
  %v2883 = vpop.permute.xlu0 %2882
  %2884 = vrot.lane.b32.xlu0 %v2794, 112
  %v2885 = vpop.permute.xlu0 %2884
  %2886 = vrot.lane.b32.xlu0 %v2795, 112
  %v2887 = vpop.permute.xlu0 %2886
  %2892 = vrot.lane.b32.xlu0 %v2812, 24
  %v2893 = vpop.permute.xlu0 %2892
  %2894 = vrot.lane.b32.xlu0 %v2813, 24
  %v2895 = vpop.permute.xlu0 %2894
  %2896 = vrot.lane.b32.xlu0 %v2814, 24
  %v2897 = vpop.permute.xlu0 %2896
  %2898 = vrot.lane.b32.xlu0 %v2815, 24
  %v2899 = vpop.permute.xlu0 %2898
  %v2902 = vsel %vm598, %v2672, %v2821
  %v2905 = vsel %vm598, %v2673, %v2823
  %v2908 = vsel %vm598, %v2674, %v2825
  %v2911 = vsel %vm598, %v2675, %v2827
  %v2913 = vsel %vm611, %v2902, %v2833
  %v2915 = vsel %vm611, %v2905, %v2835
  %v2917 = vsel %vm611, %v2908, %v2837
  %v2919 = vsel %vm611, %v2911, %v2839
  %v2921 = vsel %vm620, %v2913, %v2845
  %v2924 = vsel %vm620, %v2915, %v2847
  %v2927 = vsel %vm620, %v2917, %v2849
  %v2930 = vsel %vm620, %v2919, %v2851
  %v2933 = vsel %vm633, %v2845, %v2857
  %v2935 = vsel %vm633, %v2847, %v2859
  %v2937 = vsel %vm633, %v2849, %v2861
  %v2939 = vsel %vm633, %v2851, %v2863
  %v2941 = vsel %vm642, %v2933, %v2869
  %v2943 = vsel %vm642, %v2935, %v2871
  %v2945 = vsel %vm642, %v2937, %v2873
  %v2947 = vsel %vm642, %v2939, %v2875
  %v2949 = vsel %vm651, %v2941, %v2881
  %v2952 = vsel %vm651, %v2943, %v2883
  %v2955 = vsel %vm651, %v2945, %v2885
  %v2958 = vsel %vm651, %v2947, %v2887
  %v2961 = vsel %vm664, %v2881, %v2893
  %v2963 = vsel %vm664, %v2883, %v2895
  %v2965 = vsel %vm664, %v2885, %v2897
  %v2967 = vsel %vm664, %v2887, %v2899
  %v2968 = vsel %vm125, %v2961, 0
  %v2970 = vsel %vm125, %v2963, 0
  %v2972 = vsel %vm125, %v2965, 0
  %v2974 = vsel %vm125, %v2967, 0
  %2976 = vmatprep.subr.bf16.mxu0 0
  %2977 = vmatpush1.bf16.msra.mxu0 %v800
  %2978 = vmatprep.subr.bf16.mxu0 0
  %2979 = vmatpush1.bf16.msra.mxu0 %v801
  %2980 = vmatprep.subr.bf16.mxu0 0
  %2981 = vmatpush1.bf16.msra.mxu0 %v802
  %2982 = vmatprep.subr.bf16.mxu0 0
  %2983 = vmatpush1.bf16.msra.mxu0 %v803
  %2984 = vmatprep.subr.bf16.mxu0 0
  %2985 = vmatpush1.bf16.msra.mxu0 %v804
  %2986 = vmatprep.subr.bf16.mxu0 0
  %2987 = vmatpush1.bf16.msra.mxu0 %v805
  %2988 = vmatprep.subr.bf16.mxu0 0
  %2989 = vmatpush1.bf16.msra.mxu0 %v806
  %2990 = vmatprep.subr.bf16.mxu0 0
  %2991 = vmatpush1.bf16.msra.mxu0 %v807
  %2992 = vmatprep.subr.bf16.mxu0 0
  %2993 = vmatpush1.bf16.msra.mxu0 %v808
  %2994 = vmatprep.subr.bf16.mxu0 0
  %2995 = vmatpush1.bf16.msra.mxu0 %v809
  %2996 = vmatprep.subr.bf16.mxu0 0
  %2997 = vmatpush1.bf16.msra.mxu0 %v810
  %2998 = vmatprep.subr.bf16.mxu0 0
  %2999 = vmatpush1.bf16.msra.mxu0 %v811
  %3000 = vmatprep.subr.bf16.mxu0 0
  %3001 = vmatpush1.bf16.msra.mxu0 %v812
  %3002 = vmatprep.subr.bf16.mxu0 0
  %3003 = vmatpush1.bf16.msra.mxu0 %v813
  %3004 = vmatprep.subr.bf16.mxu0 0
  %3005 = vmatpush1.bf16.msra.mxu0 %v814
  %3006 = vmatprep.subr.bf16.mxu0 0
  %3007 = vmatpush1.bf16.msra.mxu0 %v815
  %3008 = vmatprep.mubr.bf16.mxu0 %v2949
  %3009 = vmatmul.mubr.bf16.gmra.mrb[0].mxu0 %v2921
  %v3010 = vpop.f32.mrb[0].mxu0
  %v3011 = vadd.f32 %v718, %v3010
  %v3012 = vpop.f32.mrb[0].mxu0
  %v3013 = vpop.f32.mrb[0].mxu0
  %v3014 = vadd.f32 %v718, %v3013
  %v3015 = vpop.f32.mrb[0].mxu0
  %3016 = vmatprep.mubr.bf16.mxu0 %v2952
  %3017 = vmatmul.mubr.bf16.gmra.mrb[0].mxu0 %v2924
  %v3018 = vpop.f32.mrb[0].mxu0
  %v3019 = vadd.f32 %v718, %v3018
  %v3020 = vpop.f32.mrb[0].mxu0
  %v3021 = vpop.f32.mrb[0].mxu0
  %v3022 = vadd.f32 %v718, %v3021
  %v3023 = vpop.f32.mrb[0].mxu0
  %3024 = vmatprep.mubr.bf16.mxu0 %v2955
  %3025 = vmatmul.mubr.bf16.gmra.mrb[0].mxu0 %v2927
  %v3026 = vpop.f32.mrb[0].mxu0
  %v3027 = vadd.f32 %v718, %v3026
  %v3028 = vpop.f32.mrb[0].mxu0
  %v3029 = vpop.f32.mrb[0].mxu0
  %v3030 = vadd.f32 %v718, %v3029
  %v3031 = vpop.f32.mrb[0].mxu0
  %3032 = vmatprep.mubr.bf16.mxu0 %v2958
  %3033 = vmatmul.mubr.bf16.gmra.mrb[0].mxu0 %v2930
  %v3034 = vpop.f32.mrb[0].mxu0
  %v3035 = vadd.f32 %v718, %v3034
  %v3036 = vpop.f32.mrb[0].mxu0
  %v3037 = vpop.f32.mrb[0].mxu0
  %v3038 = vadd.f32 %v718, %v3037
  %v3039 = vpop.f32.mrb[0].mxu0
  %3040 = vdwg.mxu0
  %3041 = vmatprep.subr.bf16.mxu0 0
  %3042 = vmatpush1.bf16.msra.mxu0 %v816
  %3043 = vmatprep.subr.bf16.mxu0 0
  %3044 = vmatpush1.bf16.msra.mxu0 %v817
  %3045 = vmatprep.subr.bf16.mxu0 0
  %3046 = vmatpush1.bf16.msra.mxu0 %v818
  %3047 = vmatprep.subr.bf16.mxu0 0
  %3048 = vmatpush1.bf16.msra.mxu0 %v819
  %3049 = vmatprep.subr.bf16.mxu0 0
  %3050 = vmatpush1.bf16.msra.mxu0 0
  %3051 = vmatprep.subr.bf16.mxu0 0
  %3052 = vmatpush1.bf16.msra.mxu0 0
  %3053 = vmatprep.subr.bf16.mxu0 0
  %3054 = vmatpush1.bf16.msra.mxu0 0
  %3055 = vmatprep.subr.bf16.mxu0 0
  %3056 = vmatpush1.bf16.msra.mxu0 0
  %3057 = vmatprep.subr.bf16.mxu0 0
  %3058 = vmatpush1.bf16.msra.mxu0 0
  %3059 = vmatprep.subr.bf16.mxu0 0
  %3060 = vmatpush1.bf16.msra.mxu0 0
  %3061 = vmatprep.subr.bf16.mxu0 0
  %3062 = vmatpush1.bf16.msra.mxu0 0
  %3063 = vmatprep.subr.bf16.mxu0 0
  %3064 = vmatpush1.bf16.msra.mxu0 0
  %3065 = vmatprep.subr.bf16.mxu0 0
  %3066 = vmatpush1.bf16.msra.mxu0 0
  %3067 = vmatprep.subr.bf16.mxu0 0
  %3068 = vmatpush1.bf16.msra.mxu0 0
  %3069 = vmatprep.subr.bf16.mxu0 0
  %3070 = vmatpush1.bf16.msra.mxu0 0
  %3071 = vmatprep.subr.bf16.mxu0 0
  %3072 = vmatpush1.bf16.msra.mxu0 0
  %3073 = vmatprep.mubr.bf16.mxu0 0
  %3074 = vmatmul.mubr.bf16.gmra.mrb[0].mxu0 %v2968
  %v3075 = vpop.f32.mrb[0].mxu0
  %v3076 = vadd.f32 %v3011, %v3075
  %v3077 = vpop.f32.mrb[0].mxu0
  %v3078 = vpop.f32.mrb[0].mxu0
  %v3079 = vadd.f32 %v3014, %v3078
  %v3080 = vpop.f32.mrb[0].mxu0
  %3081 = vmatprep.mubr.bf16.mxu0 0
  %3082 = vmatmul.mubr.bf16.gmra.mrb[0].mxu0 %v2970
  %v3083 = vpop.f32.mrb[0].mxu0
  %v3084 = vadd.f32 %v3019, %v3083
  %v3085 = vpop.f32.mrb[0].mxu0
  %v3086 = vpop.f32.mrb[0].mxu0
  %v3087 = vadd.f32 %v3022, %v3086
  %v3088 = vpop.f32.mrb[0].mxu0
  %3089 = vmatprep.mubr.bf16.mxu0 0
  %3090 = vmatmul.mubr.bf16.gmra.mrb[0].mxu0 %v2972
  %v3091 = vpop.f32.mrb[0].mxu0
  %v3092 = vadd.f32 %v3027, %v3091
  %v3093 = vpop.f32.mrb[0].mxu0
  %v3094 = vpop.f32.mrb[0].mxu0
  %v3095 = vadd.f32 %v3030, %v3094
  %v3096 = vpop.f32.mrb[0].mxu0
  %3097 = vmatprep.mubr.bf16.mxu0 0
  %3098 = vmatmul.mubr.bf16.gmra.mrb[0].mxu0 %v2974
  %v3099 = vpop.f32.mrb[0].mxu0
  %v3100 = vadd.f32 %v3035, %v3099
  %v3101 = vpop.f32.mrb[0].mxu0
  %v3102 = vpop.f32.mrb[0].mxu0
  %v3103 = vadd.f32 %v3038, %v3102
  %v3104 = vpop.f32.mrb[0].mxu0
  %3105 = vdwg.mxu0
  %v3106 = vmax.f32 %v3076, 0.0
  %v3107 = vmax.f32 %v3079, 0.0
  %v3108 = vmax.f32 %v3084, 0.0
  %v3109 = vmax.f32 %v3087, 0.0
  %v3110 = vmax.f32 %v3092, 0.0
  %v3111 = vmax.f32 %v3095, 0.0
  %v3112 = vmax.f32 %v3100, 0.0
  %v3113 = vmax.f32 %v3103, 0.0
  %v3114 = vpack.c.bf16 %v3107, %v3106
  %v3115 = vpack.c.bf16 %v3109, %v3108
  %v3116 = vpack.c.bf16 %v3111, %v3110
  %v3117 = vpack.c.bf16 %v3113, %v3112
  %v3118 = vrot.slane %v3106, 1
  %v3119 = vrot.slane %v3107, 1
  %v3120 = vrot.slane %v3108, 1
  %v3121 = vrot.slane %v3109, 1
  %v3122 = vrot.slane %v3110, 1
  %v3123 = vrot.slane %v3111, 1
  %v3124 = vrot.slane %v3112, 1
  %v3125 = vrot.slane %v3113, 1
  %v3126 = vsel %vm46, %v3124, %v3125
  %v3127 = vsel %vm46, %v3123, %v3124
  %v3128 = vsel %vm46, %v3122, %v3123
  %v3129 = vsel %vm46, %v3121, %v3122
  %v3130 = vsel %vm46, %v3120, %v3121
  %v3131 = vsel %vm46, %v3119, %v3120
  %v3132 = vsel %vm46, %v3118, %v3119
  %v3133 = vsel %vm46, %v3125, %v3118
  %v3134 = vpack.c.bf16 %v3131, %v3132
  %v3135 = vpack.c.bf16 %v3129, %v3130
  %v3136 = vpack.c.bf16 %v3127, %v3128
  %v3137 = vpack.c.bf16 %v3133, %v3126
  %v3138 = vrot.slane %v3106, 2
  %v3139 = vrot.slane %v3107, 2
  %v3140 = vrot.slane %v3108, 2
  %v3141 = vrot.slane %v3109, 2
  %v3142 = vrot.slane %v3110, 2
  %v3143 = vrot.slane %v3111, 2
  %v3144 = vrot.slane %v3112, 2
  %v3145 = vrot.slane %v3113, 2
  %v3146 = vsel %vm67, %v3144, %v3145
  %v3147 = vsel %vm67, %v3143, %v3144
  %v3148 = vsel %vm67, %v3142, %v3143
  %v3149 = vsel %vm67, %v3141, %v3142
  %v3150 = vsel %vm67, %v3140, %v3141
  %v3151 = vsel %vm67, %v3139, %v3140
  %v3152 = vsel %vm67, %v3138, %v3139
  %v3153 = vsel %vm67, %v3145, %v3138
  %v3154 = vpack.c.bf16 %v3151, %v3152
  %v3155 = vpack.c.bf16 %v3149, %v3150
  %v3156 = vpack.c.bf16 %v3147, %v3148
  %v3157 = vpack.c.bf16 %v3153, %v3146
  %v3158 = vrot.slane %v3106, 3
  %v3159 = vrot.slane %v3107, 3
  %v3160 = vrot.slane %v3108, 3
  %v3161 = vrot.slane %v3109, 3
  %v3162 = vrot.slane %v3110, 3
  %v3163 = vrot.slane %v3111, 3
  %v3164 = vrot.slane %v3112, 3
  %v3165 = vrot.slane %v3113, 3
  %v3166 = vsel %vm88, %v3164, %v3165
  %v3167 = vsel %vm88, %v3163, %v3164
  %v3168 = vsel %vm88, %v3162, %v3163
  %v3169 = vsel %vm88, %v3161, %v3162
  %v3170 = vsel %vm88, %v3160, %v3161
  %v3171 = vsel %vm88, %v3159, %v3160
  %v3172 = vsel %vm88, %v3158, %v3159
  %v3173 = vsel %vm88, %v3165, %v3158
  %v3174 = vpack.c.bf16 %v3171, %v3172
  %v3175 = vpack.c.bf16 %v3169, %v3170
  %v3176 = vpack.c.bf16 %v3167, %v3168
  %v3177 = vpack.c.bf16 %v3173, %v3166
  %v3178 = vrot.slane %v3106, 4
  %v3179 = vrot.slane %v3107, 4
  %v3180 = vrot.slane %v3108, 4
  %v3181 = vrot.slane %v3109, 4
  %v3182 = vrot.slane %v3110, 4
  %v3183 = vrot.slane %v3111, 4
  %v3184 = vrot.slane %v3112, 4
  %v3185 = vrot.slane %v3113, 4
  %v3186 = vsel %vm438, %v3184, %v3185
  %v3187 = vsel %vm438, %v3183, %v3184
  %v3188 = vsel %vm438, %v3182, %v3183
  %v3189 = vsel %vm438, %v3181, %v3182
  %v3190 = vsel %vm438, %v3180, %v3181
  %v3191 = vsel %vm438, %v3179, %v3180
  %v3192 = vsel %vm438, %v3178, %v3179
  %v3193 = vsel %vm438, %v3185, %v3178
  %v3194 = vpack.c.bf16 %v3191, %v3192
  %v3195 = vpack.c.bf16 %v3189, %v3190
  %v3196 = vpack.c.bf16 %v3187, %v3188
  %v3197 = vpack.c.bf16 %v3193, %v3186
  %v3198 = vrot.slane %v3106, 5
  %v3199 = vrot.slane %v3107, 5
  %v3200 = vrot.slane %v3108, 5
  %v3201 = vrot.slane %v3109, 5
  %v3202 = vrot.slane %v3110, 5
  %v3203 = vrot.slane %v3111, 5
  %v3204 = vrot.slane %v3112, 5
  %v3205 = vrot.slane %v3113, 5
  %v3206 = vsel %vm459, %v3204, %v3205
  %v3207 = vsel %vm459, %v3203, %v3204
  %v3208 = vsel %vm459, %v3202, %v3203
  %v3209 = vsel %vm459, %v3201, %v3202
  %v3210 = vsel %vm459, %v3200, %v3201
  %v3211 = vsel %vm459, %v3199, %v3200
  %v3212 = vsel %vm459, %v3198, %v3199
  %v3213 = vsel %vm459, %v3205, %v3198
  %v3214 = vpack.c.bf16 %v3211, %v3212
  %v3215 = vpack.c.bf16 %v3209, %v3210
  %v3216 = vpack.c.bf16 %v3207, %v3208
  %v3217 = vpack.c.bf16 %v3213, %v3206
  %v3218 = vrot.slane %v3106, 6
  %v3219 = vrot.slane %v3107, 6
  %v3220 = vrot.slane %v3108, 6
  %v3221 = vrot.slane %v3109, 6
  %v3222 = vrot.slane %v3110, 6
  %v3223 = vrot.slane %v3111, 6
  %v3224 = vrot.slane %v3112, 6
  %v3225 = vrot.slane %v3113, 6
  %v3226 = vsel %vm480, %v3224, %v3225
  %v3227 = vsel %vm480, %v3223, %v3224
  %v3228 = vsel %vm480, %v3222, %v3223
  %v3229 = vsel %vm480, %v3221, %v3222
  %v3230 = vsel %vm480, %v3220, %v3221
  %v3231 = vsel %vm480, %v3219, %v3220
  %v3232 = vsel %vm480, %v3218, %v3219
  %v3233 = vsel %vm480, %v3225, %v3218
  %v3234 = vpack.c.bf16 %v3231, %v3232
  %v3235 = vpack.c.bf16 %v3229, %v3230
  %v3236 = vpack.c.bf16 %v3227, %v3228
  %v3237 = vpack.c.bf16 %v3233, %v3226
  %v3238 = vrot.slane %v3106, 7
  %v3239 = vrot.slane %v3107, 7
  %v3240 = vrot.slane %v3108, 7
  %v3241 = vrot.slane %v3109, 7
  %v3242 = vrot.slane %v3110, 7
  %v3243 = vrot.slane %v3111, 7
  %v3244 = vrot.slane %v3112, 7
  %v3245 = vrot.slane %v3113, 7
  %v3246 = vsel %vm501, %v3244, %v3245
  %v3247 = vsel %vm501, %v3243, %v3244
  %v3248 = vsel %vm501, %v3242, %v3243
  %v3249 = vsel %vm501, %v3241, %v3242
  %v3250 = vsel %vm501, %v3240, %v3241
  %v3251 = vsel %vm501, %v3239, %v3240
  %v3252 = vsel %vm501, %v3238, %v3239
  %v3253 = vsel %vm501, %v3245, %v3238
  %v3254 = vpack.c.bf16 %v3251, %v3252
  %v3255 = vpack.c.bf16 %v3249, %v3250
  %v3256 = vpack.c.bf16 %v3247, %v3248
  %v3257 = vpack.c.bf16 %v3253, %v3246
  %v3258 = vpack.c.bf16 %v3108, %v3107
  %v3259 = vpack.c.bf16 %v3110, %v3109
  %v3260 = vpack.c.bf16 %v3112, %v3111
  %v3261 = vpack.c.bf16 %v3106, %v3113
  %v3262 = vpack.c.bf16 %v3130, %v3131
  %v3263 = vpack.c.bf16 %v3128, %v3129
  %v3264 = vpack.c.bf16 %v3126, %v3127
  %v3265 = vpack.c.bf16 %v3132, %v3133
  %v3266 = vpack.c.bf16 %v3150, %v3151
  %v3267 = vpack.c.bf16 %v3148, %v3149
  %v3268 = vpack.c.bf16 %v3146, %v3147
  %v3269 = vpack.c.bf16 %v3152, %v3153
  %v3270 = vpack.c.bf16 %v3170, %v3171
  %v3271 = vpack.c.bf16 %v3168, %v3169
  %v3272 = vpack.c.bf16 %v3166, %v3167
  %v3273 = vpack.c.bf16 %v3172, %v3173
  %3278 = vrot.lane.b32.xlu0 %v3134, 80
  %v3279 = vpop.permute.xlu0 %3278
  %3280 = vrot.lane.b32.xlu0 %v3135, 80
  %v3281 = vpop.permute.xlu0 %3280
  %3282 = vrot.lane.b32.xlu0 %v3136, 80
  %v3283 = vpop.permute.xlu0 %3282
  %3284 = vrot.lane.b32.xlu0 %v3137, 80
  %v3285 = vpop.permute.xlu0 %3284
  %3290 = vrot.lane.b32.xlu0 %v3154, 32
  %v3291 = vpop.permute.xlu0 %3290
  %3292 = vrot.lane.b32.xlu0 %v3155, 32
  %v3293 = vpop.permute.xlu0 %3292
  %3294 = vrot.lane.b32.xlu0 %v3156, 32
  %v3295 = vpop.permute.xlu0 %3294
  %3296 = vrot.lane.b32.xlu0 %v3157, 32
  %v3297 = vpop.permute.xlu0 %3296
  %3302 = vrot.lane.b32.xlu0 %v3174, 112
  %v3303 = vpop.permute.xlu0 %3302
  %3304 = vrot.lane.b32.xlu0 %v3175, 112
  %v3305 = vpop.permute.xlu0 %3304
  %3306 = vrot.lane.b32.xlu0 %v3176, 112
  %v3307 = vpop.permute.xlu0 %3306
  %3308 = vrot.lane.b32.xlu0 %v3177, 112
  %v3309 = vpop.permute.xlu0 %3308
  %3314 = vrot.lane.b32.xlu0 %v3194, 64
  %v3315 = vpop.permute.xlu0 %3314
  %3316 = vrot.lane.b32.xlu0 %v3195, 64
  %v3317 = vpop.permute.xlu0 %3316
  %3318 = vrot.lane.b32.xlu0 %v3196, 64
  %v3319 = vpop.permute.xlu0 %3318
  %3320 = vrot.lane.b32.xlu0 %v3197, 64
  %v3321 = vpop.permute.xlu0 %3320
  %3326 = vrot.lane.b32.xlu0 %v3214, 16
  %v3327 = vpop.permute.xlu0 %3326
  %3328 = vrot.lane.b32.xlu0 %v3215, 16
  %v3329 = vpop.permute.xlu0 %3328
  %3330 = vrot.lane.b32.xlu0 %v3216, 16
  %v3331 = vpop.permute.xlu0 %3330
  %3332 = vrot.lane.b32.xlu0 %v3217, 16
  %v3333 = vpop.permute.xlu0 %3332
  %3338 = vrot.lane.b32.xlu0 %v3234, 96
  %v3339 = vpop.permute.xlu0 %3338
  %3340 = vrot.lane.b32.xlu0 %v3235, 96
  %v3341 = vpop.permute.xlu0 %3340
  %3342 = vrot.lane.b32.xlu0 %v3236, 96
  %v3343 = vpop.permute.xlu0 %3342
  %3344 = vrot.lane.b32.xlu0 %v3237, 96
  %v3345 = vpop.permute.xlu0 %3344
  %3350 = vrot.lane.b32.xlu0 %v3254, 48
  %v3351 = vpop.permute.xlu0 %3350
  %3352 = vrot.lane.b32.xlu0 %v3255, 48
  %v3353 = vpop.permute.xlu0 %3352
  %3354 = vrot.lane.b32.xlu0 %v3256, 48
  %v3355 = vpop.permute.xlu0 %3354
  %3356 = vrot.lane.b32.xlu0 %v3257, 48
  %v3357 = vpop.permute.xlu0 %3356
  %3362 = vrot.lane.b32.xlu0 %v3262, 80
  %v3363 = vpop.permute.xlu0 %3362
  %3364 = vrot.lane.b32.xlu0 %v3263, 80
  %v3365 = vpop.permute.xlu0 %3364
  %3366 = vrot.lane.b32.xlu0 %v3264, 80
  %v3367 = vpop.permute.xlu0 %3366
  %3368 = vrot.lane.b32.xlu0 %v3265, 80
  %v3369 = vpop.permute.xlu0 %3368
  %3374 = vrot.lane.b32.xlu0 %v3266, 32
  %v3375 = vpop.permute.xlu0 %3374
  %3376 = vrot.lane.b32.xlu0 %v3267, 32
  %v3377 = vpop.permute.xlu0 %3376
  %3378 = vrot.lane.b32.xlu0 %v3268, 32
  %v3379 = vpop.permute.xlu0 %3378
  %3380 = vrot.lane.b32.xlu0 %v3269, 32
  %v3381 = vpop.permute.xlu0 %3380
  %3386 = vrot.lane.b32.xlu0 %v3270, 112
  %v3387 = vpop.permute.xlu0 %3386
  %3388 = vrot.lane.b32.xlu0 %v3271, 112
  %v3389 = vpop.permute.xlu0 %3388
  %3390 = vrot.lane.b32.xlu0 %v3272, 112
  %v3391 = vpop.permute.xlu0 %3390
  %3392 = vrot.lane.b32.xlu0 %v3273, 112
  %v3393 = vpop.permute.xlu0 %3392
  %v3396 = vsel %vm611, %v3114, %v3279
  %v3400 = vsel %vm611, %v3115, %v3281
  %v3404 = vsel %vm611, %v3116, %v3283
  %v3408 = vsel %vm611, %v3117, %v3285
  %v3411 = vsel %vm633, %v3279, %v3291
  %v3413 = vsel %vm633, %v3281, %v3293
  %v3415 = vsel %vm633, %v3283, %v3295
  %v3417 = vsel %vm633, %v3285, %v3297
  %v3419 = vsel %vm651, %v3411, %v3303
  %v3422 = vsel %vm651, %v3413, %v3305
  %v3425 = vsel %vm651, %v3415, %v3307
  %v3428 = vsel %vm651, %v3417, %v3309
  %v3431 = vsel %vm125, %v3303, %v3315
  %v3434 = vsel %vm125, %v3305, %v3317
  %v3437 = vsel %vm125, %v3307, %v3319
  %v3440 = vsel %vm125, %v3309, %v3321
  %v3443 = vsel %vm1314, %v3315, %v3327
  %v3445 = vsel %vm1314, %v3317, %v3329
  %v3447 = vsel %vm1314, %v3319, %v3331
  %v3449 = vsel %vm1314, %v3321, %v3333
  %v3451 = vsel %vm1323, %v3443, %v3339
  %v3454 = vsel %vm1323, %v3445, %v3341
  %v3457 = vsel %vm1323, %v3447, %v3343
  %v3460 = vsel %vm1323, %v3449, %v3345
  %v3463 = vsel %vm1336, %v3339, %v3351
  %v3466 = vsel %vm1336, %v3341, %v3353
  %v3469 = vsel %vm1336, %v3343, %v3355
  %v3472 = vsel %vm1336, %v3345, %v3357
  %v3476 = vsel %vm611, %v3258, %v3363
  %v3480 = vsel %vm611, %v3259, %v3365
  %v3484 = vsel %vm611, %v3260, %v3367
  %v3488 = vsel %vm611, %v3261, %v3369
  %v3491 = vsel %vm633, %v3363, %v3375
  %v3493 = vsel %vm633, %v3365, %v3377
  %v3495 = vsel %vm633, %v3367, %v3379
  %v3497 = vsel %vm633, %v3369, %v3381
  %v3499 = vsel %vm651, %v3491, %v3387
  %v3502 = vsel %vm651, %v3493, %v3389
  %v3505 = vsel %vm651, %v3495, %v3391
  %v3508 = vsel %vm651, %v3497, %v3393
  %v3510 = vsel %vm125, %v3387, 0
  %v3512 = vsel %vm125, %v3389, 0
  %v3514 = vsel %vm125, %v3391, 0
  %v3516 = vsel %vm125, %v3393, 0
  %3518 = vmatprep.subr.bf16.mxu0 %v1866
  %3519 = vmatpush1.bf16.msra.mxu0 %v1865
  %3520 = vmatprep.subr.bf16.mxu0 %v1868
  %3521 = vmatpush1.bf16.msra.mxu0 %v1867
  %3522 = vmatprep.subr.bf16.mxu0 %v1870
  %3523 = vmatpush1.bf16.msra.mxu0 %v1869
  %3524 = vmatprep.subr.bf16.mxu0 %v1872
  %3525 = vmatpush1.bf16.msra.mxu0 %v1871
  %3526 = vmatprep.subr.bf16.mxu0 %v1874
  %3527 = vmatpush1.bf16.msra.mxu0 %v1873
  %3528 = vmatprep.subr.bf16.mxu0 %v1876
  %3529 = vmatpush1.bf16.msra.mxu0 %v1875
  %3530 = vmatprep.subr.bf16.mxu0 %v1878
  %3531 = vmatpush1.bf16.msra.mxu0 %v1877
  %3532 = vmatprep.subr.bf16.mxu0 %v1880
  %3533 = vmatpush1.bf16.msra.mxu0 %v1879
  %3534 = vmatprep.subr.bf16.mxu0 %v1882
  %3535 = vmatpush1.bf16.msra.mxu0 %v1881
  %3536 = vmatprep.subr.bf16.mxu0 %v1884
  %3537 = vmatpush1.bf16.msra.mxu0 %v1883
  %3538 = vmatprep.subr.bf16.mxu0 %v1886
  %3539 = vmatpush1.bf16.msra.mxu0 %v1885
  %3540 = vmatprep.subr.bf16.mxu0 %v1888
  %3541 = vmatpush1.bf16.msra.mxu0 %v1887
  %3542 = vmatprep.subr.bf16.mxu0 %v1890
  %3543 = vmatpush1.bf16.msra.mxu0 %v1889
  %3544 = vmatprep.subr.bf16.mxu0 %v1892
  %3545 = vmatpush1.bf16.msra.mxu0 %v1891
  %3546 = vmatprep.subr.bf16.mxu0 %v1894
  %3547 = vmatpush1.bf16.msra.mxu0 %v1893
  %3548 = vmatprep.subr.bf16.mxu0 %v1896
  %3549 = vmatpush1.bf16.msra.mxu0 %v1895
  %3550 = vmatprep.mubr.bf16.mxu0 %v3419
  %3551 = vmatmul.mubr.bf16.gmra.mrb[0].mxu0 %v3396
  %v3552 = vpop.f32.mrb[0].mxu0
  %v3553 = vadd.f32 0.0, %v3552
  %v3554 = vpop.f32.mrb[0].mxu0
  %v3555 = vadd.f32 0.0, %v3554
  %v3556 = vpop.f32.mrb[0].mxu0
  %v3557 = vadd.f32 0.0, %v3556
  %v3558 = vpop.f32.mrb[0].mxu0
  %v3559 = vadd.f32 0.0, %v3558
  %3560 = vmatprep.mubr.bf16.mxu0 %v3422
  %3561 = vmatmul.mubr.bf16.gmra.mrb[0].mxu0 %v3400
  %v3562 = vpop.f32.mrb[0].mxu0
  %v3563 = vadd.f32 0.0, %v3562
  %v3564 = vpop.f32.mrb[0].mxu0
  %v3565 = vadd.f32 0.0, %v3564
  %v3566 = vpop.f32.mrb[0].mxu0
  %v3567 = vadd.f32 0.0, %v3566
  %v3568 = vpop.f32.mrb[0].mxu0
  %v3569 = vadd.f32 0.0, %v3568
  %3570 = vmatprep.mubr.bf16.mxu0 %v3425
  %3571 = vmatmul.mubr.bf16.gmra.mrb[0].mxu0 %v3404
  %v3572 = vpop.f32.mrb[0].mxu0
  %v3573 = vadd.f32 0.0, %v3572
  %v3574 = vpop.f32.mrb[0].mxu0
  %v3575 = vadd.f32 0.0, %v3574
  %v3576 = vpop.f32.mrb[0].mxu0
  %v3577 = vadd.f32 0.0, %v3576
  %v3578 = vpop.f32.mrb[0].mxu0
  %v3579 = vadd.f32 0.0, %v3578
  %3580 = vmatprep.mubr.bf16.mxu0 %v3428
  %3581 = vmatmul.mubr.bf16.gmra.mrb[0].mxu0 %v3408
  %v3582 = vpop.f32.mrb[0].mxu0
  %v3583 = vadd.f32 0.0, %v3582
  %v3584 = vpop.f32.mrb[0].mxu0
  %v3585 = vadd.f32 0.0, %v3584
  %v3586 = vpop.f32.mrb[0].mxu0
  %v3587 = vadd.f32 0.0, %v3586
  %v3588 = vpop.f32.mrb[0].mxu0
  %v3589 = vadd.f32 0.0, %v3588
  %3590 = vdwg.mxu0
  %3591 = vmatprep.subr.bf16.mxu0 %v1898
  %3592 = vmatpush1.bf16.msra.mxu0 %v1897
  %3593 = vmatprep.subr.bf16.mxu0 %v1900
  %3594 = vmatpush1.bf16.msra.mxu0 %v1899
  %3595 = vmatprep.subr.bf16.mxu0 %v1902
  %3596 = vmatpush1.bf16.msra.mxu0 %v1901
  %3597 = vmatprep.subr.bf16.mxu0 %v1904
  %3598 = vmatpush1.bf16.msra.mxu0 %v1903
  %3599 = vmatprep.subr.bf16.mxu0 %v1906
  %3600 = vmatpush1.bf16.msra.mxu0 %v1905
  %3601 = vmatprep.subr.bf16.mxu0 %v1908
  %3602 = vmatpush1.bf16.msra.mxu0 %v1907
  %3603 = vmatprep.subr.bf16.mxu0 %v1910
  %3604 = vmatpush1.bf16.msra.mxu0 %v1909
  %3605 = vmatprep.subr.bf16.mxu0 %v1912
  %3606 = vmatpush1.bf16.msra.mxu0 %v1911
  %3607 = vmatprep.subr.bf16.mxu0 %v1914
  %3608 = vmatpush1.bf16.msra.mxu0 %v1913
  %3609 = vmatprep.subr.bf16.mxu0 %v1916
  %3610 = vmatpush1.bf16.msra.mxu0 %v1915
  %3611 = vmatprep.subr.bf16.mxu0 %v1918
  %3612 = vmatpush1.bf16.msra.mxu0 %v1917
  %3613 = vmatprep.subr.bf16.mxu0 %v1920
  %3614 = vmatpush1.bf16.msra.mxu0 %v1919
  %3615 = vmatprep.subr.bf16.mxu0 %v1922
  %3616 = vmatpush1.bf16.msra.mxu0 %v1921
  %3617 = vmatprep.subr.bf16.mxu0 %v1924
  %3618 = vmatpush1.bf16.msra.mxu0 %v1923
  %3619 = vmatprep.subr.bf16.mxu0 %v1926
  %3620 = vmatpush1.bf16.msra.mxu0 %v1925
  %3621 = vmatprep.subr.bf16.mxu0 %v1928
  %3622 = vmatpush1.bf16.msra.mxu0 %v1927
  %3623 = vmatprep.mubr.bf16.mxu0 %v3451
  %3624 = vmatmul.mubr.bf16.gmra.mrb[0].mxu0 %v3431
  %v3625 = vpop.f32.mrb[0].mxu0
  %v3626 = vadd.f32 %v3553, %v3625
  %v3627 = vpop.f32.mrb[0].mxu0
  %v3628 = vadd.f32 %v3555, %v3627
  %v3629 = vpop.f32.mrb[0].mxu0
  %v3630 = vadd.f32 %v3557, %v3629
  %v3631 = vpop.f32.mrb[0].mxu0
  %v3632 = vadd.f32 %v3559, %v3631
  %3633 = vmatprep.mubr.bf16.mxu0 %v3454
  %3634 = vmatmul.mubr.bf16.gmra.mrb[0].mxu0 %v3434
  %v3635 = vpop.f32.mrb[0].mxu0
  %v3636 = vadd.f32 %v3563, %v3635
  %v3637 = vpop.f32.mrb[0].mxu0
  %v3638 = vadd.f32 %v3565, %v3637
  %v3639 = vpop.f32.mrb[0].mxu0
  %v3640 = vadd.f32 %v3567, %v3639
  %v3641 = vpop.f32.mrb[0].mxu0
  %v3642 = vadd.f32 %v3569, %v3641
  %3643 = vmatprep.mubr.bf16.mxu0 %v3457
  %3644 = vmatmul.mubr.bf16.gmra.mrb[0].mxu0 %v3437
  %v3645 = vpop.f32.mrb[0].mxu0
  %v3646 = vadd.f32 %v3573, %v3645
  %v3647 = vpop.f32.mrb[0].mxu0
  %v3648 = vadd.f32 %v3575, %v3647
  %v3649 = vpop.f32.mrb[0].mxu0
  %v3650 = vadd.f32 %v3577, %v3649
  %v3651 = vpop.f32.mrb[0].mxu0
  %v3652 = vadd.f32 %v3579, %v3651
  %3653 = vmatprep.mubr.bf16.mxu0 %v3460
  %3654 = vmatmul.mubr.bf16.gmra.mrb[0].mxu0 %v3440
  %v3655 = vpop.f32.mrb[0].mxu0
  %v3656 = vadd.f32 %v3583, %v3655
  %v3657 = vpop.f32.mrb[0].mxu0
  %v3658 = vadd.f32 %v3585, %v3657
  %v3659 = vpop.f32.mrb[0].mxu0
  %v3660 = vadd.f32 %v3587, %v3659
  %v3661 = vpop.f32.mrb[0].mxu0
  %v3662 = vadd.f32 %v3589, %v3661
  %3663 = vdwg.mxu0
  %3664 = vmatprep.subr.bf16.mxu0 %v1930
  %3665 = vmatpush1.bf16.msra.mxu0 %v1929
  %3666 = vmatprep.subr.bf16.mxu0 %v1932
  %3667 = vmatpush1.bf16.msra.mxu0 %v1931
  %3668 = vmatprep.subr.bf16.mxu0 %v1934
  %3669 = vmatpush1.bf16.msra.mxu0 %v1933
  %3670 = vmatprep.subr.bf16.mxu0 %v1936
  %3671 = vmatpush1.bf16.msra.mxu0 %v1935
  %3672 = vmatprep.subr.bf16.mxu0 %v1938
  %3673 = vmatpush1.bf16.msra.mxu0 %v1937
  %3674 = vmatprep.subr.bf16.mxu0 %v1940
  %3675 = vmatpush1.bf16.msra.mxu0 %v1939
  %3676 = vmatprep.subr.bf16.mxu0 %v1942
  %3677 = vmatpush1.bf16.msra.mxu0 %v1941
  %3678 = vmatprep.subr.bf16.mxu0 %v1944
  %3679 = vmatpush1.bf16.msra.mxu0 %v1943
  %3680 = vmatprep.subr.bf16.mxu0 %v1946
  %3681 = vmatpush1.bf16.msra.mxu0 %v1945
  %3682 = vmatprep.subr.bf16.mxu0 %v1948
  %3683 = vmatpush1.bf16.msra.mxu0 %v1947
  %3684 = vmatprep.subr.bf16.mxu0 %v1950
  %3685 = vmatpush1.bf16.msra.mxu0 %v1949
  %3686 = vmatprep.subr.bf16.mxu0 %v1952
  %3687 = vmatpush1.bf16.msra.mxu0 %v1951
  %3688 = vmatprep.subr.bf16.mxu0 %v1954
  %3689 = vmatpush1.bf16.msra.mxu0 %v1953
  %3690 = vmatprep.subr.bf16.mxu0 %v1956
  %3691 = vmatpush1.bf16.msra.mxu0 %v1955
  %3692 = vmatprep.subr.bf16.mxu0 %v1958
  %3693 = vmatpush1.bf16.msra.mxu0 %v1957
  %3694 = vmatprep.subr.bf16.mxu0 %v1960
  %3695 = vmatpush1.bf16.msra.mxu0 %v1959
  %3696 = vmatprep.mubr.bf16.mxu0 %v3476
  %3697 = vmatmul.mubr.bf16.gmra.mrb[0].mxu0 %v3463
  %v3698 = vpop.f32.mrb[0].mxu0
  %v3699 = vadd.f32 %v3626, %v3698
  %v3700 = vpop.f32.mrb[0].mxu0
  %v3701 = vadd.f32 %v3628, %v3700
  %v3702 = vpop.f32.mrb[0].mxu0
  %v3703 = vadd.f32 %v3630, %v3702
  %v3704 = vpop.f32.mrb[0].mxu0
  %v3705 = vadd.f32 %v3632, %v3704
  %3706 = vmatprep.mubr.bf16.mxu0 %v3480
  %3707 = vmatmul.mubr.bf16.gmra.mrb[0].mxu0 %v3466
  %v3708 = vpop.f32.mrb[0].mxu0
  %v3709 = vadd.f32 %v3636, %v3708
  %v3710 = vpop.f32.mrb[0].mxu0
  %v3711 = vadd.f32 %v3638, %v3710
  %v3712 = vpop.f32.mrb[0].mxu0
  %v3713 = vadd.f32 %v3640, %v3712
  %v3714 = vpop.f32.mrb[0].mxu0
  %v3715 = vadd.f32 %v3642, %v3714
  %3716 = vmatprep.mubr.bf16.mxu0 %v3484
  %3717 = vmatmul.mubr.bf16.gmra.mrb[0].mxu0 %v3469
  %v3718 = vpop.f32.mrb[0].mxu0
  %v3719 = vadd.f32 %v3646, %v3718
  %v3720 = vpop.f32.mrb[0].mxu0
  %v3721 = vadd.f32 %v3648, %v3720
  %v3722 = vpop.f32.mrb[0].mxu0
  %v3723 = vadd.f32 %v3650, %v3722
  %v3724 = vpop.f32.mrb[0].mxu0
  %v3725 = vadd.f32 %v3652, %v3724
  %3726 = vmatprep.mubr.bf16.mxu0 %v3488
  %3727 = vmatmul.mubr.bf16.gmra.mrb[0].mxu0 %v3472
  %v3728 = vpop.f32.mrb[0].mxu0
  %v3729 = vadd.f32 %v3656, %v3728
  %v3730 = vpop.f32.mrb[0].mxu0
  %v3731 = vadd.f32 %v3658, %v3730
  %v3732 = vpop.f32.mrb[0].mxu0
  %v3733 = vadd.f32 %v3660, %v3732
  %v3734 = vpop.f32.mrb[0].mxu0
  %v3735 = vadd.f32 %v3662, %v3734
  %3736 = vdwg.mxu0
  %3737 = vmatprep.subr.bf16.mxu0 %v1962
  %3738 = vmatpush1.bf16.msra.mxu0 %v1961
  %3739 = vmatprep.subr.bf16.mxu0 %v1964
  %3740 = vmatpush1.bf16.msra.mxu0 %v1963
  %3741 = vmatprep.subr.bf16.mxu0 %v1966
  %3742 = vmatpush1.bf16.msra.mxu0 %v1965
  %3743 = vmatprep.subr.bf16.mxu0 %v1968
  %3744 = vmatpush1.bf16.msra.mxu0 %v1967
  %3745 = vmatprep.subr.bf16.mxu0 %v1970
  %3746 = vmatpush1.bf16.msra.mxu0 %v1969
  %3747 = vmatprep.subr.bf16.mxu0 %v1972
  %3748 = vmatpush1.bf16.msra.mxu0 %v1971
  %3749 = vmatprep.subr.bf16.mxu0 %v1974
  %3750 = vmatpush1.bf16.msra.mxu0 %v1973
  %3751 = vmatprep.subr.bf16.mxu0 %v1976
  %3752 = vmatpush1.bf16.msra.mxu0 %v1975
  %3753 = vmatprep.subr.bf16.mxu0 %v1978
  %3754 = vmatpush1.bf16.msra.mxu0 %v1977
  %3755 = vmatprep.subr.bf16.mxu0 %v1980
  %3756 = vmatpush1.bf16.msra.mxu0 %v1979
  %3757 = vmatprep.subr.bf16.mxu0 %v1982
  %3758 = vmatpush1.bf16.msra.mxu0 %v1981
  %3759 = vmatprep.subr.bf16.mxu0 %v1984
  %3760 = vmatpush1.bf16.msra.mxu0 %v1983
  %3761 = vmatprep.subr.bf16.mxu0 0
  %3762 = vmatpush1.bf16.msra.mxu0 0
  %3763 = vmatprep.subr.bf16.mxu0 0
  %3764 = vmatpush1.bf16.msra.mxu0 0
  %3765 = vmatprep.subr.bf16.mxu0 0
  %3766 = vmatpush1.bf16.msra.mxu0 0
  %3767 = vmatprep.subr.bf16.mxu0 0
  %3768 = vmatpush1.bf16.msra.mxu0 0
  %3769 = vmatprep.mubr.bf16.mxu0 %v3510
  %3770 = vmatmul.mubr.bf16.gmra.mrb[0].mxu0 %v3499
  %v3771 = vpop.f32.mrb[0].mxu0
  %v3772 = vadd.f32 %v3699, %v3771
  %v3773 = vpop.f32.mrb[0].mxu0
  %v3774 = vadd.f32 %v3701, %v3773
  %v3775 = vpop.f32.mrb[0].mxu0
  %v3776 = vadd.f32 %v3703, %v3775
  %v3777 = vpop.f32.mrb[0].mxu0
  %v3778 = vadd.f32 %v3705, %v3777
  %3779 = vmatprep.mubr.bf16.mxu0 %v3512
  %3780 = vmatmul.mubr.bf16.gmra.mrb[0].mxu0 %v3502
  %v3781 = vpop.f32.mrb[0].mxu0
  %v3782 = vadd.f32 %v3709, %v3781
  %v3783 = vpop.f32.mrb[0].mxu0
  %v3784 = vadd.f32 %v3711, %v3783
  %v3785 = vpop.f32.mrb[0].mxu0
  %v3786 = vadd.f32 %v3713, %v3785
  %v3787 = vpop.f32.mrb[0].mxu0
  %v3788 = vadd.f32 %v3715, %v3787
  %3789 = vmatprep.mubr.bf16.mxu0 %v3514
  %3790 = vmatmul.mubr.bf16.gmra.mrb[0].mxu0 %v3505
  %v3791 = vpop.f32.mrb[0].mxu0
  %v3792 = vadd.f32 %v3719, %v3791
  %v3793 = vpop.f32.mrb[0].mxu0
  %v3794 = vadd.f32 %v3721, %v3793
  %v3795 = vpop.f32.mrb[0].mxu0
  %v3796 = vadd.f32 %v3723, %v3795
  %v3797 = vpop.f32.mrb[0].mxu0
  %v3798 = vadd.f32 %v3725, %v3797
  %3799 = vmatprep.mubr.bf16.mxu0 %v3516
  %3800 = vmatmul.mubr.bf16.gmra.mrb[0].mxu0 %v3508
  %v3801 = vpop.f32.mrb[0].mxu0
  %v3802 = vadd.f32 %v3729, %v3801
  %v3803 = vpop.f32.mrb[0].mxu0
  %v3804 = vadd.f32 %v3731, %v3803
  %v3805 = vpop.f32.mrb[0].mxu0
  %v3806 = vadd.f32 %v3733, %v3805
  %v3807 = vpop.f32.mrb[0].mxu0
  %v3808 = vadd.f32 %v3735, %v3807
  %3809 = vdwg.mxu0
  %v3810 = vsel %vm2412, %v3772, -1e+30
  %v3811 = vsel %vm2412, %v3774, -1e+30
  %v3812 = vsel %vm2413, %v3776, -1e+30
  %v3813 = vsel %vm2413, %v3778, -1e+30
  %v3814 = vsel %vm2414, %v3782, -1e+30
  %v3815 = vsel %vm2414, %v3784, -1e+30
  %v3816 = vsel %vm2415, %v3786, -1e+30
  %v3817 = vsel %vm2415, %v3788, -1e+30
  %v3818 = vsel %vm2416, %v3792, -1e+30
  %v3819 = vsel %vm2416, %v3794, -1e+30
  %v3820 = vsel %vm2417, %v3796, -1e+30
  %v3821 = vsel %vm2417, %v3798, -1e+30
  %v3822 = vsel %vm2418, %v3802, -1e+30
  %v3823 = vsel %vm2418, %v3804, -1e+30
  %v3824 = vsel %vm2419, %v3806, -1e+30
  %v3825 = vsel %vm2419, %v3808, -1e+30
  %v3826 = vmax.f32 %v3810, %v3814
  %v3827 = vmax.f32 %v3812, %v3816
  %v3828 = vmax.f32 %v3826, %v3818
  %v3829 = vmax.f32 %v3827, %v3820
  %v3830 = vmax.f32 %v3828, %v3822
  %v3831 = vmax.f32 %v3829, %v3824
  %v3832 = vmax.f32 %v3830, %v3831
  %v3833 = vrot.slane %v3832, 4
  %v3834 = vmax.f32 %v3832, %v3833
  %v3835 = vrot.slane %v3834, 2
  %v3836 = vmax.f32 %v3834, %v3835
  %v3837 = vrot.slane %v3836, 1
  %v3838 = vmax.f32 %v3836, %v3837
  %v3839 = vsel %vm633, %v3811, -inf
  %v3840 = vsel %vm633, %v3813, -inf
  %v3841 = vsel %vm633, %v3815, -inf
  %v3842 = vmax.f32 %v3839, %v3841
  %v3843 = vsel %vm633, %v3817, -inf
  %v3844 = vmax.f32 %v3840, %v3843
  %v3845 = vsel %vm633, %v3819, -inf
  %v3846 = vmax.f32 %v3842, %v3845
  %v3847 = vsel %vm633, %v3821, -inf
  %v3848 = vmax.f32 %v3844, %v3847
  %v3849 = vsel %vm633, %v3823, -inf
  %v3850 = vmax.f32 %v3846, %v3849
  %v3851 = vsel %vm633, %v3825, -inf
  %v3852 = vmax.f32 %v3848, %v3851
  %v3853 = vmax.f32 %v3850, %v3852
  %v3854 = vrot.slane %v3853, 4
  %v3855 = vmax.f32 %v3853, %v3854
  %v3856 = vrot.slane %v3855, 2
  %v3857 = vmax.f32 %v3855, %v3856
  %v3858 = vrot.slane %v3857, 1
  %v3859 = vmax.f32 %v3857, %v3858
  %vm3860 = vcmask 1040384
  %v3861 = vsel %vm3860, %v2448, %v3838
  %v3862 = vsel %vm3860, %v2469, %v3859
  %v3865 = vcombine.low %v3861, %v3862
  %v3867 = vunpack.c.l.s4 1983009808
  %v3868 = vunpack.c.0.s8 %v3867
  %v3869 = vlaneseq
  %v3870 = vshrl.u32 %v3869, 7
  %v3871 = vsub.s32 %v3868, %v3870
  %v3872 = vrot.slane %v3865, %v3871
  %vm3874 = vcmask 1041408
  %vm3875 = vcmask 257026
  %vm3876 = vmor %vm3875, %vm3874
  %3877 = vst.msk [vmem:[%s6] sm:$0xf] %vm3876, %v3872
  // Predicated region
  $region26: #{cnn_forward.2} parent=0 // pred_check
    _
  $region27: #{cnn_forward.2} parent=0 // pred_check_branch
    %3879 = sbr.rel (0) target = $region29
  $region28: #{cnn_forward.2} parent=0 // pred_region
    _
  $region29: #{cnn_forward.2} parent=0 // pred_fallthru
    _
  // Predicated region
  $region30: #{cnn_forward.2} parent=0 // pred_check
    _
  $region31: #{cnn_forward.2} parent=0 // pred_check_branch
    %3881 = sbr.rel (0) target = $region33
  $region32: #{cnn_forward.2} parent=0 // pred_region
    _
  $region33: #{cnn_forward.2} parent=0 // pred_fallthru
    _

</llo_original>
